<compile_context>
chip_gen: v6e
topology: v6e:2x2x1
jax: 0.10.0
libtpu: 0.0.40
codegen_flags: <defaults>
</compile_context>

<pallas_src>
import jax
import jax.numpy as jnp
from jax.experimental import pallas as pl
from jax.experimental.pallas import tpu as pltpu

# ----------------------------- problem sizes --------------------------------
B = 2        # batch
I = 4        # encoder input_dim  (src features)
O = 3        # decoder output_dim (trg "vocab" / waypoint features)
H = 32       # hid_dim (encoder.hid_dim == decoder.hid_dim)
NL = 2       # n_layers (encoder.n_layers == decoder.n_layers)
S_SRC = 8    # source sequence length
T_TRG = 6    # target sequence length
O_PAD = 128  # lane-dense padded output width (sliced back to O in the wrapper)


def _apply_gates(gates, c):
    """PyTorch LSTM gate math. gates:(B,4H) in (i,f,g,o) order, c:(B,H)."""
    sig = jax.nn.sigmoid(gates)      # one EUP pass over the whole gates vreg
    tan = jnp.tanh(gates)            # one EUP pass over the whole gates vreg
    i = sig[:, 0 * H:1 * H]
    f = sig[:, 1 * H:2 * H]
    g = tan[:, 2 * H:3 * H]
    o = sig[:, 3 * H:4 * H]
    c_new = f * c + i * g
    h_new = o * jnp.tanh(c_new)
    return h_new, c_new


# ------------------------------- Pallas kernel -------------------------------
def seq2seq_kernel(src_ref, trg_ref, tf_ref,
                   e_wih0, e_whh0, e_b0, e_wih1, e_whh1, e_b1,
                   d_wih0, d_whh0, d_b0, d_wih1, d_whh1, d_b1,
                   fc_w, fc_b,
                   out_ref):
    # outputs[0] stays zeros (torch convention) -- written once, lane-dense.
    out_ref[0, :, :] = jnp.zeros((B, O_PAD), jnp.float32)

    # -------- encoder: 2-layer wavefronted LSTM over the src sequence --------
    # Layer-0 input projection is time-batched: one MXU matmul for all steps.
    xproj0 = (jnp.dot(src_ref[...], e_wih0[...],
                      preferred_element_type=jnp.float32)
              + e_b0[...])                                   # (S_SRC*B, 4H)
    whh0 = e_whh0[...]
    wih1 = e_wih1[...]
    whh1 = e_whh1[...]
    b1 = e_b1[...]

    h0 = jnp.zeros((B, H), jnp.float32)
    c0 = jnp.zeros((B, H), jnp.float32)
    h1 = jnp.zeros((B, H), jnp.float32)
    c1 = jnp.zeros((B, H), jnp.float32)

    # Wavefront: layer-0 cell t and layer-1 cell t-1 are data-independent, so
    # their MXU/EUP latency chains overlap (serial depth ~S_SRC+1, not 2*S_SRC).
    h0_prev = h0
    for t in range(S_SRC):
        g0 = xproj0[t * B:(t + 1) * B, :] + jnp.dot(
            h0, whh0, preferred_element_type=jnp.float32)
        h0_new, c0 = _apply_gates(g0, c0)
        if t > 0:
            g1 = (jnp.dot(h0_prev, wih1, preferred_element_type=jnp.float32)
                  + jnp.dot(h1, whh1, preferred_element_type=jnp.float32)
                  + b1)
            h1, c1 = _apply_gates(g1, c1)
        h0_prev = h0_new
        h0 = h0_new
    # Drain: layer-1 cell for the last source step.
    g1 = (jnp.dot(h0, wih1, preferred_element_type=jnp.float32)
          + jnp.dot(h1, whh1, preferred_element_type=jnp.float32) + b1)
    h1, c1 = _apply_gates(g1, c1)

    # -------- decoder: one step per target position --------
    dw0 = d_wih0[...]       # (O_PAD, 4H): zero rows beyond O
    dh0 = d_whh0[...]
    db0 = d_b0[...]
    dw1 = d_wih1[...]
    dh1 = d_whh1[...]
    db1 = d_b1[...]
    fcw = fc_w[...]         # (H, O_PAD): zero columns beyond O
    fcb = fc_b[...]         # (1, O_PAD): zero lanes beyond O

    hd0, cd0 = h0, c0
    hd1, cd1 = h1, c1
    inp = trg_ref[0, :, :]                                   # (B, O_PAD), lane-dense
    for t in range(1, T_TRG):
        # layer 0: two separate MXU dots (no lane concat on the critical path)
        g0 = (jnp.dot(inp, dw0, preferred_element_type=jnp.float32)
              + jnp.dot(hd0, dh0, preferred_element_type=jnp.float32) + db0)
        hd0, cd0 = _apply_gates(g0, cd0)
        # layer 1
        g1 = (jnp.dot(hd0, dw1, preferred_element_type=jnp.float32)
              + jnp.dot(hd1, dh1, preferred_element_type=jnp.float32) + db1)
        hd1, cd1 = _apply_gates(g1, cd1)
        # FC head -> lane-dense prediction (lanes >= O are exactly 0)
        pred = jnp.dot(hd1, fcw, preferred_element_type=jnp.float32) + fcb
        out_ref[t, :, :] = pred                              # per-step 128-lane store
        # teacher forcing select (deterministic mask from SMEM); both operands
        # are lane-dense (B, O_PAD) with identical zero padding.
        inp = jnp.where(tf_ref[t] > 0, trg_ref[t, :, :], pred)


# ------------------------------ wrapper ---------------------------------------
def prepare_kernel_weights(params):
    (e_wih0, e_whh0, e_b0, e_wih1, e_whh1, e_b1,
     d_wih0, d_whh0, d_b0, d_wih1, d_whh1, d_b1, fc_w, fc_b) = params
    # Pad decoder layer-0 input weight rows to O_PAD so the lane-dense padded
    # decoder input (whose lanes >= O are exactly zero) contracts correctly.
    d_wih0_p = jnp.zeros((O_PAD, 4 * H), jnp.float32).at[:O, :].set(d_wih0)
    # Pad the FC head to 128 output lanes so in-kernel stores are lane-dense.
    fc_w_p = jnp.zeros((H, O_PAD), jnp.float32).at[:, :O].set(fc_w)
    fc_b_p = jnp.zeros((1, O_PAD), jnp.float32).at[:, :O].set(fc_b)
    return (e_wih0, e_whh0, e_b0, e_wih1, e_whh1, e_b1,
            d_wih0_p, d_whh0, d_b0, d_wih1, d_whh1, d_b1, fc_w_p, fc_b_p)


def seq2seq_forward(src, trg, tf_mask, params):
    # Layout plumbing done in the wrapper (free for XLA, costly in-kernel):
    # src -> time-major flattened (S_SRC*B, I); trg -> time-major, lane-padded.
    src_tm = jnp.transpose(src, (1, 0, 2)).reshape(S_SRC * B, I)
    trg_tm = jnp.transpose(trg, (1, 0, 2))                   # (T_TRG, B, O)
    trg_p = jnp.zeros((T_TRG, B, O_PAD), jnp.float32).at[:, :, :O].set(trg_tm)

    kweights = prepare_kernel_weights(params)
    vmem = pl.BlockSpec(memory_space=pltpu.MemorySpace.VMEM)
    smem = pl.BlockSpec(memory_space=pltpu.MemorySpace.SMEM)
    out_padded = pl.pallas_call(
        seq2seq_kernel,
        out_shape=jax.ShapeDtypeStruct((T_TRG, B, O_PAD), jnp.float32),
        in_specs=[vmem, vmem, smem] + [vmem] * len(kweights),
        out_specs=vmem,
        cost_estimate=pl.CostEstimate(
            flops=1_100_000, transcendentals=16_000, bytes_accessed=220_000),
    )(src_tm, trg_p, tf_mask, *kweights)
    return out_padded[:, :, :O]


# --------------------------- pure-JAX reference ------------------------------
def _lstm_cell_ref(x, h, c, wih, whh, b):
    gates = jnp.dot(x, wih) + jnp.dot(h, whh) + b
    i = jax.nn.sigmoid(gates[:, 0 * H:1 * H])
    f = jax.nn.sigmoid(gates[:, 1 * H:2 * H])
    g = jnp.tanh(gates[:, 2 * H:3 * H])
    o = jax.nn.sigmoid(gates[:, 3 * H:4 * H])
    c_new = f * c + i * g
    h_new = o * jnp.tanh(c_new)
    return h_new, c_new


def seq2seq_reference(src, trg, tf_mask, params):
    (e_wih0, e_whh0, e_b0, e_wih1, e_whh1, e_b1,
     d_wih0, d_whh0, d_b0, d_wih1, d_whh1, d_b1, fc_w, fc_b) = params
    enc_w = [(e_wih0, e_whh0, e_b0), (e_wih1, e_whh1, e_b1)]
    dec_w = [(d_wih0, d_whh0, d_b0), (d_wih1, d_whh1, d_b1)]

    layer_in = [src[:, t, :] for t in range(S_SRC)]
    h_enc, c_enc = [], []
    for l in range(NL):
        wih, whh, b = enc_w[l]
        h = jnp.zeros((B, H), jnp.float32)
        c = jnp.zeros((B, H), jnp.float32)
        outs = []
        for t in range(S_SRC):
            h, c = _lstm_cell_ref(layer_in[t], h, c, wih, whh, b)
            outs.append(h)
        layer_in = outs
        h_enc.append(h)
        c_enc.append(c)

    outputs = [jnp.zeros((B, O), jnp.float32)]
    h_dec, c_dec = list(h_enc), list(c_enc)
    inp = trg[:, 0, :]
    for t in range(1, T_TRG):
        x = inp
        for l in range(NL):
            wih, whh, b = dec_w[l]
            h_dec[l], c_dec[l] = _lstm_cell_ref(x, h_dec[l], c_dec[l], wih, whh, b)
            x = h_dec[l]
        pred = jnp.dot(x, fc_w) + fc_b
        outputs.append(pred)
        inp = jnp.where(tf_mask[t] > 0, trg[:, t, :], pred)
    return jnp.stack(outputs, axis=0)


# ------------------------------ param init -----------------------------------
def init_params(key):
    k = 1.0 / jnp.sqrt(jnp.float32(H))

    def u(key, shape):
        return jax.random.uniform(key, shape, jnp.float32, -k, k)

    keys = iter(jax.random.split(key, 32))
    # encoder LSTM (layer0 in-dim I, layer1 in-dim H); biases store b_ih + b_hh
    e_wih0 = u(next(keys), (I, 4 * H))
    e_whh0 = u(next(keys), (H, 4 * H))
    e_b0   = u(next(keys), (1, 4 * H)) + u(next(keys), (1, 4 * H))
    e_wih1 = u(next(keys), (H, 4 * H))
    e_whh1 = u(next(keys), (H, 4 * H))
    e_b1   = u(next(keys), (1, 4 * H)) + u(next(keys), (1, 4 * H))
    # decoder LSTM (layer0 in-dim O, layer1 in-dim H)
    d_wih0 = u(next(keys), (O, 4 * H))
    d_whh0 = u(next(keys), (H, 4 * H))
    d_b0   = u(next(keys), (1, 4 * H)) + u(next(keys), (1, 4 * H))
    d_wih1 = u(next(keys), (H, 4 * H))
    d_whh1 = u(next(keys), (H, 4 * H))
    d_b1   = u(next(keys), (1, 4 * H)) + u(next(keys), (1, 4 * H))
    # decoder fc head: Linear(H, O)
    fc_w = u(next(keys), (H, O))
    fc_b = u(next(keys), (1, O))
    return (e_wih0, e_whh0, e_b0, e_wih1, e_whh1, e_b1,
            d_wih0, d_whh0, d_b0, d_wih1, d_whh1, d_b1, fc_w, fc_b)


if __name__ == "__main__":
    root = jax.random.PRNGKey(0)
    k_src, k_trg, k_tf, k_par = jax.random.split(root, 4)

    src = jax.random.normal(k_src, (B, S_SRC, I), jnp.float32)
    trg = jax.random.normal(k_trg, (B, T_TRG, O), jnp.float32)
    # deterministic stand-in for random.random() < teacher_forcing_ratio (=0.5)
    tf_mask = jax.random.bernoulli(k_tf, 0.5, (T_TRG,)).astype(jnp.int32)
    params = init_params(k_par)

    out = seq2seq_forward(src, trg, tf_mask, params)
    out = jax.block_until_ready(out)

    ref = seq2seq_reference(src, trg, tf_mask, params)
    assert out.shape == (T_TRG, B, O)
    assert jnp.allclose(out, ref, atol=1e-5, rtol=1e-5), "mismatch vs reference"

    print("KERNEL_OK")
</pallas_src>

<mosaic_0001>
module attributes {stable_mosaic.version = 11 : i64} {
  func.func @seq2seq_kernel(%arg0: memref<16x4xf32, #tpu.memory_space<vmem>>, %arg1: memref<6x2x128xf32, #tpu.memory_space<vmem>>, %arg2: memref<6xi32, #tpu.memory_space<smem>>, %arg3: memref<4x128xf32, #tpu.memory_space<vmem>>, %arg4: memref<32x128xf32, #tpu.memory_space<vmem>>, %arg5: memref<1x128xf32, #tpu.memory_space<vmem>>, %arg6: memref<32x128xf32, #tpu.memory_space<vmem>>, %arg7: memref<32x128xf32, #tpu.memory_space<vmem>>, %arg8: memref<1x128xf32, #tpu.memory_space<vmem>>, %arg9: memref<128x128xf32, #tpu.memory_space<vmem>>, %arg10: memref<32x128xf32, #tpu.memory_space<vmem>>, %arg11: memref<1x128xf32, #tpu.memory_space<vmem>>, %arg12: memref<32x128xf32, #tpu.memory_space<vmem>>, %arg13: memref<32x128xf32, #tpu.memory_space<vmem>>, %arg14: memref<1x128xf32, #tpu.memory_space<vmem>>, %arg15: memref<32x128xf32, #tpu.memory_space<vmem>>, %arg16: memref<1x128xf32, #tpu.memory_space<vmem>>, %arg17: memref<6x2x128xf32, #tpu.memory_space<vmem>>) attributes {dimension_semantics = [], scalar_prefetch = 0 : i64, scratch_operands = 0 : i64, tpu.core_type = #tpu.core_type<tc>} {
    %cst = arith.constant 0.000000e+00 : f32
    %0 = vector.broadcast %cst : f32 to vector<2x128xf32>
    %c0 = arith.constant 0 : index
    %c0_0 = arith.constant 0 : index
    %c0_1 = arith.constant 0 : index
    %1 = vector.load %arg17[%c0, %c0_0, %c0_1] : memref<6x2x128xf32, #tpu.memory_space<vmem>>, vector<1x2x128xf32>
    %2 = vector.shape_cast %1 : vector<1x2x128xf32> to vector<2x128xf32>
    %3 = vector.shape_cast %0 : vector<2x128xf32> to vector<1x2x128xf32>
    tpu.vector_store %arg17[%c0, %c0_0, %c0_1], %3 {strides = array<i32>} : memref<6x2x128xf32, #tpu.memory_space<vmem>>, vector<1x2x128xf32>,
    %c0_2 = arith.constant 0 : index
    %c0_3 = arith.constant 0 : index
    %4 = vector.load %arg0[%c0_2, %c0_3] : memref<16x4xf32, #tpu.memory_space<vmem>>, vector<16x4xf32>
    %c0_4 = arith.constant 0 : index
    %c0_5 = arith.constant 0 : index
    %5 = vector.load %arg3[%c0_4, %c0_5] : memref<4x128xf32, #tpu.memory_space<vmem>>, vector<4x128xf32>
    %cst_6 = arith.constant dense<0.000000e+00> : vector<16x128xf32>
    %6 = tpu.matmul %4, %5, %cst_6 {dimension_numbers = #tpu.dot_dimension_numbers<[1], [0], [0], [1], [0, 0, 1, 1], [], []>} : vector<16x4xf32>, vector<4x128xf32>, vector<16x128xf32> -> vector<16x128xf32>
    %c0_7 = arith.constant 0 : index
    %c0_8 = arith.constant 0 : index
    %7 = vector.load %arg5[%c0_7, %c0_8] : memref<1x128xf32, #tpu.memory_space<vmem>>, vector<1x128xf32>
    %8 = vector.broadcast %7 : vector<1x128xf32> to vector<16x128xf32>
    %9 = arith.addf %6, %8 : vector<16x128xf32>
    %c0_9 = arith.constant 0 : index
    %c0_10 = arith.constant 0 : index
    %10 = vector.load %arg4[%c0_9, %c0_10] : memref<32x128xf32, #tpu.memory_space<vmem>>, vector<32x128xf32>
    %c0_11 = arith.constant 0 : index
    %c0_12 = arith.constant 0 : index
    %11 = vector.load %arg6[%c0_11, %c0_12] : memref<32x128xf32, #tpu.memory_space<vmem>>, vector<32x128xf32>
    %c0_13 = arith.constant 0 : index
    %c0_14 = arith.constant 0 : index
    %12 = vector.load %arg7[%c0_13, %c0_14] : memref<32x128xf32, #tpu.memory_space<vmem>>, vector<32x128xf32>
    %c0_15 = arith.constant 0 : index
    %c0_16 = arith.constant 0 : index
    %13 = vector.load %arg8[%c0_15, %c0_16] : memref<1x128xf32, #tpu.memory_space<vmem>>, vector<1x128xf32>
    %cst_17 = arith.constant 0.000000e+00 : f32
    %14 = vector.broadcast %cst_17 : f32 to vector<2x32xf32>
    %cst_18 = arith.constant 0.000000e+00 : f32
    %15 = vector.broadcast %cst_18 : f32 to vector<2x32xf32>
    %cst_19 = arith.constant 0.000000e+00 : f32
    %16 = vector.broadcast %cst_19 : f32 to vector<2x32xf32>
    %cst_20 = arith.constant 0.000000e+00 : f32
    %17 = vector.broadcast %cst_20 : f32 to vector<2x32xf32>
    %18 = vector.extract_strided_slice %9 {offsets = [0, 0], sizes = [2, 128], strides = [1, 1]} : vector<16x128xf32> to vector<2x128xf32>
    %cst_21 = arith.constant dense<0.000000e+00> : vector<2x128xf32>
    %19 = tpu.matmul %14, %10, %cst_21 {dimension_numbers = #tpu.dot_dimension_numbers<[1], [0], [0], [1], [0, 0, 1, 1], [], []>} : vector<2x32xf32>, vector<32x128xf32>, vector<2x128xf32> -> vector<2x128xf32>
    %20 = arith.addf %18, %19 : vector<2x128xf32>
    %21 = arith.negf %20 : vector<2x128xf32>
    %22 = math.exp %21 : vector<2x128xf32>
    %cst_22 = arith.constant 1.000000e+00 : f32
    %23 = vector.broadcast %cst_22 : f32 to vector<2x128xf32>
    %24 = arith.addf %23, %22 : vector<2x128xf32>
    %25 = arith.divf %23, %24 : vector<2x128xf32>
    %26 = math.tanh %20 : vector<2x128xf32>
    %27 = vector.extract_strided_slice %25 {offsets = [0, 0], sizes = [2, 32], strides = [1, 1]} : vector<2x128xf32> to vector<2x32xf32>
    %28 = vector.extract_strided_slice %25 {offsets = [0, 32], sizes = [2, 32], strides = [1, 1]} : vector<2x128xf32> to vector<2x32xf32>
    %29 = vector.extract_strided_slice %26 {offsets = [0, 64], sizes = [2, 32], strides = [1, 1]} : vector<2x128xf32> to vector<2x32xf32>
    %30 = vector.extract_strided_slice %25 {offsets = [0, 96], sizes = [2, 32], strides = [1, 1]} : vector<2x128xf32> to vector<2x32xf32>
    %31 = arith.mulf %28, %15 : vector<2x32xf32>
    %32 = arith.mulf %27, %29 : vector<2x32xf32>
    %33 = arith.addf %31, %32 : vector<2x32xf32>
    %34 = math.tanh %33 : vector<2x32xf32>
    %35 = arith.mulf %30, %34 : vector<2x32xf32>
    %36 = vector.extract_strided_slice %9 {offsets = [2, 0], sizes = [2, 128], strides = [1, 1]} : vector<16x128xf32> to vector<2x128xf32>
    %cst_23 = arith.constant dense<0.000000e+00> : vector<2x128xf32>
    %37 = tpu.matmul %35, %10, %cst_23 {dimension_numbers = #tpu.dot_dimension_numbers<[1], [0], [0], [1], [0, 0, 1, 1], [], []>} : vector<2x32xf32>, vector<32x128xf32>, vector<2x128xf32> -> vector<2x128xf32>
    %38 = arith.addf %36, %37 : vector<2x128xf32>
    %39 = arith.negf %38 : vector<2x128xf32>
    %40 = math.exp %39 : vector<2x128xf32>
    %cst_24 = arith.constant 1.000000e+00 : f32
    %41 = vector.broadcast %cst_24 : f32 to vector<2x128xf32>
    %42 = arith.addf %41, %40 : vector<2x128xf32>
    %43 = arith.divf %41, %42 : vector<2x128xf32>
    %44 = math.tanh %38 : vector<2x128xf32>
    %45 = vector.extract_strided_slice %43 {offsets = [0, 0], sizes = [2, 32], strides = [1, 1]} : vector<2x128xf32> to vector<2x32xf32>
    %46 = vector.extract_strided_slice %43 {offsets = [0, 32], sizes = [2, 32], strides = [1, 1]} : vector<2x128xf32> to vector<2x32xf32>
    %47 = vector.extract_strided_slice %44 {offsets = [0, 64], sizes = [2, 32], strides = [1, 1]} : vector<2x128xf32> to vector<2x32xf32>
    %48 = vector.extract_strided_slice %43 {offsets = [0, 96], sizes = [2, 32], strides = [1, 1]} : vector<2x128xf32> to vector<2x32xf32>
    %49 = arith.mulf %46, %33 : vector<2x32xf32>
    %50 = arith.mulf %45, %47 : vector<2x32xf32>
    %51 = arith.addf %49, %50 : vector<2x32xf32>
    %52 = math.tanh %51 : vector<2x32xf32>
    %53 = arith.mulf %48, %52 : vector<2x32xf32>
    %cst_25 = arith.constant dense<0.000000e+00> : vector<2x128xf32>
    %54 = tpu.matmul %35, %11, %cst_25 {dimension_numbers = #tpu.dot_dimension_numbers<[1], [0], [0], [1], [0, 0, 1, 1], [], []>} : vector<2x32xf32>, vector<32x128xf32>, vector<2x128xf32> -> vector<2x128xf32>
    %cst_26 = arith.constant dense<0.000000e+00> : vector<2x128xf32>
    %55 = tpu.matmul %16, %12, %cst_26 {dimension_numbers = #tpu.dot_dimension_numbers<[1], [0], [0], [1], [0, 0, 1, 1], [], []>} : vector<2x32xf32>, vector<32x128xf32>, vector<2x128xf32> -> vector<2x128xf32>
    %56 = arith.addf %54, %55 : vector<2x128xf32>
    %57 = vector.broadcast %13 : vector<1x128xf32> to vector<2x128xf32>
    %58 = arith.addf %56, %57 : vector<2x128xf32>
    %59 = arith.negf %58 : vector<2x128xf32>
    %60 = math.exp %59 : vector<2x128xf32>
    %cst_27 = arith.constant 1.000000e+00 : f32
    %61 = vector.broadcast %cst_27 : f32 to vector<2x128xf32>
    %62 = arith.addf %61, %60 : vector<2x128xf32>
    %63 = arith.divf %61, %62 : vector<2x128xf32>
    %64 = math.tanh %58 : vector<2x128xf32>
    %65 = vector.extract_strided_slice %63 {offsets = [0, 0], sizes = [2, 32], strides = [1, 1]} : vector<2x128xf32> to vector<2x32xf32>
    %66 = vector.extract_strided_slice %63 {offsets = [0, 32], sizes = [2, 32], strides = [1, 1]} : vector<2x128xf32> to vector<2x32xf32>
    %67 = vector.extract_strided_slice %64 {offsets = [0, 64], sizes = [2, 32], strides = [1, 1]} : vector<2x128xf32> to vector<2x32xf32>
    %68 = vector.extract_strided_slice %63 {offsets = [0, 96], sizes = [2, 32], strides = [1, 1]} : vector<2x128xf32> to vector<2x32xf32>
    %69 = arith.mulf %66, %17 : vector<2x32xf32>
    %70 = arith.mulf %65, %67 : vector<2x32xf32>
    %71 = arith.addf %69, %70 : vector<2x32xf32>
    %72 = math.tanh %71 : vector<2x32xf32>
    %73 = arith.mulf %68, %72 : vector<2x32xf32>
    %74 = vector.extract_strided_slice %9 {offsets = [4, 0], sizes = [2, 128], strides = [1, 1]} : vector<16x128xf32> to vector<2x128xf32>
    %cst_28 = arith.constant dense<0.000000e+00> : vector<2x128xf32>
    %75 = tpu.matmul %53, %10, %cst_28 {dimension_numbers = #tpu.dot_dimension_numbers<[1], [0], [0], [1], [0, 0, 1, 1], [], []>} : vector<2x32xf32>, vector<32x128xf32>, vector<2x128xf32> -> vector<2x128xf32>
    %76 = arith.addf %74, %75 : vector<2x128xf32>
    %77 = arith.negf %76 : vector<2x128xf32>
    %78 = math.exp %77 : vector<2x128xf32>
    %cst_29 = arith.constant 1.000000e+00 : f32
    %79 = vector.broadcast %cst_29 : f32 to vector<2x128xf32>
    %80 = arith.addf %79, %78 : vector<2x128xf32>
    %81 = arith.divf %79, %80 : vector<2x128xf32>
    %82 = math.tanh %76 : vector<2x128xf32>
    %83 = vector.extract_strided_slice %81 {offsets = [0, 0], sizes = [2, 32], strides = [1, 1]} : vector<2x128xf32> to vector<2x32xf32>
    %84 = vector.extract_strided_slice %81 {offsets = [0, 32], sizes = [2, 32], strides = [1, 1]} : vector<2x128xf32> to vector<2x32xf32>
    %85 = vector.extract_strided_slice %82 {offsets = [0, 64], sizes = [2, 32], strides = [1, 1]} : vector<2x128xf32> to vector<2x32xf32>
    %86 = vector.extract_strided_slice %81 {offsets = [0, 96], sizes = [2, 32], strides = [1, 1]} : vector<2x128xf32> to vector<2x32xf32>
    %87 = arith.mulf %84, %51 : vector<2x32xf32>
    %88 = arith.mulf %83, %85 : vector<2x32xf32>
    %89 = arith.addf %87, %88 : vector<2x32xf32>
    %90 = math.tanh %89 : vector<2x32xf32>
    %91 = arith.mulf %86, %90 : vector<2x32xf32>
    %cst_30 = arith.constant dense<0.000000e+00> : vector<2x128xf32>
    %92 = tpu.matmul %53, %11, %cst_30 {dimension_numbers = #tpu.dot_dimension_numbers<[1], [0], [0], [1], [0, 0, 1, 1], [], []>} : vector<2x32xf32>, vector<32x128xf32>, vector<2x128xf32> -> vector<2x128xf32>
    %cst_31 = arith.constant dense<0.000000e+00> : vector<2x128xf32>
    %93 = tpu.matmul %73, %12, %cst_31 {dimension_numbers = #tpu.dot_dimension_numbers<[1], [0], [0], [1], [0, 0, 1, 1], [], []>} : vector<2x32xf32>, vector<32x128xf32>, vector<2x128xf32> -> vector<2x128xf32>
    %94 = arith.addf %92, %93 : vector<2x128xf32>
    %95 = vector.broadcast %13 : vector<1x128xf32> to vector<2x128xf32>
    %96 = arith.addf %94, %95 : vector<2x128xf32>
    %97 = arith.negf %96 : vector<2x128xf32>
    %98 = math.exp %97 : vector<2x128xf32>
    %cst_32 = arith.constant 1.000000e+00 : f32
    %99 = vector.broadcast %cst_32 : f32 to vector<2x128xf32>
    %100 = arith.addf %99, %98 : vector<2x128xf32>
    %101 = arith.divf %99, %100 : vector<2x128xf32>
    %102 = math.tanh %96 : vector<2x128xf32>
    %103 = vector.extract_strided_slice %101 {offsets = [0, 0], sizes = [2, 32], strides = [1, 1]} : vector<2x128xf32> to vector<2x32xf32>
    %104 = vector.extract_strided_slice %101 {offsets = [0, 32], sizes = [2, 32], strides = [1, 1]} : vector<2x128xf32> to vector<2x32xf32>
    %105 = vector.extract_strided_slice %102 {offsets = [0, 64], sizes = [2, 32], strides = [1, 1]} : vector<2x128xf32> to vector<2x32xf32>
    %106 = vector.extract_strided_slice %101 {offsets = [0, 96], sizes = [2, 32], strides = [1, 1]} : vector<2x128xf32> to vector<2x32xf32>
    %107 = arith.mulf %104, %71 : vector<2x32xf32>
    %108 = arith.mulf %103, %105 : vector<2x32xf32>
    %109 = arith.addf %107, %108 : vector<2x32xf32>
    %110 = math.tanh %109 : vector<2x32xf32>
    %111 = arith.mulf %106, %110 : vector<2x32xf32>
    %112 = vector.extract_strided_slice %9 {offsets = [6, 0], sizes = [2, 128], strides = [1, 1]} : vector<16x128xf32> to vector<2x128xf32>
    %cst_33 = arith.constant dense<0.000000e+00> : vector<2x128xf32>
    %113 = tpu.matmul %91, %10, %cst_33 {dimension_numbers = #tpu.dot_dimension_numbers<[1], [0], [0], [1], [0, 0, 1, 1], [], []>} : vector<2x32xf32>, vector<32x128xf32>, vector<2x128xf32> -> vector<2x128xf32>
    %114 = arith.addf %112, %113 : vector<2x128xf32>
    %115 = arith.negf %114 : vector<2x128xf32>
    %116 = math.exp %115 : vector<2x128xf32>
    %cst_34 = arith.constant 1.000000e+00 : f32
    %117 = vector.broadcast %cst_34 : f32 to vector<2x128xf32>
    %118 = arith.addf %117, %116 : vector<2x128xf32>
    %119 = arith.divf %117, %118 : vector<2x128xf32>
    %120 = math.tanh %114 : vector<2x128xf32>
    %121 = vector.extract_strided_slice %119 {offsets = [0, 0], sizes = [2, 32], strides = [1, 1]} : vector<2x128xf32> to vector<2x32xf32>
    %122 = vector.extract_strided_slice %119 {offsets = [0, 32], sizes = [2, 32], strides = [1, 1]} : vector<2x128xf32> to vector<2x32xf32>
    %123 = vector.extract_strided_slice %120 {offsets = [0, 64], sizes = [2, 32], strides = [1, 1]} : vector<2x128xf32> to vector<2x32xf32>
    %124 = vector.extract_strided_slice %119 {offsets = [0, 96], sizes = [2, 32], strides = [1, 1]} : vector<2x128xf32> to vector<2x32xf32>
    %125 = arith.mulf %122, %89 : vector<2x32xf32>
    %126 = arith.mulf %121, %123 : vector<2x32xf32>
    %127 = arith.addf %125, %126 : vector<2x32xf32>
    %128 = math.tanh %127 : vector<2x32xf32>
    %129 = arith.mulf %124, %128 : vector<2x32xf32>
    %cst_35 = arith.constant dense<0.000000e+00> : vector<2x128xf32>
    %130 = tpu.matmul %91, %11, %cst_35 {dimension_numbers = #tpu.dot_dimension_numbers<[1], [0], [0], [1], [0, 0, 1, 1], [], []>} : vector<2x32xf32>, vector<32x128xf32>, vector<2x128xf32> -> vector<2x128xf32>
    %cst_36 = arith.constant dense<0.000000e+00> : vector<2x128xf32>
    %131 = tpu.matmul %111, %12, %cst_36 {dimension_numbers = #tpu.dot_dimension_numbers<[1], [0], [0], [1], [0, 0, 1, 1], [], []>} : vector<2x32xf32>, vector<32x128xf32>, vector<2x128xf32> -> vector<2x128xf32>
    %132 = arith.addf %130, %131 : vector<2x128xf32>
    %133 = vector.broadcast %13 : vector<1x128xf32> to vector<2x128xf32>
    %134 = arith.addf %132, %133 : vector<2x128xf32>
    %135 = arith.negf %134 : vector<2x128xf32>
    %136 = math.exp %135 : vector<2x128xf32>
    %cst_37 = arith.constant 1.000000e+00 : f32
    %137 = vector.broadcast %cst_37 : f32 to vector<2x128xf32>
    %138 = arith.addf %137, %136 : vector<2x128xf32>
    %139 = arith.divf %137, %138 : vector<2x128xf32>
    %140 = math.tanh %134 : vector<2x128xf32>
    %141 = vector.extract_strided_slice %139 {offsets = [0, 0], sizes = [2, 32], strides = [1, 1]} : vector<2x128xf32> to vector<2x32xf32>
    %142 = vector.extract_strided_slice %139 {offsets = [0, 32], sizes = [2, 32], strides = [1, 1]} : vector<2x128xf32> to vector<2x32xf32>
    %143 = vector.extract_strided_slice %140 {offsets = [0, 64], sizes = [2, 32], strides = [1, 1]} : vector<2x128xf32> to vector<2x32xf32>
    %144 = vector.extract_strided_slice %139 {offsets = [0, 96], sizes = [2, 32], strides = [1, 1]} : vector<2x128xf32> to vector<2x32xf32>
    %145 = arith.mulf %142, %109 : vector<2x32xf32>
    %146 = arith.mulf %141, %143 : vector<2x32xf32>
    %147 = arith.addf %145, %146 : vector<2x32xf32>
    %148 = math.tanh %147 : vector<2x32xf32>
    %149 = arith.mulf %144, %148 : vector<2x32xf32>
    %150 = vector.extract_strided_slice %9 {offsets = [8, 0], sizes = [2, 128], strides = [1, 1]} : vector<16x128xf32> to vector<2x128xf32>
    %cst_38 = arith.constant dense<0.000000e+00> : vector<2x128xf32>
    %151 = tpu.matmul %129, %10, %cst_38 {dimension_numbers = #tpu.dot_dimension_numbers<[1], [0], [0], [1], [0, 0, 1, 1], [], []>} : vector<2x32xf32>, vector<32x128xf32>, vector<2x128xf32> -> vector<2x128xf32>
    %152 = arith.addf %150, %151 : vector<2x128xf32>
    %153 = arith.negf %152 : vector<2x128xf32>
    %154 = math.exp %153 : vector<2x128xf32>
    %cst_39 = arith.constant 1.000000e+00 : f32
    %155 = vector.broadcast %cst_39 : f32 to vector<2x128xf32>
    %156 = arith.addf %155, %154 : vector<2x128xf32>
    %157 = arith.divf %155, %156 : vector<2x128xf32>
    %158 = math.tanh %152 : vector<2x128xf32>
    %159 = vector.extract_strided_slice %157 {offsets = [0, 0], sizes = [2, 32], strides = [1, 1]} : vector<2x128xf32> to vector<2x32xf32>
    %160 = vector.extract_strided_slice %157 {offsets = [0, 32], sizes = [2, 32], strides = [1, 1]} : vector<2x128xf32> to vector<2x32xf32>
    %161 = vector.extract_strided_slice %158 {offsets = [0, 64], sizes = [2, 32], strides = [1, 1]} : vector<2x128xf32> to vector<2x32xf32>
    %162 = vector.extract_strided_slice %157 {offsets = [0, 96], sizes = [2, 32], strides = [1, 1]} : vector<2x128xf32> to vector<2x32xf32>
    %163 = arith.mulf %160, %127 : vector<2x32xf32>
    %164 = arith.mulf %159, %161 : vector<2x32xf32>
    %165 = arith.addf %163, %164 : vector<2x32xf32>
    %166 = math.tanh %165 : vector<2x32xf32>
    %167 = arith.mulf %162, %166 : vector<2x32xf32>
    %cst_40 = arith.constant dense<0.000000e+00> : vector<2x128xf32>
    %168 = tpu.matmul %129, %11, %cst_40 {dimension_numbers = #tpu.dot_dimension_numbers<[1], [0], [0], [1], [0, 0, 1, 1], [], []>} : vector<2x32xf32>, vector<32x128xf32>, vector<2x128xf32> -> vector<2x128xf32>
    %cst_41 = arith.constant dense<0.000000e+00> : vector<2x128xf32>
    %169 = tpu.matmul %149, %12, %cst_41 {dimension_numbers = #tpu.dot_dimension_numbers<[1], [0], [0], [1], [0, 0, 1, 1], [], []>} : vector<2x32xf32>, vector<32x128xf32>, vector<2x128xf32> -> vector<2x128xf32>
    %170 = arith.addf %168, %169 : vector<2x128xf32>
    %171 = vector.broadcast %13 : vector<1x128xf32> to vector<2x128xf32>
    %172 = arith.addf %170, %171 : vector<2x128xf32>
    %173 = arith.negf %172 : vector<2x128xf32>
    %174 = math.exp %173 : vector<2x128xf32>
    %cst_42 = arith.constant 1.000000e+00 : f32
    %175 = vector.broadcast %cst_42 : f32 to vector<2x128xf32>
    %176 = arith.addf %175, %174 : vector<2x128xf32>
    %177 = arith.divf %175, %176 : vector<2x128xf32>
    %178 = math.tanh %172 : vector<2x128xf32>
    %179 = vector.extract_strided_slice %177 {offsets = [0, 0], sizes = [2, 32], strides = [1, 1]} : vector<2x128xf32> to vector<2x32xf32>
    %180 = vector.extract_strided_slice %177 {offsets = [0, 32], sizes = [2, 32], strides = [1, 1]} : vector<2x128xf32> to vector<2x32xf32>
    %181 = vector.extract_strided_slice %178 {offsets = [0, 64], sizes = [2, 32], strides = [1, 1]} : vector<2x128xf32> to vector<2x32xf32>
    %182 = vector.extract_strided_slice %177 {offsets = [0, 96], sizes = [2, 32], strides = [1, 1]} : vector<2x128xf32> to vector<2x32xf32>
    %183 = arith.mulf %180, %147 : vector<2x32xf32>
    %184 = arith.mulf %179, %181 : vector<2x32xf32>
    %185 = arith.addf %183, %184 : vector<2x32xf32>
    %186 = math.tanh %185 : vector<2x32xf32>
    %187 = arith.mulf %182, %186 : vector<2x32xf32>
    %188 = vector.extract_strided_slice %9 {offsets = [10, 0], sizes = [2, 128], strides = [1, 1]} : vector<16x128xf32> to vector<2x128xf32>
    %cst_43 = arith.constant dense<0.000000e+00> : vector<2x128xf32>
    %189 = tpu.matmul %167, %10, %cst_43 {dimension_numbers = #tpu.dot_dimension_numbers<[1], [0], [0], [1], [0, 0, 1, 1], [], []>} : vector<2x32xf32>, vector<32x128xf32>, vector<2x128xf32> -> vector<2x128xf32>
    %190 = arith.addf %188, %189 : vector<2x128xf32>
    %191 = arith.negf %190 : vector<2x128xf32>
    %192 = math.exp %191 : vector<2x128xf32>
    %cst_44 = arith.constant 1.000000e+00 : f32
    %193 = vector.broadcast %cst_44 : f32 to vector<2x128xf32>
    %194 = arith.addf %193, %192 : vector<2x128xf32>
    %195 = arith.divf %193, %194 : vector<2x128xf32>
    %196 = math.tanh %190 : vector<2x128xf32>
    %197 = vector.extract_strided_slice %195 {offsets = [0, 0], sizes = [2, 32], strides = [1, 1]} : vector<2x128xf32> to vector<2x32xf32>
    %198 = vector.extract_strided_slice %195 {offsets = [0, 32], sizes = [2, 32], strides = [1, 1]} : vector<2x128xf32> to vector<2x32xf32>
    %199 = vector.extract_strided_slice %196 {offsets = [0, 64], sizes = [2, 32], strides = [1, 1]} : vector<2x128xf32> to vector<2x32xf32>
    %200 = vector.extract_strided_slice %195 {offsets = [0, 96], sizes = [2, 32], strides = [1, 1]} : vector<2x128xf32> to vector<2x32xf32>
    %201 = arith.mulf %198, %165 : vector<2x32xf32>
    %202 = arith.mulf %197, %199 : vector<2x32xf32>
    %203 = arith.addf %201, %202 : vector<2x32xf32>
    %204 = math.tanh %203 : vector<2x32xf32>
    %205 = arith.mulf %200, %204 : vector<2x32xf32>
    %cst_45 = arith.constant dense<0.000000e+00> : vector<2x128xf32>
    %206 = tpu.matmul %167, %11, %cst_45 {dimension_numbers = #tpu.dot_dimension_numbers<[1], [0], [0], [1], [0, 0, 1, 1], [], []>} : vector<2x32xf32>, vector<32x128xf32>, vector<2x128xf32> -> vector<2x128xf32>
    %cst_46 = arith.constant dense<0.000000e+00> : vector<2x128xf32>
    %207 = tpu.matmul %187, %12, %cst_46 {dimension_numbers = #tpu.dot_dimension_numbers<[1], [0], [0], [1], [0, 0, 1, 1], [], []>} : vector<2x32xf32>, vector<32x128xf32>, vector<2x128xf32> -> vector<2x128xf32>
    %208 = arith.addf %206, %207 : vector<2x128xf32>
    %209 = vector.broadcast %13 : vector<1x128xf32> to vector<2x128xf32>
    %210 = arith.addf %208, %209 : vector<2x128xf32>
    %211 = arith.negf %210 : vector<2x128xf32>
    %212 = math.exp %211 : vector<2x128xf32>
    %cst_47 = arith.constant 1.000000e+00 : f32
    %213 = vector.broadcast %cst_47 : f32 to vector<2x128xf32>
    %214 = arith.addf %213, %212 : vector<2x128xf32>
    %215 = arith.divf %213, %214 : vector<2x128xf32>
    %216 = math.tanh %210 : vector<2x128xf32>
    %217 = vector.extract_strided_slice %215 {offsets = [0, 0], sizes = [2, 32], strides = [1, 1]} : vector<2x128xf32> to vector<2x32xf32>
    %218 = vector.extract_strided_slice %215 {offsets = [0, 32], sizes = [2, 32], strides = [1, 1]} : vector<2x128xf32> to vector<2x32xf32>
    %219 = vector.extract_strided_slice %216 {offsets = [0, 64], sizes = [2, 32], strides = [1, 1]} : vector<2x128xf32> to vector<2x32xf32>
    %220 = vector.extract_strided_slice %215 {offsets = [0, 96], sizes = [2, 32], strides = [1, 1]} : vector<2x128xf32> to vector<2x32xf32>
    %221 = arith.mulf %218, %185 : vector<2x32xf32>
    %222 = arith.mulf %217, %219 : vector<2x32xf32>
    %223 = arith.addf %221, %222 : vector<2x32xf32>
    %224 = math.tanh %223 : vector<2x32xf32>
    %225 = arith.mulf %220, %224 : vector<2x32xf32>
    %226 = vector.extract_strided_slice %9 {offsets = [12, 0], sizes = [2, 128], strides = [1, 1]} : vector<16x128xf32> to vector<2x128xf32>
    %cst_48 = arith.constant dense<0.000000e+00> : vector<2x128xf32>
    %227 = tpu.matmul %205, %10, %cst_48 {dimension_numbers = #tpu.dot_dimension_numbers<[1], [0], [0], [1], [0, 0, 1, 1], [], []>} : vector<2x32xf32>, vector<32x128xf32>, vector<2x128xf32> -> vector<2x128xf32>
    %228 = arith.addf %226, %227 : vector<2x128xf32>
    %229 = arith.negf %228 : vector<2x128xf32>
    %230 = math.exp %229 : vector<2x128xf32>
    %cst_49 = arith.constant 1.000000e+00 : f32
    %231 = vector.broadcast %cst_49 : f32 to vector<2x128xf32>
    %232 = arith.addf %231, %230 : vector<2x128xf32>
    %233 = arith.divf %231, %232 : vector<2x128xf32>
    %234 = math.tanh %228 : vector<2x128xf32>
    %235 = vector.extract_strided_slice %233 {offsets = [0, 0], sizes = [2, 32], strides = [1, 1]} : vector<2x128xf32> to vector<2x32xf32>
    %236 = vector.extract_strided_slice %233 {offsets = [0, 32], sizes = [2, 32], strides = [1, 1]} : vector<2x128xf32> to vector<2x32xf32>
    %237 = vector.extract_strided_slice %234 {offsets = [0, 64], sizes = [2, 32], strides = [1, 1]} : vector<2x128xf32> to vector<2x32xf32>
    %238 = vector.extract_strided_slice %233 {offsets = [0, 96], sizes = [2, 32], strides = [1, 1]} : vector<2x128xf32> to vector<2x32xf32>
    %239 = arith.mulf %236, %203 : vector<2x32xf32>
    %240 = arith.mulf %235, %237 : vector<2x32xf32>
    %241 = arith.addf %239, %240 : vector<2x32xf32>
    %242 = math.tanh %241 : vector<2x32xf32>
    %243 = arith.mulf %238, %242 : vector<2x32xf32>
    %cst_50 = arith.constant dense<0.000000e+00> : vector<2x128xf32>
    %244 = tpu.matmul %205, %11, %cst_50 {dimension_numbers = #tpu.dot_dimension_numbers<[1], [0], [0], [1], [0, 0, 1, 1], [], []>} : vector<2x32xf32>, vector<32x128xf32>, vector<2x128xf32> -> vector<2x128xf32>
    %cst_51 = arith.constant dense<0.000000e+00> : vector<2x128xf32>
    %245 = tpu.matmul %225, %12, %cst_51 {dimension_numbers = #tpu.dot_dimension_numbers<[1], [0], [0], [1], [0, 0, 1, 1], [], []>} : vector<2x32xf32>, vector<32x128xf32>, vector<2x128xf32> -> vector<2x128xf32>
    %246 = arith.addf %244, %245 : vector<2x128xf32>
    %247 = vector.broadcast %13 : vector<1x128xf32> to vector<2x128xf32>
    %248 = arith.addf %246, %247 : vector<2x128xf32>
    %249 = arith.negf %248 : vector<2x128xf32>
    %250 = math.exp %249 : vector<2x128xf32>
    %cst_52 = arith.constant 1.000000e+00 : f32
    %251 = vector.broadcast %cst_52 : f32 to vector<2x128xf32>
    %252 = arith.addf %251, %250 : vector<2x128xf32>
    %253 = arith.divf %251, %252 : vector<2x128xf32>
    %254 = math.tanh %248 : vector<2x128xf32>
    %255 = vector.extract_strided_slice %253 {offsets = [0, 0], sizes = [2, 32], strides = [1, 1]} : vector<2x128xf32> to vector<2x32xf32>
    %256 = vector.extract_strided_slice %253 {offsets = [0, 32], sizes = [2, 32], strides = [1, 1]} : vector<2x128xf32> to vector<2x32xf32>
    %257 = vector.extract_strided_slice %254 {offsets = [0, 64], sizes = [2, 32], strides = [1, 1]} : vector<2x128xf32> to vector<2x32xf32>
    %258 = vector.extract_strided_slice %253 {offsets = [0, 96], sizes = [2, 32], strides = [1, 1]} : vector<2x128xf32> to vector<2x32xf32>
    %259 = arith.mulf %256, %223 : vector<2x32xf32>
    %260 = arith.mulf %255, %257 : vector<2x32xf32>
    %261 = arith.addf %259, %260 : vector<2x32xf32>
    %262 = math.tanh %261 : vector<2x32xf32>
    %263 = arith.mulf %258, %262 : vector<2x32xf32>
    %264 = vector.extract_strided_slice %9 {offsets = [14, 0], sizes = [2, 128], strides = [1, 1]} : vector<16x128xf32> to vector<2x128xf32>
    %cst_53 = arith.constant dense<0.000000e+00> : vector<2x128xf32>
    %265 = tpu.matmul %243, %10, %cst_53 {dimension_numbers = #tpu.dot_dimension_numbers<[1], [0], [0], [1], [0, 0, 1, 1], [], []>} : vector<2x32xf32>, vector<32x128xf32>, vector<2x128xf32> -> vector<2x128xf32>
    %266 = arith.addf %264, %265 : vector<2x128xf32>
    %267 = arith.negf %266 : vector<2x128xf32>
    %268 = math.exp %267 : vector<2x128xf32>
    %cst_54 = arith.constant 1.000000e+00 : f32
    %269 = vector.broadcast %cst_54 : f32 to vector<2x128xf32>
    %270 = arith.addf %269, %268 : vector<2x128xf32>
    %271 = arith.divf %269, %270 : vector<2x128xf32>
    %272 = math.tanh %266 : vector<2x128xf32>
    %273 = vector.extract_strided_slice %271 {offsets = [0, 0], sizes = [2, 32], strides = [1, 1]} : vector<2x128xf32> to vector<2x32xf32>
    %274 = vector.extract_strided_slice %271 {offsets = [0, 32], sizes = [2, 32], strides = [1, 1]} : vector<2x128xf32> to vector<2x32xf32>
    %275 = vector.extract_strided_slice %272 {offsets = [0, 64], sizes = [2, 32], strides = [1, 1]} : vector<2x128xf32> to vector<2x32xf32>
    %276 = vector.extract_strided_slice %271 {offsets = [0, 96], sizes = [2, 32], strides = [1, 1]} : vector<2x128xf32> to vector<2x32xf32>
    %277 = arith.mulf %274, %241 : vector<2x32xf32>
    %278 = arith.mulf %273, %275 : vector<2x32xf32>
    %279 = arith.addf %277, %278 : vector<2x32xf32>
    %280 = math.tanh %279 : vector<2x32xf32>
    %281 = arith.mulf %276, %280 : vector<2x32xf32>
    %cst_55 = arith.constant dense<0.000000e+00> : vector<2x128xf32>
    %282 = tpu.matmul %243, %11, %cst_55 {dimension_numbers = #tpu.dot_dimension_numbers<[1], [0], [0], [1], [0, 0, 1, 1], [], []>} : vector<2x32xf32>, vector<32x128xf32>, vector<2x128xf32> -> vector<2x128xf32>
    %cst_56 = arith.constant dense<0.000000e+00> : vector<2x128xf32>
    %283 = tpu.matmul %263, %12, %cst_56 {dimension_numbers = #tpu.dot_dimension_numbers<[1], [0], [0], [1], [0, 0, 1, 1], [], []>} : vector<2x32xf32>, vector<32x128xf32>, vector<2x128xf32> -> vector<2x128xf32>
    %284 = arith.addf %282, %283 : vector<2x128xf32>
    %285 = vector.broadcast %13 : vector<1x128xf32> to vector<2x128xf32>
    %286 = arith.addf %284, %285 : vector<2x128xf32>
    %287 = arith.negf %286 : vector<2x128xf32>
    %288 = math.exp %287 : vector<2x128xf32>
    %cst_57 = arith.constant 1.000000e+00 : f32
    %289 = vector.broadcast %cst_57 : f32 to vector<2x128xf32>
    %290 = arith.addf %289, %288 : vector<2x128xf32>
    %291 = arith.divf %289, %290 : vector<2x128xf32>
    %292 = math.tanh %286 : vector<2x128xf32>
    %293 = vector.extract_strided_slice %291 {offsets = [0, 0], sizes = [2, 32], strides = [1, 1]} : vector<2x128xf32> to vector<2x32xf32>
    %294 = vector.extract_strided_slice %291 {offsets = [0, 32], sizes = [2, 32], strides = [1, 1]} : vector<2x128xf32> to vector<2x32xf32>
    %295 = vector.extract_strided_slice %292 {offsets = [0, 64], sizes = [2, 32], strides = [1, 1]} : vector<2x128xf32> to vector<2x32xf32>
    %296 = vector.extract_strided_slice %291 {offsets = [0, 96], sizes = [2, 32], strides = [1, 1]} : vector<2x128xf32> to vector<2x32xf32>
    %297 = arith.mulf %294, %261 : vector<2x32xf32>
    %298 = arith.mulf %293, %295 : vector<2x32xf32>
    %299 = arith.addf %297, %298 : vector<2x32xf32>
    %300 = math.tanh %299 : vector<2x32xf32>
    %301 = arith.mulf %296, %300 : vector<2x32xf32>
    %cst_58 = arith.constant dense<0.000000e+00> : vector<2x128xf32>
    %302 = tpu.matmul %281, %11, %cst_58 {dimension_numbers = #tpu.dot_dimension_numbers<[1], [0], [0], [1], [0, 0, 1, 1], [], []>} : vector<2x32xf32>, vector<32x128xf32>, vector<2x128xf32> -> vector<2x128xf32>
    %cst_59 = arith.constant dense<0.000000e+00> : vector<2x128xf32>
    %303 = tpu.matmul %301, %12, %cst_59 {dimension_numbers = #tpu.dot_dimension_numbers<[1], [0], [0], [1], [0, 0, 1, 1], [], []>} : vector<2x32xf32>, vector<32x128xf32>, vector<2x128xf32> -> vector<2x128xf32>
    %304 = arith.addf %302, %303 : vector<2x128xf32>
    %305 = vector.broadcast %13 : vector<1x128xf32> to vector<2x128xf32>
    %306 = arith.addf %304, %305 : vector<2x128xf32>
    %307 = arith.negf %306 : vector<2x128xf32>
    %308 = math.exp %307 : vector<2x128xf32>
    %cst_60 = arith.constant 1.000000e+00 : f32
    %309 = vector.broadcast %cst_60 : f32 to vector<2x128xf32>
    %310 = arith.addf %309, %308 : vector<2x128xf32>
    %311 = arith.divf %309, %310 : vector<2x128xf32>
    %312 = math.tanh %306 : vector<2x128xf32>
    %313 = vector.extract_strided_slice %311 {offsets = [0, 0], sizes = [2, 32], strides = [1, 1]} : vector<2x128xf32> to vector<2x32xf32>
    %314 = vector.extract_strided_slice %311 {offsets = [0, 32], sizes = [2, 32], strides = [1, 1]} : vector<2x128xf32> to vector<2x32xf32>
    %315 = vector.extract_strided_slice %312 {offsets = [0, 64], sizes = [2, 32], strides = [1, 1]} : vector<2x128xf32> to vector<2x32xf32>
    %316 = vector.extract_strided_slice %311 {offsets = [0, 96], sizes = [2, 32], strides = [1, 1]} : vector<2x128xf32> to vector<2x32xf32>
    %317 = arith.mulf %314, %299 : vector<2x32xf32>
    %318 = arith.mulf %313, %315 : vector<2x32xf32>
    %319 = arith.addf %317, %318 : vector<2x32xf32>
    %320 = math.tanh %319 : vector<2x32xf32>
    %321 = arith.mulf %316, %320 : vector<2x32xf32>
    %c0_61 = arith.constant 0 : index
    %c0_62 = arith.constant 0 : index
    %322 = vector.load %arg9[%c0_61, %c0_62] : memref<128x128xf32, #tpu.memory_space<vmem>>, vector<128x128xf32>
    %c0_63 = arith.constant 0 : index
    %c0_64 = arith.constant 0 : index
    %323 = vector.load %arg10[%c0_63, %c0_64] : memref<32x128xf32, #tpu.memory_space<vmem>>, vector<32x128xf32>
    %c0_65 = arith.constant 0 : index
    %c0_66 = arith.constant 0 : index
    %324 = vector.load %arg11[%c0_65, %c0_66] : memref<1x128xf32, #tpu.memory_space<vmem>>, vector<1x128xf32>
    %c0_67 = arith.constant 0 : index
    %c0_68 = arith.constant 0 : index
    %325 = vector.load %arg12[%c0_67, %c0_68] : memref<32x128xf32, #tpu.memory_space<vmem>>, vector<32x128xf32>
    %c0_69 = arith.constant 0 : index
    %c0_70 = arith.constant 0 : index
    %326 = vector.load %arg13[%c0_69, %c0_70] : memref<32x128xf32, #tpu.memory_space<vmem>>, vector<32x128xf32>
    %c0_71 = arith.constant 0 : index
    %c0_72 = arith.constant 0 : index
    %327 = vector.load %arg14[%c0_71, %c0_72] : memref<1x128xf32, #tpu.memory_space<vmem>>, vector<1x128xf32>
    %c0_73 = arith.constant 0 : index
    %c0_74 = arith.constant 0 : index
    %328 = vector.load %arg15[%c0_73, %c0_74] : memref<32x128xf32, #tpu.memory_space<vmem>>, vector<32x128xf32>
    %c0_75 = arith.constant 0 : index
    %c0_76 = arith.constant 0 : index
    %329 = vector.load %arg16[%c0_75, %c0_76] : memref<1x128xf32, #tpu.memory_space<vmem>>, vector<1x128xf32>
    %c0_77 = arith.constant 0 : index
    %c0_78 = arith.constant 0 : index
    %c0_79 = arith.constant 0 : index
    %330 = vector.load %arg1[%c0_77, %c0_78, %c0_79] : memref<6x2x128xf32, #tpu.memory_space<vmem>>, vector<1x2x128xf32>
    %331 = vector.shape_cast %330 : vector<1x2x128xf32> to vector<2x128xf32>
    %cst_80 = arith.constant dense<0.000000e+00> : vector<2x128xf32>
    %332 = tpu.matmul %331, %322, %cst_80 {dimension_numbers = #tpu.dot_dimension_numbers<[1], [0], [0], [1], [0, 0, 1, 1], [], []>} : vector<2x128xf32>, vector<128x128xf32>, vector<2x128xf32> -> vector<2x128xf32>
    %cst_81 = arith.constant dense<0.000000e+00> : vector<2x128xf32>
    %333 = tpu.matmul %281, %323, %cst_81 {dimension_numbers = #tpu.dot_dimension_numbers<[1], [0], [0], [1], [0, 0, 1, 1], [], []>} : vector<2x32xf32>, vector<32x128xf32>, vector<2x128xf32> -> vector<2x128xf32>
    %334 = arith.addf %332, %333 : vector<2x128xf32>
    %335 = vector.broadcast %324 : vector<1x128xf32> to vector<2x128xf32>
    %336 = arith.addf %334, %335 : vector<2x128xf32>
    %337 = arith.negf %336 : vector<2x128xf32>
    %338 = math.exp %337 : vector<2x128xf32>
    %cst_82 = arith.constant 1.000000e+00 : f32
    %339 = vector.broadcast %cst_82 : f32 to vector<2x128xf32>
    %340 = arith.addf %339, %338 : vector<2x128xf32>
    %341 = arith.divf %339, %340 : vector<2x128xf32>
    %342 = math.tanh %336 : vector<2x128xf32>
    %343 = vector.extract_strided_slice %341 {offsets = [0, 0], sizes = [2, 32], strides = [1, 1]} : vector<2x128xf32> to vector<2x32xf32>
    %344 = vector.extract_strided_slice %341 {offsets = [0, 32], sizes = [2, 32], strides = [1, 1]} : vector<2x128xf32> to vector<2x32xf32>
    %345 = vector.extract_strided_slice %342 {offsets = [0, 64], sizes = [2, 32], strides = [1, 1]} : vector<2x128xf32> to vector<2x32xf32>
    %346 = vector.extract_strided_slice %341 {offsets = [0, 96], sizes = [2, 32], strides = [1, 1]} : vector<2x128xf32> to vector<2x32xf32>
    %347 = arith.mulf %344, %279 : vector<2x32xf32>
    %348 = arith.mulf %343, %345 : vector<2x32xf32>
    %349 = arith.addf %347, %348 : vector<2x32xf32>
    %350 = math.tanh %349 : vector<2x32xf32>
    %351 = arith.mulf %346, %350 : vector<2x32xf32>
    %cst_83 = arith.constant dense<0.000000e+00> : vector<2x128xf32>
    %352 = tpu.matmul %351, %325, %cst_83 {dimension_numbers = #tpu.dot_dimension_numbers<[1], [0], [0], [1], [0, 0, 1, 1], [], []>} : vector<2x32xf32>, vector<32x128xf32>, vector<2x128xf32> -> vector<2x128xf32>
    %cst_84 = arith.constant dense<0.000000e+00> : vector<2x128xf32>
    %353 = tpu.matmul %321, %326, %cst_84 {dimension_numbers = #tpu.dot_dimension_numbers<[1], [0], [0], [1], [0, 0, 1, 1], [], []>} : vector<2x32xf32>, vector<32x128xf32>, vector<2x128xf32> -> vector<2x128xf32>
    %354 = arith.addf %352, %353 : vector<2x128xf32>
    %355 = vector.broadcast %327 : vector<1x128xf32> to vector<2x128xf32>
    %356 = arith.addf %354, %355 : vector<2x128xf32>
    %357 = arith.negf %356 : vector<2x128xf32>
    %358 = math.exp %357 : vector<2x128xf32>
    %cst_85 = arith.constant 1.000000e+00 : f32
    %359 = vector.broadcast %cst_85 : f32 to vector<2x128xf32>
    %360 = arith.addf %359, %358 : vector<2x128xf32>
    %361 = arith.divf %359, %360 : vector<2x128xf32>
    %362 = math.tanh %356 : vector<2x128xf32>
    %363 = vector.extract_strided_slice %361 {offsets = [0, 0], sizes = [2, 32], strides = [1, 1]} : vector<2x128xf32> to vector<2x32xf32>
    %364 = vector.extract_strided_slice %361 {offsets = [0, 32], sizes = [2, 32], strides = [1, 1]} : vector<2x128xf32> to vector<2x32xf32>
    %365 = vector.extract_strided_slice %362 {offsets = [0, 64], sizes = [2, 32], strides = [1, 1]} : vector<2x128xf32> to vector<2x32xf32>
    %366 = vector.extract_strided_slice %361 {offsets = [0, 96], sizes = [2, 32], strides = [1, 1]} : vector<2x128xf32> to vector<2x32xf32>
    %367 = arith.mulf %364, %319 : vector<2x32xf32>
    %368 = arith.mulf %363, %365 : vector<2x32xf32>
    %369 = arith.addf %367, %368 : vector<2x32xf32>
    %370 = math.tanh %369 : vector<2x32xf32>
    %371 = arith.mulf %366, %370 : vector<2x32xf32>
    %cst_86 = arith.constant dense<0.000000e+00> : vector<2x128xf32>
    %372 = tpu.matmul %371, %328, %cst_86 {dimension_numbers = #tpu.dot_dimension_numbers<[1], [0], [0], [1], [0, 0, 1, 1], [], []>} : vector<2x32xf32>, vector<32x128xf32>, vector<2x128xf32> -> vector<2x128xf32>
    %373 = vector.broadcast %329 : vector<1x128xf32> to vector<2x128xf32>
    %374 = arith.addf %372, %373 : vector<2x128xf32>
    %c1 = arith.constant 1 : index
    %c0_87 = arith.constant 0 : index
    %c0_88 = arith.constant 0 : index
    %375 = vector.load %arg17[%c1, %c0_87, %c0_88] : memref<6x2x128xf32, #tpu.memory_space<vmem>>, vector<1x2x128xf32>
    %376 = vector.shape_cast %375 : vector<1x2x128xf32> to vector<2x128xf32>
    %377 = vector.shape_cast %374 : vector<2x128xf32> to vector<1x2x128xf32>
    tpu.vector_store %arg17[%c1, %c0_87, %c0_88], %377 {strides = array<i32>} : memref<6x2x128xf32, #tpu.memory_space<vmem>>, vector<1x2x128xf32>,
    %c1_89 = arith.constant 1 : index
    %378 = memref.load %arg2[%c1_89] : memref<6xi32, #tpu.memory_space<smem>>
    %c0_i32 = arith.constant 0 : i32
    %379 = arith.cmpi sgt, %378, %c0_i32 : i32
    %c1_90 = arith.constant 1 : index
    %c0_91 = arith.constant 0 : index
    %c0_92 = arith.constant 0 : index
    %380 = vector.load %arg1[%c1_90, %c0_91, %c0_92] : memref<6x2x128xf32, #tpu.memory_space<vmem>>, vector<1x2x128xf32>
    %381 = vector.shape_cast %380 : vector<1x2x128xf32> to vector<2x128xf32>
    %382 = arith.select %379, %381, %374 : vector<2x128xf32>
    %cst_93 = arith.constant dense<0.000000e+00> : vector<2x128xf32>
    %383 = tpu.matmul %382, %322, %cst_93 {dimension_numbers = #tpu.dot_dimension_numbers<[1], [0], [0], [1], [0, 0, 1, 1], [], []>} : vector<2x128xf32>, vector<128x128xf32>, vector<2x128xf32> -> vector<2x128xf32>
    %cst_94 = arith.constant dense<0.000000e+00> : vector<2x128xf32>
    %384 = tpu.matmul %351, %323, %cst_94 {dimension_numbers = #tpu.dot_dimension_numbers<[1], [0], [0], [1], [0, 0, 1, 1], [], []>} : vector<2x32xf32>, vector<32x128xf32>, vector<2x128xf32> -> vector<2x128xf32>
    %385 = arith.addf %383, %384 : vector<2x128xf32>
    %386 = vector.broadcast %324 : vector<1x128xf32> to vector<2x128xf32>
    %387 = arith.addf %385, %386 : vector<2x128xf32>
    %388 = arith.negf %387 : vector<2x128xf32>
    %389 = math.exp %388 : vector<2x128xf32>
    %cst_95 = arith.constant 1.000000e+00 : f32
    %390 = vector.broadcast %cst_95 : f32 to vector<2x128xf32>
    %391 = arith.addf %390, %389 : vector<2x128xf32>
    %392 = arith.divf %390, %391 : vector<2x128xf32>
    %393 = math.tanh %387 : vector<2x128xf32>
    %394 = vector.extract_strided_slice %392 {offsets = [0, 0], sizes = [2, 32], strides = [1, 1]} : vector<2x128xf32> to vector<2x32xf32>
    %395 = vector.extract_strided_slice %392 {offsets = [0, 32], sizes = [2, 32], strides = [1, 1]} : vector<2x128xf32> to vector<2x32xf32>
    %396 = vector.extract_strided_slice %393 {offsets = [0, 64], sizes = [2, 32], strides = [1, 1]} : vector<2x128xf32> to vector<2x32xf32>
    %397 = vector.extract_strided_slice %392 {offsets = [0, 96], sizes = [2, 32], strides = [1, 1]} : vector<2x128xf32> to vector<2x32xf32>
    %398 = arith.mulf %395, %349 : vector<2x32xf32>
    %399 = arith.mulf %394, %396 : vector<2x32xf32>
    %400 = arith.addf %398, %399 : vector<2x32xf32>
    %401 = math.tanh %400 : vector<2x32xf32>
    %402 = arith.mulf %397, %401 : vector<2x32xf32>
    %cst_96 = arith.constant dense<0.000000e+00> : vector<2x128xf32>
    %403 = tpu.matmul %402, %325, %cst_96 {dimension_numbers = #tpu.dot_dimension_numbers<[1], [0], [0], [1], [0, 0, 1, 1], [], []>} : vector<2x32xf32>, vector<32x128xf32>, vector<2x128xf32> -> vector<2x128xf32>
    %cst_97 = arith.constant dense<0.000000e+00> : vector<2x128xf32>
    %404 = tpu.matmul %371, %326, %cst_97 {dimension_numbers = #tpu.dot_dimension_numbers<[1], [0], [0], [1], [0, 0, 1, 1], [], []>} : vector<2x32xf32>, vector<32x128xf32>, vector<2x128xf32> -> vector<2x128xf32>
    %405 = arith.addf %403, %404 : vector<2x128xf32>
    %406 = vector.broadcast %327 : vector<1x128xf32> to vector<2x128xf32>
    %407 = arith.addf %405, %406 : vector<2x128xf32>
    %408 = arith.negf %407 : vector<2x128xf32>
    %409 = math.exp %408 : vector<2x128xf32>
    %cst_98 = arith.constant 1.000000e+00 : f32
    %410 = vector.broadcast %cst_98 : f32 to vector<2x128xf32>
    %411 = arith.addf %410, %409 : vector<2x128xf32>
    %412 = arith.divf %410, %411 : vector<2x128xf32>
    %413 = math.tanh %407 : vector<2x128xf32>
    %414 = vector.extract_strided_slice %412 {offsets = [0, 0], sizes = [2, 32], strides = [1, 1]} : vector<2x128xf32> to vector<2x32xf32>
    %415 = vector.extract_strided_slice %412 {offsets = [0, 32], sizes = [2, 32], strides = [1, 1]} : vector<2x128xf32> to vector<2x32xf32>
    %416 = vector.extract_strided_slice %413 {offsets = [0, 64], sizes = [2, 32], strides = [1, 1]} : vector<2x128xf32> to vector<2x32xf32>
    %417 = vector.extract_strided_slice %412 {offsets = [0, 96], sizes = [2, 32], strides = [1, 1]} : vector<2x128xf32> to vector<2x32xf32>
    %418 = arith.mulf %415, %369 : vector<2x32xf32>
    %419 = arith.mulf %414, %416 : vector<2x32xf32>
    %420 = arith.addf %418, %419 : vector<2x32xf32>
    %421 = math.tanh %420 : vector<2x32xf32>
    %422 = arith.mulf %417, %421 : vector<2x32xf32>
    %cst_99 = arith.constant dense<0.000000e+00> : vector<2x128xf32>
    %423 = tpu.matmul %422, %328, %cst_99 {dimension_numbers = #tpu.dot_dimension_numbers<[1], [0], [0], [1], [0, 0, 1, 1], [], []>} : vector<2x32xf32>, vector<32x128xf32>, vector<2x128xf32> -> vector<2x128xf32>
    %424 = vector.broadcast %329 : vector<1x128xf32> to vector<2x128xf32>
    %425 = arith.addf %423, %424 : vector<2x128xf32>
    %c2 = arith.constant 2 : index
    %c0_100 = arith.constant 0 : index
    %c0_101 = arith.constant 0 : index
    %426 = vector.load %arg17[%c2, %c0_100, %c0_101] : memref<6x2x128xf32, #tpu.memory_space<vmem>>, vector<1x2x128xf32>
    %427 = vector.shape_cast %426 : vector<1x2x128xf32> to vector<2x128xf32>
    %428 = vector.shape_cast %425 : vector<2x128xf32> to vector<1x2x128xf32>
    tpu.vector_store %arg17[%c2, %c0_100, %c0_101], %428 {strides = array<i32>} : memref<6x2x128xf32, #tpu.memory_space<vmem>>, vector<1x2x128xf32>,
    %c2_102 = arith.constant 2 : index
    %429 = memref.load %arg2[%c2_102] : memref<6xi32, #tpu.memory_space<smem>>
    %c0_i32_103 = arith.constant 0 : i32
    %430 = arith.cmpi sgt, %429, %c0_i32_103 : i32
    %c2_104 = arith.constant 2 : index
    %c0_105 = arith.constant 0 : index
    %c0_106 = arith.constant 0 : index
    %431 = vector.load %arg1[%c2_104, %c0_105, %c0_106] : memref<6x2x128xf32, #tpu.memory_space<vmem>>, vector<1x2x128xf32>
    %432 = vector.shape_cast %431 : vector<1x2x128xf32> to vector<2x128xf32>
    %433 = arith.select %430, %432, %425 : vector<2x128xf32>
    %cst_107 = arith.constant dense<0.000000e+00> : vector<2x128xf32>
    %434 = tpu.matmul %433, %322, %cst_107 {dimension_numbers = #tpu.dot_dimension_numbers<[1], [0], [0], [1], [0, 0, 1, 1], [], []>} : vector<2x128xf32>, vector<128x128xf32>, vector<2x128xf32> -> vector<2x128xf32>
    %cst_108 = arith.constant dense<0.000000e+00> : vector<2x128xf32>
    %435 = tpu.matmul %402, %323, %cst_108 {dimension_numbers = #tpu.dot_dimension_numbers<[1], [0], [0], [1], [0, 0, 1, 1], [], []>} : vector<2x32xf32>, vector<32x128xf32>, vector<2x128xf32> -> vector<2x128xf32>
    %436 = arith.addf %434, %435 : vector<2x128xf32>
    %437 = vector.broadcast %324 : vector<1x128xf32> to vector<2x128xf32>
    %438 = arith.addf %436, %437 : vector<2x128xf32>
    %439 = arith.negf %438 : vector<2x128xf32>
    %440 = math.exp %439 : vector<2x128xf32>
    %cst_109 = arith.constant 1.000000e+00 : f32
    %441 = vector.broadcast %cst_109 : f32 to vector<2x128xf32>
    %442 = arith.addf %441, %440 : vector<2x128xf32>
    %443 = arith.divf %441, %442 : vector<2x128xf32>
    %444 = math.tanh %438 : vector<2x128xf32>
    %445 = vector.extract_strided_slice %443 {offsets = [0, 0], sizes = [2, 32], strides = [1, 1]} : vector<2x128xf32> to vector<2x32xf32>
    %446 = vector.extract_strided_slice %443 {offsets = [0, 32], sizes = [2, 32], strides = [1, 1]} : vector<2x128xf32> to vector<2x32xf32>
    %447 = vector.extract_strided_slice %444 {offsets = [0, 64], sizes = [2, 32], strides = [1, 1]} : vector<2x128xf32> to vector<2x32xf32>
    %448 = vector.extract_strided_slice %443 {offsets = [0, 96], sizes = [2, 32], strides = [1, 1]} : vector<2x128xf32> to vector<2x32xf32>
    %449 = arith.mulf %446, %400 : vector<2x32xf32>
    %450 = arith.mulf %445, %447 : vector<2x32xf32>
    %451 = arith.addf %449, %450 : vector<2x32xf32>
    %452 = math.tanh %451 : vector<2x32xf32>
    %453 = arith.mulf %448, %452 : vector<2x32xf32>
    %cst_110 = arith.constant dense<0.000000e+00> : vector<2x128xf32>
    %454 = tpu.matmul %453, %325, %cst_110 {dimension_numbers = #tpu.dot_dimension_numbers<[1], [0], [0], [1], [0, 0, 1, 1], [], []>} : vector<2x32xf32>, vector<32x128xf32>, vector<2x128xf32> -> vector<2x128xf32>
    %cst_111 = arith.constant dense<0.000000e+00> : vector<2x128xf32>
    %455 = tpu.matmul %422, %326, %cst_111 {dimension_numbers = #tpu.dot_dimension_numbers<[1], [0], [0], [1], [0, 0, 1, 1], [], []>} : vector<2x32xf32>, vector<32x128xf32>, vector<2x128xf32> -> vector<2x128xf32>
    %456 = arith.addf %454, %455 : vector<2x128xf32>
    %457 = vector.broadcast %327 : vector<1x128xf32> to vector<2x128xf32>
    %458 = arith.addf %456, %457 : vector<2x128xf32>
    %459 = arith.negf %458 : vector<2x128xf32>
    %460 = math.exp %459 : vector<2x128xf32>
    %cst_112 = arith.constant 1.000000e+00 : f32
    %461 = vector.broadcast %cst_112 : f32 to vector<2x128xf32>
    %462 = arith.addf %461, %460 : vector<2x128xf32>
    %463 = arith.divf %461, %462 : vector<2x128xf32>
    %464 = math.tanh %458 : vector<2x128xf32>
    %465 = vector.extract_strided_slice %463 {offsets = [0, 0], sizes = [2, 32], strides = [1, 1]} : vector<2x128xf32> to vector<2x32xf32>
    %466 = vector.extract_strided_slice %463 {offsets = [0, 32], sizes = [2, 32], strides = [1, 1]} : vector<2x128xf32> to vector<2x32xf32>
    %467 = vector.extract_strided_slice %464 {offsets = [0, 64], sizes = [2, 32], strides = [1, 1]} : vector<2x128xf32> to vector<2x32xf32>
    %468 = vector.extract_strided_slice %463 {offsets = [0, 96], sizes = [2, 32], strides = [1, 1]} : vector<2x128xf32> to vector<2x32xf32>
    %469 = arith.mulf %466, %420 : vector<2x32xf32>
    %470 = arith.mulf %465, %467 : vector<2x32xf32>
    %471 = arith.addf %469, %470 : vector<2x32xf32>
    %472 = math.tanh %471 : vector<2x32xf32>
    %473 = arith.mulf %468, %472 : vector<2x32xf32>
    %cst_113 = arith.constant dense<0.000000e+00> : vector<2x128xf32>
    %474 = tpu.matmul %473, %328, %cst_113 {dimension_numbers = #tpu.dot_dimension_numbers<[1], [0], [0], [1], [0, 0, 1, 1], [], []>} : vector<2x32xf32>, vector<32x128xf32>, vector<2x128xf32> -> vector<2x128xf32>
    %475 = vector.broadcast %329 : vector<1x128xf32> to vector<2x128xf32>
    %476 = arith.addf %474, %475 : vector<2x128xf32>
    %c3 = arith.constant 3 : index
    %c0_114 = arith.constant 0 : index
    %c0_115 = arith.constant 0 : index
    %477 = vector.load %arg17[%c3, %c0_114, %c0_115] : memref<6x2x128xf32, #tpu.memory_space<vmem>>, vector<1x2x128xf32>
    %478 = vector.shape_cast %477 : vector<1x2x128xf32> to vector<2x128xf32>
    %479 = vector.shape_cast %476 : vector<2x128xf32> to vector<1x2x128xf32>
    tpu.vector_store %arg17[%c3, %c0_114, %c0_115], %479 {strides = array<i32>} : memref<6x2x128xf32, #tpu.memory_space<vmem>>, vector<1x2x128xf32>,
    %c3_116 = arith.constant 3 : index
    %480 = memref.load %arg2[%c3_116] : memref<6xi32, #tpu.memory_space<smem>>
    %c0_i32_117 = arith.constant 0 : i32
    %481 = arith.cmpi sgt, %480, %c0_i32_117 : i32
    %c3_118 = arith.constant 3 : index
    %c0_119 = arith.constant 0 : index
    %c0_120 = arith.constant 0 : index
    %482 = vector.load %arg1[%c3_118, %c0_119, %c0_120] : memref<6x2x128xf32, #tpu.memory_space<vmem>>, vector<1x2x128xf32>
    %483 = vector.shape_cast %482 : vector<1x2x128xf32> to vector<2x128xf32>
    %484 = arith.select %481, %483, %476 : vector<2x128xf32>
    %cst_121 = arith.constant dense<0.000000e+00> : vector<2x128xf32>
    %485 = tpu.matmul %484, %322, %cst_121 {dimension_numbers = #tpu.dot_dimension_numbers<[1], [0], [0], [1], [0, 0, 1, 1], [], []>} : vector<2x128xf32>, vector<128x128xf32>, vector<2x128xf32> -> vector<2x128xf32>
    %cst_122 = arith.constant dense<0.000000e+00> : vector<2x128xf32>
    %486 = tpu.matmul %453, %323, %cst_122 {dimension_numbers = #tpu.dot_dimension_numbers<[1], [0], [0], [1], [0, 0, 1, 1], [], []>} : vector<2x32xf32>, vector<32x128xf32>, vector<2x128xf32> -> vector<2x128xf32>
    %487 = arith.addf %485, %486 : vector<2x128xf32>
    %488 = vector.broadcast %324 : vector<1x128xf32> to vector<2x128xf32>
    %489 = arith.addf %487, %488 : vector<2x128xf32>
    %490 = arith.negf %489 : vector<2x128xf32>
    %491 = math.exp %490 : vector<2x128xf32>
    %cst_123 = arith.constant 1.000000e+00 : f32
    %492 = vector.broadcast %cst_123 : f32 to vector<2x128xf32>
    %493 = arith.addf %492, %491 : vector<2x128xf32>
    %494 = arith.divf %492, %493 : vector<2x128xf32>
    %495 = math.tanh %489 : vector<2x128xf32>
    %496 = vector.extract_strided_slice %494 {offsets = [0, 0], sizes = [2, 32], strides = [1, 1]} : vector<2x128xf32> to vector<2x32xf32>
    %497 = vector.extract_strided_slice %494 {offsets = [0, 32], sizes = [2, 32], strides = [1, 1]} : vector<2x128xf32> to vector<2x32xf32>
    %498 = vector.extract_strided_slice %495 {offsets = [0, 64], sizes = [2, 32], strides = [1, 1]} : vector<2x128xf32> to vector<2x32xf32>
    %499 = vector.extract_strided_slice %494 {offsets = [0, 96], sizes = [2, 32], strides = [1, 1]} : vector<2x128xf32> to vector<2x32xf32>
    %500 = arith.mulf %497, %451 : vector<2x32xf32>
    %501 = arith.mulf %496, %498 : vector<2x32xf32>
    %502 = arith.addf %500, %501 : vector<2x32xf32>
    %503 = math.tanh %502 : vector<2x32xf32>
    %504 = arith.mulf %499, %503 : vector<2x32xf32>
    %cst_124 = arith.constant dense<0.000000e+00> : vector<2x128xf32>
    %505 = tpu.matmul %504, %325, %cst_124 {dimension_numbers = #tpu.dot_dimension_numbers<[1], [0], [0], [1], [0, 0, 1, 1], [], []>} : vector<2x32xf32>, vector<32x128xf32>, vector<2x128xf32> -> vector<2x128xf32>
    %cst_125 = arith.constant dense<0.000000e+00> : vector<2x128xf32>
    %506 = tpu.matmul %473, %326, %cst_125 {dimension_numbers = #tpu.dot_dimension_numbers<[1], [0], [0], [1], [0, 0, 1, 1], [], []>} : vector<2x32xf32>, vector<32x128xf32>, vector<2x128xf32> -> vector<2x128xf32>
    %507 = arith.addf %505, %506 : vector<2x128xf32>
    %508 = vector.broadcast %327 : vector<1x128xf32> to vector<2x128xf32>
    %509 = arith.addf %507, %508 : vector<2x128xf32>
    %510 = arith.negf %509 : vector<2x128xf32>
    %511 = math.exp %510 : vector<2x128xf32>
    %cst_126 = arith.constant 1.000000e+00 : f32
    %512 = vector.broadcast %cst_126 : f32 to vector<2x128xf32>
    %513 = arith.addf %512, %511 : vector<2x128xf32>
    %514 = arith.divf %512, %513 : vector<2x128xf32>
    %515 = math.tanh %509 : vector<2x128xf32>
    %516 = vector.extract_strided_slice %514 {offsets = [0, 0], sizes = [2, 32], strides = [1, 1]} : vector<2x128xf32> to vector<2x32xf32>
    %517 = vector.extract_strided_slice %514 {offsets = [0, 32], sizes = [2, 32], strides = [1, 1]} : vector<2x128xf32> to vector<2x32xf32>
    %518 = vector.extract_strided_slice %515 {offsets = [0, 64], sizes = [2, 32], strides = [1, 1]} : vector<2x128xf32> to vector<2x32xf32>
    %519 = vector.extract_strided_slice %514 {offsets = [0, 96], sizes = [2, 32], strides = [1, 1]} : vector<2x128xf32> to vector<2x32xf32>
    %520 = arith.mulf %517, %471 : vector<2x32xf32>
    %521 = arith.mulf %516, %518 : vector<2x32xf32>
    %522 = arith.addf %520, %521 : vector<2x32xf32>
    %523 = math.tanh %522 : vector<2x32xf32>
    %524 = arith.mulf %519, %523 : vector<2x32xf32>
    %cst_127 = arith.constant dense<0.000000e+00> : vector<2x128xf32>
    %525 = tpu.matmul %524, %328, %cst_127 {dimension_numbers = #tpu.dot_dimension_numbers<[1], [0], [0], [1], [0, 0, 1, 1], [], []>} : vector<2x32xf32>, vector<32x128xf32>, vector<2x128xf32> -> vector<2x128xf32>
    %526 = vector.broadcast %329 : vector<1x128xf32> to vector<2x128xf32>
    %527 = arith.addf %525, %526 : vector<2x128xf32>
    %c4 = arith.constant 4 : index
    %c0_128 = arith.constant 0 : index
    %c0_129 = arith.constant 0 : index
    %528 = vector.load %arg17[%c4, %c0_128, %c0_129] : memref<6x2x128xf32, #tpu.memory_space<vmem>>, vector<1x2x128xf32>
    %529 = vector.shape_cast %528 : vector<1x2x128xf32> to vector<2x128xf32>
    %530 = vector.shape_cast %527 : vector<2x128xf32> to vector<1x2x128xf32>
    tpu.vector_store %arg17[%c4, %c0_128, %c0_129], %530 {strides = array<i32>} : memref<6x2x128xf32, #tpu.memory_space<vmem>>, vector<1x2x128xf32>,
    %c4_130 = arith.constant 4 : index
    %531 = memref.load %arg2[%c4_130] : memref<6xi32, #tpu.memory_space<smem>>
    %c0_i32_131 = arith.constant 0 : i32
    %532 = arith.cmpi sgt, %531, %c0_i32_131 : i32
    %c4_132 = arith.constant 4 : index
    %c0_133 = arith.constant 0 : index
    %c0_134 = arith.constant 0 : index
    %533 = vector.load %arg1[%c4_132, %c0_133, %c0_134] : memref<6x2x128xf32, #tpu.memory_space<vmem>>, vector<1x2x128xf32>
    %534 = vector.shape_cast %533 : vector<1x2x128xf32> to vector<2x128xf32>
    %535 = arith.select %532, %534, %527 : vector<2x128xf32>
    %cst_135 = arith.constant dense<0.000000e+00> : vector<2x128xf32>
    %536 = tpu.matmul %535, %322, %cst_135 {dimension_numbers = #tpu.dot_dimension_numbers<[1], [0], [0], [1], [0, 0, 1, 1], [], []>} : vector<2x128xf32>, vector<128x128xf32>, vector<2x128xf32> -> vector<2x128xf32>
    %cst_136 = arith.constant dense<0.000000e+00> : vector<2x128xf32>
    %537 = tpu.matmul %504, %323, %cst_136 {dimension_numbers = #tpu.dot_dimension_numbers<[1], [0], [0], [1], [0, 0, 1, 1], [], []>} : vector<2x32xf32>, vector<32x128xf32>, vector<2x128xf32> -> vector<2x128xf32>
    %538 = arith.addf %536, %537 : vector<2x128xf32>
    %539 = vector.broadcast %324 : vector<1x128xf32> to vector<2x128xf32>
    %540 = arith.addf %538, %539 : vector<2x128xf32>
    %541 = arith.negf %540 : vector<2x128xf32>
    %542 = math.exp %541 : vector<2x128xf32>
    %cst_137 = arith.constant 1.000000e+00 : f32
    %543 = vector.broadcast %cst_137 : f32 to vector<2x128xf32>
    %544 = arith.addf %543, %542 : vector<2x128xf32>
    %545 = arith.divf %543, %544 : vector<2x128xf32>
    %546 = math.tanh %540 : vector<2x128xf32>
    %547 = vector.extract_strided_slice %545 {offsets = [0, 0], sizes = [2, 32], strides = [1, 1]} : vector<2x128xf32> to vector<2x32xf32>
    %548 = vector.extract_strided_slice %545 {offsets = [0, 32], sizes = [2, 32], strides = [1, 1]} : vector<2x128xf32> to vector<2x32xf32>
    %549 = vector.extract_strided_slice %546 {offsets = [0, 64], sizes = [2, 32], strides = [1, 1]} : vector<2x128xf32> to vector<2x32xf32>
    %550 = vector.extract_strided_slice %545 {offsets = [0, 96], sizes = [2, 32], strides = [1, 1]} : vector<2x128xf32> to vector<2x32xf32>
    %551 = arith.mulf %548, %502 : vector<2x32xf32>
    %552 = arith.mulf %547, %549 : vector<2x32xf32>
    %553 = arith.addf %551, %552 : vector<2x32xf32>
    %554 = math.tanh %553 : vector<2x32xf32>
    %555 = arith.mulf %550, %554 : vector<2x32xf32>
    %cst_138 = arith.constant dense<0.000000e+00> : vector<2x128xf32>
    %556 = tpu.matmul %555, %325, %cst_138 {dimension_numbers = #tpu.dot_dimension_numbers<[1], [0], [0], [1], [0, 0, 1, 1], [], []>} : vector<2x32xf32>, vector<32x128xf32>, vector<2x128xf32> -> vector<2x128xf32>
    %cst_139 = arith.constant dense<0.000000e+00> : vector<2x128xf32>
    %557 = tpu.matmul %524, %326, %cst_139 {dimension_numbers = #tpu.dot_dimension_numbers<[1], [0], [0], [1], [0, 0, 1, 1], [], []>} : vector<2x32xf32>, vector<32x128xf32>, vector<2x128xf32> -> vector<2x128xf32>
    %558 = arith.addf %556, %557 : vector<2x128xf32>
    %559 = vector.broadcast %327 : vector<1x128xf32> to vector<2x128xf32>
    %560 = arith.addf %558, %559 : vector<2x128xf32>
    %561 = arith.negf %560 : vector<2x128xf32>
    %562 = math.exp %561 : vector<2x128xf32>
    %cst_140 = arith.constant 1.000000e+00 : f32
    %563 = vector.broadcast %cst_140 : f32 to vector<2x128xf32>
    %564 = arith.addf %563, %562 : vector<2x128xf32>
    %565 = arith.divf %563, %564 : vector<2x128xf32>
    %566 = math.tanh %560 : vector<2x128xf32>
    %567 = vector.extract_strided_slice %565 {offsets = [0, 0], sizes = [2, 32], strides = [1, 1]} : vector<2x128xf32> to vector<2x32xf32>
    %568 = vector.extract_strided_slice %565 {offsets = [0, 32], sizes = [2, 32], strides = [1, 1]} : vector<2x128xf32> to vector<2x32xf32>
    %569 = vector.extract_strided_slice %566 {offsets = [0, 64], sizes = [2, 32], strides = [1, 1]} : vector<2x128xf32> to vector<2x32xf32>
    %570 = vector.extract_strided_slice %565 {offsets = [0, 96], sizes = [2, 32], strides = [1, 1]} : vector<2x128xf32> to vector<2x32xf32>
    %571 = arith.mulf %568, %522 : vector<2x32xf32>
    %572 = arith.mulf %567, %569 : vector<2x32xf32>
    %573 = arith.addf %571, %572 : vector<2x32xf32>
    %574 = math.tanh %573 : vector<2x32xf32>
    %575 = arith.mulf %570, %574 : vector<2x32xf32>
    %cst_141 = arith.constant dense<0.000000e+00> : vector<2x128xf32>
    %576 = tpu.matmul %575, %328, %cst_141 {dimension_numbers = #tpu.dot_dimension_numbers<[1], [0], [0], [1], [0, 0, 1, 1], [], []>} : vector<2x32xf32>, vector<32x128xf32>, vector<2x128xf32> -> vector<2x128xf32>
    %577 = vector.broadcast %329 : vector<1x128xf32> to vector<2x128xf32>
    %578 = arith.addf %576, %577 : vector<2x128xf32>
    %c5 = arith.constant 5 : index
    %c0_142 = arith.constant 0 : index
    %c0_143 = arith.constant 0 : index
    %579 = vector.load %arg17[%c5, %c0_142, %c0_143] : memref<6x2x128xf32, #tpu.memory_space<vmem>>, vector<1x2x128xf32>
    %580 = vector.shape_cast %579 : vector<1x2x128xf32> to vector<2x128xf32>
    %581 = vector.shape_cast %578 : vector<2x128xf32> to vector<1x2x128xf32>
    tpu.vector_store %arg17[%c5, %c0_142, %c0_143], %581 {strides = array<i32>} : memref<6x2x128xf32, #tpu.memory_space<vmem>>, vector<1x2x128xf32>,
    return
  }
}

</mosaic_0001>

<llo_original>
// kernel: tpu_custom_call.1
$region0: #{tpu_custom_call.1}
  #allocation0 [shape = 'u32[]', space=smem, size = 0x4, offset = 0x4, fixed_abs, tag = 'smem constant byte address 0x4 - core index']
  #allocation1 [shape = 'u32[144,128]{1,0:T(1,128)}', space=vmem, size = 0x12000, scoped, tag = 'internal scratch']
  %s0 = inlined_call_operand.vmem [shape: f32[16,4], index: 0, kind: input, shape index: {}]
  %s1 = inlined_call_operand.hbm [shape: f32[6,2,128], index: 1, kind: input, shape index: {}]
  %s2 = inlined_call_operand.hbm [shape: s32[6], index: 2, kind: input, shape index: {}]
  %s3 = inlined_call_operand.hbm [shape: f32[4,128], index: 3, kind: input, shape index: {}]
  %s4 = inlined_call_operand.hbm [shape: f32[32,128], index: 4, kind: input, shape index: {}]
  %s5 = inlined_call_operand.hbm [shape: f32[1,128], index: 5, kind: input, shape index: {}]
  %s6 = inlined_call_operand.hbm [shape: f32[32,128], index: 6, kind: input, shape index: {}]
  %s7 = inlined_call_operand.vmem [shape: f32[32,128], index: 7, kind: input, shape index: {}]
  %s8 = inlined_call_operand.vmem [shape: f32[1,128], index: 8, kind: input, shape index: {}]
  %s9 = inlined_call_operand.hbm [shape: f32[128,128], index: 9, kind: input, shape index: {}]
  %s10 = inlined_call_operand.hbm [shape: f32[32,128], index: 10, kind: input, shape index: {}]
  %s11 = inlined_call_operand.vmem [shape: f32[1,128], index: 11, kind: input, shape index: {}]
  %s12 = inlined_call_operand.hbm [shape: f32[32,128], index: 12, kind: input, shape index: {}]
  %s13 = inlined_call_operand.hbm [shape: f32[32,128], index: 13, kind: input, shape index: {}]
  %s14 = inlined_call_operand.vmem [shape: f32[1,128], index: 14, kind: input, shape index: {}]
  %s15 = inlined_call_operand.hbm [shape: f32[32,128], index: 15, kind: input, shape index: {}]
  %s16 = inlined_call_operand.vmem [shape: f32[1,128], index: 16, kind: input, shape index: {}]
  %s17 = inlined_call_operand.hbm [shape: f32[6,2,128], index: 17, kind: output, shape index: {}]
  %s18 = sld [smem:[#allocation0]]
  $region122: #{tpu_custom_call.1} parent=0
    _
  %s20 = ssub.s32 1, %s18
  %s21 = scalar_select 0, %s20, %s18
  $region1: #{tpu_custom_call.1} parent=0
    #allocation2 [shape = 'u8[6144]{0}', space=vmem, size = 0x1800, scoped, tag = 'input window, operand 1, single buffered']
    #allocation3 [shape = 's32[1]{0}', space=sflag, size = 0x4, scoped, tag = 'scoped memory for tpu_custom_call.1']
    #allocation4 [shape = 's32[1]{0}', space=sflag, size = 0x4, scoped, tag = 'scoped memory for tpu_custom_call.1']
    #allocation5 [shape = 's32[1]{0}', space=sflag, size = 0x4, scoped, tag = 'scoped memory for tpu_custom_call.1']
    #allocation6 [shape = 'u8[512]{0}', space=smem, size = 0x200, scoped, tag = 'input window, operand 2, single buffered']
    #allocation7 [shape = 'u8[2048]{0}', space=vmem, size = 0x800, scoped, tag = 'input window, operand 3, single buffered']
    #allocation8 [shape = 's32[1]{0}', space=sflag, size = 0x4, scoped, tag = 'scoped memory for tpu_custom_call.1']
    #allocation9 [shape = 'u8[16384]{0}', space=vmem, size = 0x4000, scoped, tag = 'input window, operand 4, single buffered']
    #allocation10 [shape = 'u8[512]{0}', space=vmem, size = 0x400, scoped, tag = 'input window, operand 5, single buffered']
    #allocation11 [shape = 's32[1]{0}', space=sflag, size = 0x4, scoped, tag = 'scoped memory for tpu_custom_call.1']
    #allocation12 [shape = 'u8[16384]{0}', space=vmem, size = 0x4000, scoped, tag = 'input window, operand 6, single buffered']
    #allocation13 [shape = 'u8[65536]{0}', space=vmem, size = 0x10000, scoped, tag = 'input window, operand 9, single buffered']
    #allocation14 [shape = 's32[1]{0}', space=sflag, size = 0x4, scoped, tag = 'scoped memory for tpu_custom_call.1']
    #allocation15 [shape = 'u8[16384]{0}', space=vmem, size = 0x4000, scoped, tag = 'input window, operand 10, single buffered']
    #allocation16 [shape = 'u8[16384]{0}', space=vmem, size = 0x4000, scoped, tag = 'input window, operand 12, single buffered']
    #allocation17 [shape = 's32[1]{0}', space=sflag, size = 0x4, scoped, tag = 'scoped memory for tpu_custom_call.1']
    #allocation18 [shape = 'u8[16384]{0}', space=vmem, size = 0x4000, scoped, tag = 'input window, operand 13, single buffered']
    #allocation19 [shape = 'u8[16384]{0}', space=vmem, size = 0x4000, scoped, tag = 'input window, operand 15, single buffered']
    #allocation20 [shape = 's32[1]{0}', space=sflag, size = 0x4, scoped, tag = 'scoped memory for tpu_custom_call.1']
    #allocation21 [shape = 'u8[6144]{0}', space=vmem, size = 0x1800, scoped, tag = 'output window, operand 0, single buffered']
    %22 = vsyncpa [#allocation3], 0
    %23 = vsyncpa [#allocation5], 0
    %24 = vsyncpa [#allocation8], 0
    %25 = vsyncpa [#allocation11], 0
    %26 = vsyncpa [#allocation14], 0
    %27 = vsyncpa [#allocation17], 0
    %28 = vsyncpa [#allocation20], 0
    %29 = vsyncpa [#allocation4], 0
    // Predicated region
    $region2: #{tpu_custom_call.1} parent=1 // pred_check
      _
    $region3: #{tpu_custom_call.1} parent=1 // pred_check_branch
      %31 = sbr.rel (0) target = $region5
    $region4: #{tpu_custom_call.1} parent=1 // pred_region
      _
    $region5: #{tpu_custom_call.1} parent=1 // pred_fallthru
      _
    // Predicated region
    $region6: #{tpu_custom_call.1} parent=1 // pred_check
      _
    $region7: #{tpu_custom_call.1} parent=1 // pred_check_branch
      %33 = sbr.rel (0) target = $region9
    $region8: #{tpu_custom_call.1} parent=1 // pred_region
      %s35 = ssub.s32 192, 192
      %36 = vsyncadd [#allocation3], %s35
      %s37 = sshll.u32 [#allocation2], 4
      %s38 = int_to_ptr.vmem [resolvable:$true] %s37
      %43 = dma.hbm_to_vmem [thread:$0]  %s1, 192, %s38, [#allocation3], 32, 32, 2
    $region9: #{tpu_custom_call.1} parent=1 // pred_fallthru
      _
    // Predicated region
    $region10: #{tpu_custom_call.1} parent=1 // pred_check
      _
    $region11: #{tpu_custom_call.1} parent=1 // pred_check_branch
      %45 = sbr.rel (0) target = $region13
    $region12: #{tpu_custom_call.1} parent=1 // pred_region
      %s47 = ssub.s32 16, 16
      %48 = vsyncadd [#allocation5], %s47
      %51 = dma.hbm_to_smem %s2, 16, [#allocation6], [#allocation5]
    $region13: #{tpu_custom_call.1} parent=1 // pred_fallthru
      _
    // Predicated region
    $region14: #{tpu_custom_call.1} parent=1 // pred_check
      _
    $region15: #{tpu_custom_call.1} parent=1 // pred_check_branch
      %53 = sbr.rel (0) target = $region17
    $region16: #{tpu_custom_call.1} parent=1 // pred_region
      %s55 = ssub.s32 64, 64
      %56 = vsyncadd [#allocation8], %s55
      %s58 = sshll.u32 [#allocation7], 4
      %s59 = int_to_ptr.vmem [resolvable:$true] %s58
      %61 = dma.hbm_to_vmem [thread:$0]  %s3, 64, %s59, [#allocation8]
    $region17: #{tpu_custom_call.1} parent=1 // pred_fallthru
      _
    // Predicated region
    $region18: #{tpu_custom_call.1} parent=1 // pred_check
      _
    $region19: #{tpu_custom_call.1} parent=1 // pred_check_branch
      %63 = sbr.rel (0) target = $region21
    $region20: #{tpu_custom_call.1} parent=1 // pred_region
      %s65 = ssub.s32 512, 512
      %66 = vsyncadd [#allocation8], %s65
      %s67 = sshll.u32 [#allocation9], 4
      %s68 = int_to_ptr.vmem [resolvable:$true] %s67
      %73 = dma.hbm_to_vmem [thread:$0]  %s4, 512, %s68, [#allocation8], 128, 128, 8
    $region21: #{tpu_custom_call.1} parent=1 // pred_fallthru
      _
    // Predicated region
    $region22: #{tpu_custom_call.1} parent=1 // pred_check
      _
    $region23: #{tpu_custom_call.1} parent=1 // pred_check_branch
      %75 = sbr.rel (0) target = $region25
    $region24: #{tpu_custom_call.1} parent=1 // pred_region
      %s77 = ssub.s32 16, 16
      %78 = vsyncadd [#allocation11], %s77
      %s80 = sshll.u32 [#allocation10], 4
      %s81 = int_to_ptr.vmem [resolvable:$true] %s80
      %83 = dma.hbm_to_vmem [thread:$0]  %s5, 16, %s81, [#allocation11]
    $region25: #{tpu_custom_call.1} parent=1 // pred_fallthru
      _
    // Predicated region
    $region26: #{tpu_custom_call.1} parent=1 // pred_check
      _
    $region27: #{tpu_custom_call.1} parent=1 // pred_check_branch
      %85 = sbr.rel (0) target = $region29
    $region28: #{tpu_custom_call.1} parent=1 // pred_region
      %s87 = ssub.s32 512, 512
      %88 = vsyncadd [#allocation11], %s87
      %s89 = sshll.u32 [#allocation12], 4
      %s90 = int_to_ptr.vmem [resolvable:$true] %s89
      %95 = dma.hbm_to_vmem [thread:$0]  %s6, 512, %s90, [#allocation11], 128, 128, 8
    $region29: #{tpu_custom_call.1} parent=1 // pred_fallthru
      _
    // Predicated region
    $region30: #{tpu_custom_call.1} parent=1 // pred_check
      _
    $region31: #{tpu_custom_call.1} parent=1 // pred_check_branch
      %97 = sbr.rel (0) target = $region33
    $region32: #{tpu_custom_call.1} parent=1 // pred_region
      _
    $region33: #{tpu_custom_call.1} parent=1 // pred_fallthru
      _
    // Predicated region
    $region34: #{tpu_custom_call.1} parent=1 // pred_check
      _
    $region35: #{tpu_custom_call.1} parent=1 // pred_check_branch
      %99 = sbr.rel (0) target = $region37
    $region36: #{tpu_custom_call.1} parent=1 // pred_region
      _
    $region37: #{tpu_custom_call.1} parent=1 // pred_fallthru
      _
    // Predicated region
    $region38: #{tpu_custom_call.1} parent=1 // pred_check
      _
    $region39: #{tpu_custom_call.1} parent=1 // pred_check_branch
      %101 = sbr.rel (0) target = $region41
    $region40: #{tpu_custom_call.1} parent=1 // pred_region
      %s103 = ssub.s32 2048, 2048
      %104 = vsyncadd [#allocation14], %s103
      %s105 = sshll.u32 [#allocation13], 4
      %s106 = int_to_ptr.vmem [resolvable:$true] %s105
      %111 = dma.hbm_to_vmem [thread:$0]  %s9, 2048, %s106, [#allocation14], 128, 128, 8
    $region41: #{tpu_custom_call.1} parent=1 // pred_fallthru
      _
    // Predicated region
    $region42: #{tpu_custom_call.1} parent=1 // pred_check
      _
    $region43: #{tpu_custom_call.1} parent=1 // pred_check_branch
      %113 = sbr.rel (0) target = $region45
    $region44: #{tpu_custom_call.1} parent=1 // pred_region
      %s115 = ssub.s32 512, 512
      %116 = vsyncadd [#allocation14], %s115
      %s117 = sshll.u32 [#allocation15], 4
      %s118 = int_to_ptr.vmem [resolvable:$true] %s117
      %123 = dma.hbm_to_vmem [thread:$0]  %s10, 512, %s118, [#allocation14], 128, 128, 8
    $region45: #{tpu_custom_call.1} parent=1 // pred_fallthru
      _
    // Predicated region
    $region46: #{tpu_custom_call.1} parent=1 // pred_check
      _
    $region47: #{tpu_custom_call.1} parent=1 // pred_check_branch
      %125 = sbr.rel (0) target = $region49
    $region48: #{tpu_custom_call.1} parent=1 // pred_region
      _
    $region49: #{tpu_custom_call.1} parent=1 // pred_fallthru
      _
    // Predicated region
    $region50: #{tpu_custom_call.1} parent=1 // pred_check
      _
    $region51: #{tpu_custom_call.1} parent=1 // pred_check_branch
      %127 = sbr.rel (0) target = $region53
    $region52: #{tpu_custom_call.1} parent=1 // pred_region
      %s129 = ssub.s32 512, 512
      %130 = vsyncadd [#allocation17], %s129
      %s131 = sshll.u32 [#allocation16], 4
      %s132 = int_to_ptr.vmem [resolvable:$true] %s131
      %137 = dma.hbm_to_vmem [thread:$0]  %s12, 512, %s132, [#allocation17], 128, 128, 8
    $region53: #{tpu_custom_call.1} parent=1 // pred_fallthru
      _
    // Predicated region
    $region54: #{tpu_custom_call.1} parent=1 // pred_check
      _
    $region55: #{tpu_custom_call.1} parent=1 // pred_check_branch
      %139 = sbr.rel (0) target = $region57
    $region56: #{tpu_custom_call.1} parent=1 // pred_region
      %s141 = ssub.s32 512, 512
      %142 = vsyncadd [#allocation17], %s141
      %s143 = sshll.u32 [#allocation18], 4
      %s144 = int_to_ptr.vmem [resolvable:$true] %s143
      %149 = dma.hbm_to_vmem [thread:$0]  %s13, 512, %s144, [#allocation17], 128, 128, 8
    $region57: #{tpu_custom_call.1} parent=1 // pred_fallthru
      _
    // Predicated region
    $region58: #{tpu_custom_call.1} parent=1 // pred_check
      _
    $region59: #{tpu_custom_call.1} parent=1 // pred_check_branch
      %151 = sbr.rel (0) target = $region61
    $region60: #{tpu_custom_call.1} parent=1 // pred_region
      _
    $region61: #{tpu_custom_call.1} parent=1 // pred_fallthru
      _
    // Predicated region
    $region62: #{tpu_custom_call.1} parent=1 // pred_check
      _
    $region63: #{tpu_custom_call.1} parent=1 // pred_check_branch
      %153 = sbr.rel (0) target = $region65
    $region64: #{tpu_custom_call.1} parent=1 // pred_region
      %s155 = ssub.s32 512, 512
      %156 = vsyncadd [#allocation20], %s155
      %s157 = sshll.u32 [#allocation19], 4
      %s158 = int_to_ptr.vmem [resolvable:$true] %s157
      %163 = dma.hbm_to_vmem [thread:$0]  %s15, 512, %s158, [#allocation20], 128, 128, 8
    $region65: #{tpu_custom_call.1} parent=1 // pred_fallthru
      _
    // Predicated region
    $region66: #{tpu_custom_call.1} parent=1 // pred_check
      _
    $region67: #{tpu_custom_call.1} parent=1 // pred_check_branch
      %165 = sbr.rel (0) target = $region69
    $region68: #{tpu_custom_call.1} parent=1 // pred_region
      _
    $region69: #{tpu_custom_call.1} parent=1 // pred_fallthru
      _
    // Predicated region
    $region70: #{tpu_custom_call.1} parent=1 // pred_check
      _
    $region71: #{tpu_custom_call.1} parent=1 // pred_check_branch
      %167 = sbr.rel (0) target = $region73
    $region72: #{tpu_custom_call.1} parent=1 // pred_region
      %168 = dma.done [#allocation3], 192
    $region73: #{tpu_custom_call.1} parent=1 // pred_fallthru
      _
    // Predicated region
    $region74: #{tpu_custom_call.1} parent=1 // pred_check
      _
    $region75: #{tpu_custom_call.1} parent=1 // pred_check_branch
      %170 = sbr.rel (0) target = $region77
    $region76: #{tpu_custom_call.1} parent=1 // pred_region
      %171 = dma.done [#allocation5], 16
    $region77: #{tpu_custom_call.1} parent=1 // pred_fallthru
      _
    // Predicated region
    $region78: #{tpu_custom_call.1} parent=1 // pred_check
      _
    $region79: #{tpu_custom_call.1} parent=1 // pred_check_branch
      %173 = sbr.rel (0) target = $region81
    $region80: #{tpu_custom_call.1} parent=1 // pred_region
      %174 = dma.done [#allocation8], 64
    $region81: #{tpu_custom_call.1} parent=1 // pred_fallthru
      _
    // Predicated region
    $region82: #{tpu_custom_call.1} parent=1 // pred_check
      _
    $region83: #{tpu_custom_call.1} parent=1 // pred_check_branch
      %176 = sbr.rel (0) target = $region85
    $region84: #{tpu_custom_call.1} parent=1 // pred_region
      %177 = dma.done [#allocation8], 512
    $region85: #{tpu_custom_call.1} parent=1 // pred_fallthru
      _
    // Predicated region
    $region86: #{tpu_custom_call.1} parent=1 // pred_check
      _
    $region87: #{tpu_custom_call.1} parent=1 // pred_check_branch
      %179 = sbr.rel (0) target = $region89
    $region88: #{tpu_custom_call.1} parent=1 // pred_region
      %180 = dma.done [#allocation11], 16
    $region89: #{tpu_custom_call.1} parent=1 // pred_fallthru
      _
    // Predicated region
    $region90: #{tpu_custom_call.1} parent=1 // pred_check
      _
    $region91: #{tpu_custom_call.1} parent=1 // pred_check_branch
      %182 = sbr.rel (0) target = $region93
    $region92: #{tpu_custom_call.1} parent=1 // pred_region
      %183 = dma.done [#allocation11], 512
    $region93: #{tpu_custom_call.1} parent=1 // pred_fallthru
      _
    // Predicated region
    $region94: #{tpu_custom_call.1} parent=1 // pred_check
      _
    $region95: #{tpu_custom_call.1} parent=1 // pred_check_branch
      %185 = sbr.rel (0) target = $region97
    $region96: #{tpu_custom_call.1} parent=1 // pred_region
      %186 = dma.done [#allocation14], 2048
    $region97: #{tpu_custom_call.1} parent=1 // pred_fallthru
      _
    // Predicated region
    $region98: #{tpu_custom_call.1} parent=1 // pred_check
      _
    $region99: #{tpu_custom_call.1} parent=1 // pred_check_branch
      %188 = sbr.rel (0) target = $region101
    $region100: #{tpu_custom_call.1} parent=1 // pred_region
      %189 = dma.done [#allocation14], 512
    $region101: #{tpu_custom_call.1} parent=1 // pred_fallthru
      _
    // Predicated region
    $region102: #{tpu_custom_call.1} parent=1 // pred_check
      _
    $region103: #{tpu_custom_call.1} parent=1 // pred_check_branch
      %191 = sbr.rel (0) target = $region105
    $region104: #{tpu_custom_call.1} parent=1 // pred_region
      %192 = dma.done [#allocation17], 512
    $region105: #{tpu_custom_call.1} parent=1 // pred_fallthru
      _
    // Predicated region
    $region106: #{tpu_custom_call.1} parent=1 // pred_check
      _
    $region107: #{tpu_custom_call.1} parent=1 // pred_check_branch
      %194 = sbr.rel (0) target = $region109
    $region108: #{tpu_custom_call.1} parent=1 // pred_region
      %195 = dma.done [#allocation17], 512
    $region109: #{tpu_custom_call.1} parent=1 // pred_fallthru
      _
    // Predicated region
    $region110: #{tpu_custom_call.1} parent=1 // pred_check
      _
    $region111: #{tpu_custom_call.1} parent=1 // pred_check_branch
      %197 = sbr.rel (0) target = $region113
    $region112: #{tpu_custom_call.1} parent=1 // pred_region
      %198 = dma.done [#allocation20], 512
    $region113: #{tpu_custom_call.1} parent=1 // pred_fallthru
      _
    %199 = sfence
    %200 = vst [vmem:[#allocation21] sm:$0x3] 0.0
    %v201 = vld [vmem:[%s0] sm:$0xff]
    %v202 = vld [vmem:[%s0 + $0x8] sm:$0xff]
    %v203 = vld [vmem:[#allocation7] sm:$0xf]
    %v204 = vld [vmem:[#allocation10] sm:$0x1]
    %v206 = vlaneseq
    %v207 = vshrl.u32 %v206, 7
    %v208 = vsub.s32 0, %v207
    %v209 = vrot.slane %v204, %v208
    %vm211 = vcmask 31744
    %v213 = vsel %vm211, %v201, 0
    %v216 = vsel %vm211, %v202, 0
    %vm218 = vcmask 1043456
    %v220 = vsel %vm218, %v203, 0
    %222 = vmatprep.subr.mxu0 0.0
    %223 = vmatpush1.msra.mxu0 0.0
    %224 = vmatprep.subr.mxu0 0.0
    %225 = vmatpush1.msra.mxu0 0.0
    %226 = vmatprep.subr.mxu0 0.0
    %227 = vmatpush1.msra.mxu0 0.0
    %228 = vmatprep.subr.mxu0 0.0
    %229 = vmatpush1.msra.mxu0 0.0
    %230 = vmatprep.subr.mxu0 0.0
    %231 = vmatpush1.msra.mxu0 0.0
    %232 = vmatprep.subr.mxu0 0.0
    %233 = vmatpush1.msra.mxu0 0.0
    %234 = vmatprep.subr.mxu0 0.0
    %235 = vmatpush1.msra.mxu0 0.0
    %236 = vmatprep.subr.mxu0 0.0
    %237 = vmatpush1.msra.mxu0 0.0
    %238 = vmatprep.subr.mxu0 0.0
    %239 = vmatpush1.msra.mxu0 0.0
    %240 = vmatprep.subr.mxu0 0.0
    %241 = vmatpush1.msra.mxu0 0.0
    %242 = vmatprep.subr.mxu0 0.0
    %243 = vmatpush1.msra.mxu0 0.0
    %244 = vmatprep.subr.mxu0 0.0
    %245 = vmatpush1.msra.mxu0 0.0
    %246 = vmatprep.subr.mxu0 0.0
    %247 = vmatpush1.msra.mxu0 0.0
    %248 = vmatprep.subr.mxu0 0.0
    %249 = vmatpush1.msra.mxu0 0.0
    %250 = vmatprep.subr.mxu0 0.0
    %251 = vmatpush1.msra.mxu0 0.0
    %252 = vmatprep.subr.mxu0 0.0
    %253 = vmatpush1.msra.mxu0 %v220
    %254 = vmatprep.subr.mxu0 0.0
    %255 = vmatpush2.msra.mxu0 0.0
    %256 = vmatprep.subr.mxu0 0.0
    %257 = vmatpush2.msra.mxu0 0.0
    %258 = vmatprep.subr.mxu0 0.0
    %259 = vmatpush2.msra.mxu0 0.0
    %260 = vmatprep.subr.mxu0 0.0
    %261 = vmatpush2.msra.mxu0 0.0
    %262 = vmatprep.subr.mxu0 0.0
    %263 = vmatpush2.msra.mxu0 0.0
    %264 = vmatprep.subr.mxu0 0.0
    %265 = vmatpush2.msra.mxu0 0.0
    %266 = vmatprep.subr.mxu0 0.0
    %267 = vmatpush2.msra.mxu0 0.0
    %268 = vmatprep.subr.mxu0 0.0
    %269 = vmatpush2.msra.mxu0 0.0
    %270 = vmatprep.subr.mxu0 0.0
    %271 = vmatpush2.msra.mxu0 0.0
    %272 = vmatprep.subr.mxu0 0.0
    %273 = vmatpush2.msra.mxu0 0.0
    %274 = vmatprep.subr.mxu0 0.0
    %275 = vmatpush2.msra.mxu0 0.0
    %276 = vmatprep.subr.mxu0 0.0
    %277 = vmatpush2.msra.mxu0 0.0
    %278 = vmatprep.subr.mxu0 0.0
    %279 = vmatpush2.msra.mxu0 0.0
    %280 = vmatprep.subr.mxu0 0.0
    %281 = vmatpush2.msra.mxu0 0.0
    %282 = vmatprep.subr.mxu0 0.0
    %283 = vmatpush2.msra.mxu0 0.0
    %284 = vmatprep.subr.mxu0 0.0
    %285 = vmatpush2.msra.mxu0 0.0
    %286 = vmatprep.mubr.f32.mxu0 0.0
    %287 = vmatmul.mubr.f32.gmra.mxu0 %v213
    %v288 = vpop.f32.mrf.mxu0
    %v289 = vadd.f32 %v209, %v288
    %v290 = vpop.f32.mrf.mxu0
    %291 = vmatprep.mubr.f32.mxu0 0.0
    %292 = vmatmul.mubr.f32.gmra.mxu0 %v216
    %v293 = vpop.f32.mrf.mxu0
    %v294 = vadd.f32 %v209, %v293
    %v295 = vpop.f32.mrf.mxu0
    %296 = vdwg.mxu0
    %v297 = vld [vmem:[#allocation9] sm:$0xff]
    %v298 = vld [vmem:[#allocation9 + $0x8] sm:$0xff]
    %v299 = vld [vmem:[#allocation9 + $0x10] sm:$0xff]
    %v300 = vld [vmem:[#allocation9 + $0x18] sm:$0xff]
    %v301 = vld [vmem:[#allocation12] sm:$0xff]
    %v302 = vld [vmem:[#allocation12 + $0x8] sm:$0xff]
    %v303 = vld [vmem:[#allocation12 + $0x10] sm:$0xff]
    %v304 = vld [vmem:[#allocation12 + $0x18] sm:$0xff]
    %v305 = vld [vmem:[%s7] sm:$0xff]
    %v306 = vld [vmem:[%s7 + $0x8] sm:$0xff]
    %v307 = vld [vmem:[%s7 + $0x10] sm:$0xff]
    %v308 = vld [vmem:[%s7 + $0x18] sm:$0xff]
    %v309 = vld [vmem:[%s8] sm:$0x1]
    %vm310 = vcmask 261120
    %v312 = vsel %vm310, 0.0, 0
    %314 = vmatprep.subr.mxu0 0.0
    %315 = vmatpush1.msra.mxu0 0.0
    %316 = vmatprep.subr.mxu0 0.0
    %317 = vmatpush1.msra.mxu0 0.0
    %318 = vmatprep.subr.mxu0 0.0
    %319 = vmatpush1.msra.mxu0 0.0
    %320 = vmatprep.subr.mxu0 0.0
    %321 = vmatpush1.msra.mxu0 0.0
    %322 = vmatprep.subr.mxu0 0.0
    %323 = vmatpush1.msra.mxu0 0.0
    %324 = vmatprep.subr.mxu0 0.0
    %325 = vmatpush1.msra.mxu0 0.0
    %326 = vmatprep.subr.mxu0 0.0
    %327 = vmatpush1.msra.mxu0 0.0
    %328 = vmatprep.subr.mxu0 0.0
    %329 = vmatpush1.msra.mxu0 0.0
    %330 = vmatprep.subr.mxu0 0.0
    %331 = vmatpush1.msra.mxu0 0.0
    %332 = vmatprep.subr.mxu0 0.0
    %333 = vmatpush1.msra.mxu0 0.0
    %334 = vmatprep.subr.mxu0 0.0
    %335 = vmatpush1.msra.mxu0 0.0
    %336 = vmatprep.subr.mxu0 0.0
    %337 = vmatpush1.msra.mxu0 0.0
    %338 = vmatprep.subr.mxu0 0.0
    %339 = vmatpush1.msra.mxu0 %v300
    %340 = vmatprep.subr.mxu0 0.0
    %341 = vmatpush1.msra.mxu0 %v299
    %342 = vmatprep.subr.mxu0 0.0
    %343 = vmatpush1.msra.mxu0 %v298
    %344 = vmatprep.subr.mxu0 0.0
    %345 = vmatpush1.msra.mxu0 %v297
    %346 = vmatprep.subr.mxu0 0.0
    %347 = vmatpush2.msra.mxu0 0.0
    %348 = vmatprep.subr.mxu0 0.0
    %349 = vmatpush2.msra.mxu0 0.0
    %350 = vmatprep.subr.mxu0 0.0
    %351 = vmatpush2.msra.mxu0 0.0
    %352 = vmatprep.subr.mxu0 0.0
    %353 = vmatpush2.msra.mxu0 0.0
    %354 = vmatprep.subr.mxu0 0.0
    %355 = vmatpush2.msra.mxu0 0.0
    %356 = vmatprep.subr.mxu0 0.0
    %357 = vmatpush2.msra.mxu0 0.0
    %358 = vmatprep.subr.mxu0 0.0
    %359 = vmatpush2.msra.mxu0 0.0
    %360 = vmatprep.subr.mxu0 0.0
    %361 = vmatpush2.msra.mxu0 0.0
    %362 = vmatprep.subr.mxu0 0.0
    %363 = vmatpush2.msra.mxu0 0.0
    %364 = vmatprep.subr.mxu0 0.0
    %365 = vmatpush2.msra.mxu0 0.0
    %366 = vmatprep.subr.mxu0 0.0
    %367 = vmatpush2.msra.mxu0 0.0
    %368 = vmatprep.subr.mxu0 0.0
    %369 = vmatpush2.msra.mxu0 0.0
    %370 = vmatprep.subr.mxu0 0.0
    %371 = vmatpush2.msra.mxu0 0.0
    %372 = vmatprep.subr.mxu0 0.0
    %373 = vmatpush2.msra.mxu0 0.0
    %374 = vmatprep.subr.mxu0 0.0
    %375 = vmatpush2.msra.mxu0 0.0
    %376 = vmatprep.subr.mxu0 0.0
    %377 = vmatpush2.msra.mxu0 0.0
    %378 = vmatprep.mubr.f32.mxu0 0.0
    %379 = vmatmul.mubr.f32.gmra.mxu0 %v312
    %v380 = vpop.f32.mrf.mxu0
    %v381 = vadd.f32 0.0, %v380
    %v382 = vpop.f32.mrf.mxu0
    %383 = vdwg.mxu0
    %v384 = vadd.f32 %v289, %v381
    %v385 = vxor.u32 %v384, 2147483648
    %v386 = vmul.f32 %v385, 1.442695
    %v387 = vpow.pop %v386
    %v388 = vadd.f32 %v387, 1.0
    %v389 = vrcp.pop %v388
    %v390 = vmul.f32 1.0, %v389
    %v391 = vtanh.pop %v384
    %v392 = vmul.f32 %v390, 0.0
    %394 = vrot.lane.b32.xlu0 %v391, 64
    %v395 = vpop.permute.xlu0 %394
    %v397 = vmul.f32 %v390, %v395
    %399 = vrot.lane.b32.xlu0 %v397, 32
    %v400 = vpop.permute.xlu0 %399
    %v402 = vadd.f32 %v392, %v400
    %v403 = vtanh.pop %v402
    %405 = vrot.lane.b32.xlu0 %v403, 64
    %v406 = vpop.permute.xlu0 %405
    %v408 = vmul.f32 %v390, %v406
    %410 = vrot.lane.b32.xlu0 %v408, 32
    %v411 = vpop.permute.xlu0 %410
    %v412 = vsel %vm310, %v411, 0
    %414 = vmatprep.subr.mxu0 0.0
    %415 = vmatpush1.msra.mxu0 0.0
    %416 = vmatprep.subr.mxu0 0.0
    %417 = vmatpush1.msra.mxu0 0.0
    %418 = vmatprep.subr.mxu0 0.0
    %419 = vmatpush1.msra.mxu0 0.0
    %420 = vmatprep.subr.mxu0 0.0
    %421 = vmatpush1.msra.mxu0 0.0
    %422 = vmatprep.subr.mxu0 0.0
    %423 = vmatpush1.msra.mxu0 0.0
    %424 = vmatprep.subr.mxu0 0.0
    %425 = vmatpush1.msra.mxu0 0.0
    %426 = vmatprep.subr.mxu0 0.0
    %427 = vmatpush1.msra.mxu0 0.0
    %428 = vmatprep.subr.mxu0 0.0
    %429 = vmatpush1.msra.mxu0 0.0
    %430 = vmatprep.subr.mxu0 0.0
    %431 = vmatpush1.msra.mxu0 0.0
    %432 = vmatprep.subr.mxu0 0.0
    %433 = vmatpush1.msra.mxu0 0.0
    %434 = vmatprep.subr.mxu0 0.0
    %435 = vmatpush1.msra.mxu0 0.0
    %436 = vmatprep.subr.mxu0 0.0
    %437 = vmatpush1.msra.mxu0 0.0
    %438 = vmatprep.subr.mxu0 0.0
    %439 = vmatpush1.msra.mxu0 %v300
    %440 = vmatprep.subr.mxu0 0.0
    %441 = vmatpush1.msra.mxu0 %v299
    %442 = vmatprep.subr.mxu0 0.0
    %443 = vmatpush1.msra.mxu0 %v298
    %444 = vmatprep.subr.mxu0 0.0
    %445 = vmatpush1.msra.mxu0 %v297
    %446 = vmatprep.subr.mxu0 0.0
    %447 = vmatpush2.msra.mxu0 0.0
    %448 = vmatprep.subr.mxu0 0.0
    %449 = vmatpush2.msra.mxu0 0.0
    %450 = vmatprep.subr.mxu0 0.0
    %451 = vmatpush2.msra.mxu0 0.0
    %452 = vmatprep.subr.mxu0 0.0
    %453 = vmatpush2.msra.mxu0 0.0
    %454 = vmatprep.subr.mxu0 0.0
    %455 = vmatpush2.msra.mxu0 0.0
    %456 = vmatprep.subr.mxu0 0.0
    %457 = vmatpush2.msra.mxu0 0.0
    %458 = vmatprep.subr.mxu0 0.0
    %459 = vmatpush2.msra.mxu0 0.0
    %460 = vmatprep.subr.mxu0 0.0
    %461 = vmatpush2.msra.mxu0 0.0
    %462 = vmatprep.subr.mxu0 0.0
    %463 = vmatpush2.msra.mxu0 0.0
    %464 = vmatprep.subr.mxu0 0.0
    %465 = vmatpush2.msra.mxu0 0.0
    %466 = vmatprep.subr.mxu0 0.0
    %467 = vmatpush2.msra.mxu0 0.0
    %468 = vmatprep.subr.mxu0 0.0
    %469 = vmatpush2.msra.mxu0 0.0
    %470 = vmatprep.subr.mxu0 0.0
    %471 = vmatpush2.msra.mxu0 0.0
    %472 = vmatprep.subr.mxu0 0.0
    %473 = vmatpush2.msra.mxu0 0.0
    %474 = vmatprep.subr.mxu0 0.0
    %475 = vmatpush2.msra.mxu0 0.0
    %476 = vmatprep.subr.mxu0 0.0
    %477 = vmatpush2.msra.mxu0 0.0
    %478 = vmatprep.mubr.f32.mxu0 0.0
    %479 = vmatmul.mubr.f32.gmra.mxu0 %v412
    %v480 = vpop.f32.mrf.mxu0
    %v481 = vadd.f32 0.0, %v480
    %v482 = vpop.f32.mrf.mxu0
    %483 = vdwg.mxu0
    %v485 = vrot.slane %v481, 6
    %v487 = vadd.f32 %v289, %v485
    %v488 = vxor.u32 %v487, 2147483648
    %v489 = vmul.f32 %v488, 1.442695
    %v490 = vpow.pop %v489
    %v491 = vadd.f32 %v490, 1.0
    %v492 = vrcp.pop %v491
    %v493 = vmul.f32 1.0, %v492
    %v494 = vtanh.pop %v487
    %v496 = vrot.slane %v402, 6
    %v498 = vmul.f32 %v493, %v496
    %500 = vrot.lane.b32.xlu0 %v494, 64
    %v501 = vpop.permute.xlu0 %500
    %v503 = vmul.f32 %v493, %v501
    %505 = vrot.lane.b32.xlu0 %v503, 32
    %v506 = vpop.permute.xlu0 %505
    %v508 = vadd.f32 %v498, %v506
    %v509 = vtanh.pop %v508
    %511 = vrot.lane.b32.xlu0 %v509, 64
    %v512 = vpop.permute.xlu0 %511
    %v514 = vmul.f32 %v493, %v512
    %515 = vmatprep.subr.mxu0 0.0
    %516 = vmatpush1.msra.mxu0 0.0
    %517 = vmatprep.subr.mxu0 0.0
    %518 = vmatpush1.msra.mxu0 0.0
    %519 = vmatprep.subr.mxu0 0.0
    %520 = vmatpush1.msra.mxu0 0.0
    %521 = vmatprep.subr.mxu0 0.0
    %522 = vmatpush1.msra.mxu0 0.0
    %523 = vmatprep.subr.mxu0 0.0
    %524 = vmatpush1.msra.mxu0 0.0
    %525 = vmatprep.subr.mxu0 0.0
    %526 = vmatpush1.msra.mxu0 0.0
    %527 = vmatprep.subr.mxu0 0.0
    %528 = vmatpush1.msra.mxu0 0.0
    %529 = vmatprep.subr.mxu0 0.0
    %530 = vmatpush1.msra.mxu0 0.0
    %531 = vmatprep.subr.mxu0 0.0
    %532 = vmatpush1.msra.mxu0 0.0
    %533 = vmatprep.subr.mxu0 0.0
    %534 = vmatpush1.msra.mxu0 0.0
    %535 = vmatprep.subr.mxu0 0.0
    %536 = vmatpush1.msra.mxu0 0.0
    %537 = vmatprep.subr.mxu0 0.0
    %538 = vmatpush1.msra.mxu0 0.0
    %539 = vmatprep.subr.mxu0 0.0
    %540 = vmatpush1.msra.mxu0 %v308
    %541 = vmatprep.subr.mxu0 0.0
    %542 = vmatpush1.msra.mxu0 %v307
    %543 = vmatprep.subr.mxu0 0.0
    %544 = vmatpush1.msra.mxu0 %v306
    %545 = vmatprep.subr.mxu0 0.0
    %546 = vmatpush1.msra.mxu0 %v305
    %547 = vmatprep.subr.mxu0 0.0
    %548 = vmatpush2.msra.mxu0 0.0
    %549 = vmatprep.subr.mxu0 0.0
    %550 = vmatpush2.msra.mxu0 0.0
    %551 = vmatprep.subr.mxu0 0.0
    %552 = vmatpush2.msra.mxu0 0.0
    %553 = vmatprep.subr.mxu0 0.0
    %554 = vmatpush2.msra.mxu0 0.0
    %555 = vmatprep.subr.mxu0 0.0
    %556 = vmatpush2.msra.mxu0 0.0
    %557 = vmatprep.subr.mxu0 0.0
    %558 = vmatpush2.msra.mxu0 0.0
    %559 = vmatprep.subr.mxu0 0.0
    %560 = vmatpush2.msra.mxu0 0.0
    %561 = vmatprep.subr.mxu0 0.0
    %562 = vmatpush2.msra.mxu0 0.0
    %563 = vmatprep.subr.mxu0 0.0
    %564 = vmatpush2.msra.mxu0 0.0
    %565 = vmatprep.subr.mxu0 0.0
    %566 = vmatpush2.msra.mxu0 0.0
    %567 = vmatprep.subr.mxu0 0.0
    %568 = vmatpush2.msra.mxu0 0.0
    %569 = vmatprep.subr.mxu0 0.0
    %570 = vmatpush2.msra.mxu0 0.0
    %571 = vmatprep.subr.mxu0 0.0
    %572 = vmatpush2.msra.mxu0 0.0
    %573 = vmatprep.subr.mxu0 0.0
    %574 = vmatpush2.msra.mxu0 0.0
    %575 = vmatprep.subr.mxu0 0.0
    %576 = vmatpush2.msra.mxu0 0.0
    %577 = vmatprep.subr.mxu0 0.0
    %578 = vmatpush2.msra.mxu0 0.0
    %579 = vmatprep.mubr.f32.mxu0 0.0
    %580 = vmatmul.mubr.f32.gmra.mxu0 %v312
    %v581 = vpop.f32.mrf.mxu0
    %v582 = vadd.f32 0.0, %v581
    %v583 = vpop.f32.mrf.mxu0
    %584 = vdwg.mxu0
    %585 = vmatprep.subr.mxu0 0.0
    %586 = vmatpush1.msra.mxu0 0.0
    %587 = vmatprep.subr.mxu0 0.0
    %588 = vmatpush1.msra.mxu0 0.0
    %589 = vmatprep.subr.mxu0 0.0
    %590 = vmatpush1.msra.mxu0 0.0
    %591 = vmatprep.subr.mxu0 0.0
    %592 = vmatpush1.msra.mxu0 0.0
    %593 = vmatprep.subr.mxu0 0.0
    %594 = vmatpush1.msra.mxu0 0.0
    %595 = vmatprep.subr.mxu0 0.0
    %596 = vmatpush1.msra.mxu0 0.0
    %597 = vmatprep.subr.mxu0 0.0
    %598 = vmatpush1.msra.mxu0 0.0
    %599 = vmatprep.subr.mxu0 0.0
    %600 = vmatpush1.msra.mxu0 0.0
    %601 = vmatprep.subr.mxu0 0.0
    %602 = vmatpush1.msra.mxu0 0.0
    %603 = vmatprep.subr.mxu0 0.0
    %604 = vmatpush1.msra.mxu0 0.0
    %605 = vmatprep.subr.mxu0 0.0
    %606 = vmatpush1.msra.mxu0 0.0
    %607 = vmatprep.subr.mxu0 0.0
    %608 = vmatpush1.msra.mxu0 0.0
    %609 = vmatprep.subr.mxu0 0.0
    %610 = vmatpush1.msra.mxu0 %v304
    %611 = vmatprep.subr.mxu0 0.0
    %612 = vmatpush1.msra.mxu0 %v303
    %613 = vmatprep.subr.mxu0 0.0
    %614 = vmatpush1.msra.mxu0 %v302
    %615 = vmatprep.subr.mxu0 0.0
    %616 = vmatpush1.msra.mxu0 %v301
    %617 = vmatprep.subr.mxu0 0.0
    %618 = vmatpush2.msra.mxu0 0.0
    %619 = vmatprep.subr.mxu0 0.0
    %620 = vmatpush2.msra.mxu0 0.0
    %621 = vmatprep.subr.mxu0 0.0
    %622 = vmatpush2.msra.mxu0 0.0
    %623 = vmatprep.subr.mxu0 0.0
    %624 = vmatpush2.msra.mxu0 0.0
    %625 = vmatprep.subr.mxu0 0.0
    %626 = vmatpush2.msra.mxu0 0.0
    %627 = vmatprep.subr.mxu0 0.0
    %628 = vmatpush2.msra.mxu0 0.0
    %629 = vmatprep.subr.mxu0 0.0
    %630 = vmatpush2.msra.mxu0 0.0
    %631 = vmatprep.subr.mxu0 0.0
    %632 = vmatpush2.msra.mxu0 0.0
    %633 = vmatprep.subr.mxu0 0.0
    %634 = vmatpush2.msra.mxu0 0.0
    %635 = vmatprep.subr.mxu0 0.0
    %636 = vmatpush2.msra.mxu0 0.0
    %637 = vmatprep.subr.mxu0 0.0
    %638 = vmatpush2.msra.mxu0 0.0
    %639 = vmatprep.subr.mxu0 0.0
    %640 = vmatpush2.msra.mxu0 0.0
    %641 = vmatprep.subr.mxu0 0.0
    %642 = vmatpush2.msra.mxu0 0.0
    %643 = vmatprep.subr.mxu0 0.0
    %644 = vmatpush2.msra.mxu0 0.0
    %645 = vmatprep.subr.mxu0 0.0
    %646 = vmatpush2.msra.mxu0 0.0
    %647 = vmatprep.subr.mxu0 0.0
    %648 = vmatpush2.msra.mxu0 0.0
    %649 = vmatprep.mubr.f32.mxu0 0.0
    %650 = vmatmul.mubr.f32.gmra.mxu0 %v412
    %v651 = vpop.f32.mrf.mxu0
    %v652 = vadd.f32 %v582, %v651
    %v653 = vpop.f32.mrf.mxu0
    %654 = vdwg.mxu0
    %v656 = vlaneseq
    %v657 = vshrl.u32 %v656, 7
    %v658 = vsub.s32 0, %v657
    %v659 = vrot.slane %v309, %v658
    %v661 = vadd.f32 %v652, %v659
    %v662 = vxor.u32 %v661, 2147483648
    %v663 = vmul.f32 %v662, 1.442695
    %v664 = vpow.pop %v663
    %v665 = vadd.f32 %v664, 1.0
    %v666 = vrcp.pop %v665
    %v667 = vmul.f32 1.0, %v666
    %v668 = vtanh.pop %v661
    %v669 = vmul.f32 %v667, 0.0
    %671 = vrot.lane.b32.xlu0 %v668, 64
    %v672 = vpop.permute.xlu0 %671
    %v674 = vmul.f32 %v667, %v672
    %676 = vrot.lane.b32.xlu0 %v674, 32
    %v677 = vpop.permute.xlu0 %676
    %v679 = vadd.f32 %v669, %v677
    %v680 = vtanh.pop %v679
    %682 = vrot.lane.b32.xlu0 %v680, 64
    %v683 = vpop.permute.xlu0 %682
    %v685 = vmul.f32 %v667, %v683
    %v687 = vrot.slane %v514, 2
    %688 = vrot.lane.b32.xlu0 %v687, 32
    %v689 = vpop.permute.xlu0 %688
    %v690 = vsel %vm310, %v689, 0
    %692 = vmatprep.subr.mxu0 0.0
    %693 = vmatpush1.msra.mxu0 0.0
    %694 = vmatprep.subr.mxu0 0.0
    %695 = vmatpush1.msra.mxu0 0.0
    %696 = vmatprep.subr.mxu0 0.0
    %697 = vmatpush1.msra.mxu0 0.0
    %698 = vmatprep.subr.mxu0 0.0
    %699 = vmatpush1.msra.mxu0 0.0
    %700 = vmatprep.subr.mxu0 0.0
    %701 = vmatpush1.msra.mxu0 0.0
    %702 = vmatprep.subr.mxu0 0.0
    %703 = vmatpush1.msra.mxu0 0.0
    %704 = vmatprep.subr.mxu0 0.0
    %705 = vmatpush1.msra.mxu0 0.0
    %706 = vmatprep.subr.mxu0 0.0
    %707 = vmatpush1.msra.mxu0 0.0
    %708 = vmatprep.subr.mxu0 0.0
    %709 = vmatpush1.msra.mxu0 0.0
    %710 = vmatprep.subr.mxu0 0.0
    %711 = vmatpush1.msra.mxu0 0.0
    %712 = vmatprep.subr.mxu0 0.0
    %713 = vmatpush1.msra.mxu0 0.0
    %714 = vmatprep.subr.mxu0 0.0
    %715 = vmatpush1.msra.mxu0 0.0
    %716 = vmatprep.subr.mxu0 0.0
    %717 = vmatpush1.msra.mxu0 %v300
    %718 = vmatprep.subr.mxu0 0.0
    %719 = vmatpush1.msra.mxu0 %v299
    %720 = vmatprep.subr.mxu0 0.0
    %721 = vmatpush1.msra.mxu0 %v298
    %722 = vmatprep.subr.mxu0 0.0
    %723 = vmatpush1.msra.mxu0 %v297
    %724 = vmatprep.subr.mxu0 0.0
    %725 = vmatpush2.msra.mxu0 0.0
    %726 = vmatprep.subr.mxu0 0.0
    %727 = vmatpush2.msra.mxu0 0.0
    %728 = vmatprep.subr.mxu0 0.0
    %729 = vmatpush2.msra.mxu0 0.0
    %730 = vmatprep.subr.mxu0 0.0
    %731 = vmatpush2.msra.mxu0 0.0
    %732 = vmatprep.subr.mxu0 0.0
    %733 = vmatpush2.msra.mxu0 0.0
    %734 = vmatprep.subr.mxu0 0.0
    %735 = vmatpush2.msra.mxu0 0.0
    %736 = vmatprep.subr.mxu0 0.0
    %737 = vmatpush2.msra.mxu0 0.0
    %738 = vmatprep.subr.mxu0 0.0
    %739 = vmatpush2.msra.mxu0 0.0
    %740 = vmatprep.subr.mxu0 0.0
    %741 = vmatpush2.msra.mxu0 0.0
    %742 = vmatprep.subr.mxu0 0.0
    %743 = vmatpush2.msra.mxu0 0.0
    %744 = vmatprep.subr.mxu0 0.0
    %745 = vmatpush2.msra.mxu0 0.0
    %746 = vmatprep.subr.mxu0 0.0
    %747 = vmatpush2.msra.mxu0 0.0
    %748 = vmatprep.subr.mxu0 0.0
    %749 = vmatpush2.msra.mxu0 0.0
    %750 = vmatprep.subr.mxu0 0.0
    %751 = vmatpush2.msra.mxu0 0.0
    %752 = vmatprep.subr.mxu0 0.0
    %753 = vmatpush2.msra.mxu0 0.0
    %754 = vmatprep.subr.mxu0 0.0
    %755 = vmatpush2.msra.mxu0 0.0
    %756 = vmatprep.mubr.f32.mxu0 0.0
    %757 = vmatmul.mubr.f32.gmra.mxu0 %v690
    %v758 = vpop.f32.mrf.mxu0
    %v759 = vadd.f32 0.0, %v758
    %v760 = vpop.f32.mrf.mxu0
    %761 = vdwg.mxu0
    %v763 = vrot.slane %v759, 4
    %v765 = vadd.f32 %v289, %v763
    %v766 = vxor.u32 %v765, 2147483648
    %v767 = vmul.f32 %v766, 1.442695
    %v768 = vpow.pop %v767
    %v769 = vadd.f32 %v768, 1.0
    %v770 = vrcp.pop %v769
    %v771 = vmul.f32 1.0, %v770
    %v772 = vtanh.pop %v765
    %v774 = vrot.slane %v508, 6
    %v776 = vmul.f32 %v771, %v774
    %778 = vrot.lane.b32.xlu0 %v772, 64
    %v779 = vpop.permute.xlu0 %778
    %v781 = vmul.f32 %v771, %v779
    %783 = vrot.lane.b32.xlu0 %v781, 32
    %v784 = vpop.permute.xlu0 %783
    %v786 = vadd.f32 %v776, %v784
    %v787 = vtanh.pop %v786
    %789 = vrot.lane.b32.xlu0 %v787, 64
    %v790 = vpop.permute.xlu0 %789
    %v792 = vmul.f32 %v771, %v790
    %794 = vrot.lane.b32.xlu0 %v685, 32
    %v795 = vpop.permute.xlu0 %794
    %v796 = vsel %vm310, %v795, 0
    %798 = vmatprep.subr.mxu0 0.0
    %799 = vmatpush1.msra.mxu0 0.0
    %800 = vmatprep.subr.mxu0 0.0
    %801 = vmatpush1.msra.mxu0 0.0
    %802 = vmatprep.subr.mxu0 0.0
    %803 = vmatpush1.msra.mxu0 0.0
    %804 = vmatprep.subr.mxu0 0.0
    %805 = vmatpush1.msra.mxu0 0.0
    %806 = vmatprep.subr.mxu0 0.0
    %807 = vmatpush1.msra.mxu0 0.0
    %808 = vmatprep.subr.mxu0 0.0
    %809 = vmatpush1.msra.mxu0 0.0
    %810 = vmatprep.subr.mxu0 0.0
    %811 = vmatpush1.msra.mxu0 0.0
    %812 = vmatprep.subr.mxu0 0.0
    %813 = vmatpush1.msra.mxu0 0.0
    %814 = vmatprep.subr.mxu0 0.0
    %815 = vmatpush1.msra.mxu0 0.0
    %816 = vmatprep.subr.mxu0 0.0
    %817 = vmatpush1.msra.mxu0 0.0
    %818 = vmatprep.subr.mxu0 0.0
    %819 = vmatpush1.msra.mxu0 0.0
    %820 = vmatprep.subr.mxu0 0.0
    %821 = vmatpush1.msra.mxu0 0.0
    %822 = vmatprep.subr.mxu0 0.0
    %823 = vmatpush1.msra.mxu0 %v308
    %824 = vmatprep.subr.mxu0 0.0
    %825 = vmatpush1.msra.mxu0 %v307
    %826 = vmatprep.subr.mxu0 0.0
    %827 = vmatpush1.msra.mxu0 %v306
    %828 = vmatprep.subr.mxu0 0.0
    %829 = vmatpush1.msra.mxu0 %v305
    %830 = vmatprep.subr.mxu0 0.0
    %831 = vmatpush2.msra.mxu0 0.0
    %832 = vmatprep.subr.mxu0 0.0
    %833 = vmatpush2.msra.mxu0 0.0
    %834 = vmatprep.subr.mxu0 0.0
    %835 = vmatpush2.msra.mxu0 0.0
    %836 = vmatprep.subr.mxu0 0.0
    %837 = vmatpush2.msra.mxu0 0.0
    %838 = vmatprep.subr.mxu0 0.0
    %839 = vmatpush2.msra.mxu0 0.0
    %840 = vmatprep.subr.mxu0 0.0
    %841 = vmatpush2.msra.mxu0 0.0
    %842 = vmatprep.subr.mxu0 0.0
    %843 = vmatpush2.msra.mxu0 0.0
    %844 = vmatprep.subr.mxu0 0.0
    %845 = vmatpush2.msra.mxu0 0.0
    %846 = vmatprep.subr.mxu0 0.0
    %847 = vmatpush2.msra.mxu0 0.0
    %848 = vmatprep.subr.mxu0 0.0
    %849 = vmatpush2.msra.mxu0 0.0
    %850 = vmatprep.subr.mxu0 0.0
    %851 = vmatpush2.msra.mxu0 0.0
    %852 = vmatprep.subr.mxu0 0.0
    %853 = vmatpush2.msra.mxu0 0.0
    %854 = vmatprep.subr.mxu0 0.0
    %855 = vmatpush2.msra.mxu0 0.0
    %856 = vmatprep.subr.mxu0 0.0
    %857 = vmatpush2.msra.mxu0 0.0
    %858 = vmatprep.subr.mxu0 0.0
    %859 = vmatpush2.msra.mxu0 0.0
    %860 = vmatprep.subr.mxu0 0.0
    %861 = vmatpush2.msra.mxu0 0.0
    %862 = vmatprep.mubr.f32.mxu0 0.0
    %863 = vmatmul.mubr.f32.gmra.mxu0 %v796
    %v864 = vpop.f32.mrf.mxu0
    %v865 = vadd.f32 0.0, %v864
    %v866 = vpop.f32.mrf.mxu0
    %867 = vdwg.mxu0
    %868 = vmatprep.subr.mxu0 0.0
    %869 = vmatpush1.msra.mxu0 0.0
    %870 = vmatprep.subr.mxu0 0.0
    %871 = vmatpush1.msra.mxu0 0.0
    %872 = vmatprep.subr.mxu0 0.0
    %873 = vmatpush1.msra.mxu0 0.0
    %874 = vmatprep.subr.mxu0 0.0
    %875 = vmatpush1.msra.mxu0 0.0
    %876 = vmatprep.subr.mxu0 0.0
    %877 = vmatpush1.msra.mxu0 0.0
    %878 = vmatprep.subr.mxu0 0.0
    %879 = vmatpush1.msra.mxu0 0.0
    %880 = vmatprep.subr.mxu0 0.0
    %881 = vmatpush1.msra.mxu0 0.0
    %882 = vmatprep.subr.mxu0 0.0
    %883 = vmatpush1.msra.mxu0 0.0
    %884 = vmatprep.subr.mxu0 0.0
    %885 = vmatpush1.msra.mxu0 0.0
    %886 = vmatprep.subr.mxu0 0.0
    %887 = vmatpush1.msra.mxu0 0.0
    %888 = vmatprep.subr.mxu0 0.0
    %889 = vmatpush1.msra.mxu0 0.0
    %890 = vmatprep.subr.mxu0 0.0
    %891 = vmatpush1.msra.mxu0 0.0
    %892 = vmatprep.subr.mxu0 0.0
    %893 = vmatpush1.msra.mxu0 %v304
    %894 = vmatprep.subr.mxu0 0.0
    %895 = vmatpush1.msra.mxu0 %v303
    %896 = vmatprep.subr.mxu0 0.0
    %897 = vmatpush1.msra.mxu0 %v302
    %898 = vmatprep.subr.mxu0 0.0
    %899 = vmatpush1.msra.mxu0 %v301
    %900 = vmatprep.subr.mxu0 0.0
    %901 = vmatpush2.msra.mxu0 0.0
    %902 = vmatprep.subr.mxu0 0.0
    %903 = vmatpush2.msra.mxu0 0.0
    %904 = vmatprep.subr.mxu0 0.0
    %905 = vmatpush2.msra.mxu0 0.0
    %906 = vmatprep.subr.mxu0 0.0
    %907 = vmatpush2.msra.mxu0 0.0
    %908 = vmatprep.subr.mxu0 0.0
    %909 = vmatpush2.msra.mxu0 0.0
    %910 = vmatprep.subr.mxu0 0.0
    %911 = vmatpush2.msra.mxu0 0.0
    %912 = vmatprep.subr.mxu0 0.0
    %913 = vmatpush2.msra.mxu0 0.0
    %914 = vmatprep.subr.mxu0 0.0
    %915 = vmatpush2.msra.mxu0 0.0
    %916 = vmatprep.subr.mxu0 0.0
    %917 = vmatpush2.msra.mxu0 0.0
    %918 = vmatprep.subr.mxu0 0.0
    %919 = vmatpush2.msra.mxu0 0.0
    %920 = vmatprep.subr.mxu0 0.0
    %921 = vmatpush2.msra.mxu0 0.0
    %922 = vmatprep.subr.mxu0 0.0
    %923 = vmatpush2.msra.mxu0 0.0
    %924 = vmatprep.subr.mxu0 0.0
    %925 = vmatpush2.msra.mxu0 0.0
    %926 = vmatprep.subr.mxu0 0.0
    %927 = vmatpush2.msra.mxu0 0.0
    %928 = vmatprep.subr.mxu0 0.0
    %929 = vmatpush2.msra.mxu0 0.0
    %930 = vmatprep.subr.mxu0 0.0
    %931 = vmatpush2.msra.mxu0 0.0
    %932 = vmatprep.mubr.f32.mxu0 0.0
    %933 = vmatmul.mubr.f32.gmra.mxu0 %v690
    %v934 = vpop.f32.mrf.mxu0
    %v935 = vadd.f32 %v865, %v934
    %v936 = vpop.f32.mrf.mxu0
    %937 = vdwg.mxu0
    %v938 = vadd.f32 %v935, %v659
    %v939 = vxor.u32 %v938, 2147483648
    %v940 = vmul.f32 %v939, 1.442695
    %v941 = vpow.pop %v940
    %v942 = vadd.f32 %v941, 1.0
    %v943 = vrcp.pop %v942
    %v944 = vmul.f32 1.0, %v943
    %v945 = vtanh.pop %v938
    %v946 = vmul.f32 %v944, %v679
    %948 = vrot.lane.b32.xlu0 %v945, 64
    %v949 = vpop.permute.xlu0 %948
    %v951 = vmul.f32 %v944, %v949
    %953 = vrot.lane.b32.xlu0 %v951, 32
    %v954 = vpop.permute.xlu0 %953
    %v956 = vadd.f32 %v946, %v954
    %v957 = vtanh.pop %v956
    %959 = vrot.lane.b32.xlu0 %v957, 64
    %v960 = vpop.permute.xlu0 %959
    %v962 = vmul.f32 %v944, %v960
    %v964 = vrot.slane %v792, 4
    %965 = vrot.lane.b32.xlu0 %v964, 32
    %v966 = vpop.permute.xlu0 %965
    %v967 = vsel %vm310, %v966, 0
    %969 = vmatprep.subr.mxu0 0.0
    %970 = vmatpush1.msra.mxu0 0.0
    %971 = vmatprep.subr.mxu0 0.0
    %972 = vmatpush1.msra.mxu0 0.0
    %973 = vmatprep.subr.mxu0 0.0
    %974 = vmatpush1.msra.mxu0 0.0
    %975 = vmatprep.subr.mxu0 0.0
    %976 = vmatpush1.msra.mxu0 0.0
    %977 = vmatprep.subr.mxu0 0.0
    %978 = vmatpush1.msra.mxu0 0.0
    %979 = vmatprep.subr.mxu0 0.0
    %980 = vmatpush1.msra.mxu0 0.0
    %981 = vmatprep.subr.mxu0 0.0
    %982 = vmatpush1.msra.mxu0 0.0
    %983 = vmatprep.subr.mxu0 0.0
    %984 = vmatpush1.msra.mxu0 0.0
    %985 = vmatprep.subr.mxu0 0.0
    %986 = vmatpush1.msra.mxu0 0.0
    %987 = vmatprep.subr.mxu0 0.0
    %988 = vmatpush1.msra.mxu0 0.0
    %989 = vmatprep.subr.mxu0 0.0
    %990 = vmatpush1.msra.mxu0 0.0
    %991 = vmatprep.subr.mxu0 0.0
    %992 = vmatpush1.msra.mxu0 0.0
    %993 = vmatprep.subr.mxu0 0.0
    %994 = vmatpush1.msra.mxu0 %v300
    %995 = vmatprep.subr.mxu0 0.0
    %996 = vmatpush1.msra.mxu0 %v299
    %997 = vmatprep.subr.mxu0 0.0
    %998 = vmatpush1.msra.mxu0 %v298
    %999 = vmatprep.subr.mxu0 0.0
    %1000 = vmatpush1.msra.mxu0 %v297
    %1001 = vmatprep.subr.mxu0 0.0
    %1002 = vmatpush2.msra.mxu0 0.0
    %1003 = vmatprep.subr.mxu0 0.0
    %1004 = vmatpush2.msra.mxu0 0.0
    %1005 = vmatprep.subr.mxu0 0.0
    %1006 = vmatpush2.msra.mxu0 0.0
    %1007 = vmatprep.subr.mxu0 0.0
    %1008 = vmatpush2.msra.mxu0 0.0
    %1009 = vmatprep.subr.mxu0 0.0
    %1010 = vmatpush2.msra.mxu0 0.0
    %1011 = vmatprep.subr.mxu0 0.0
    %1012 = vmatpush2.msra.mxu0 0.0
    %1013 = vmatprep.subr.mxu0 0.0
    %1014 = vmatpush2.msra.mxu0 0.0
    %1015 = vmatprep.subr.mxu0 0.0
    %1016 = vmatpush2.msra.mxu0 0.0
    %1017 = vmatprep.subr.mxu0 0.0
    %1018 = vmatpush2.msra.mxu0 0.0
    %1019 = vmatprep.subr.mxu0 0.0
    %1020 = vmatpush2.msra.mxu0 0.0
    %1021 = vmatprep.subr.mxu0 0.0
    %1022 = vmatpush2.msra.mxu0 0.0
    %1023 = vmatprep.subr.mxu0 0.0
    %1024 = vmatpush2.msra.mxu0 0.0
    %1025 = vmatprep.subr.mxu0 0.0
    %1026 = vmatpush2.msra.mxu0 0.0
    %1027 = vmatprep.subr.mxu0 0.0
    %1028 = vmatpush2.msra.mxu0 0.0
    %1029 = vmatprep.subr.mxu0 0.0
    %1030 = vmatpush2.msra.mxu0 0.0
    %1031 = vmatprep.subr.mxu0 0.0
    %1032 = vmatpush2.msra.mxu0 0.0
    %1033 = vmatprep.mubr.f32.mxu0 0.0
    %1034 = vmatmul.mubr.f32.gmra.mxu0 %v967
    %v1035 = vpop.f32.mrf.mxu0
    %v1036 = vadd.f32 0.0, %v1035
    %v1037 = vpop.f32.mrf.mxu0
    %1038 = vdwg.mxu0
    %v1040 = vrot.slane %v1036, 2
    %v1042 = vadd.f32 %v289, %v1040
    %v1043 = vxor.u32 %v1042, 2147483648
    %v1044 = vmul.f32 %v1043, 1.442695
    %v1045 = vpow.pop %v1044
    %v1046 = vadd.f32 %v1045, 1.0
    %v1047 = vrcp.pop %v1046
    %v1048 = vmul.f32 1.0, %v1047
    %v1049 = vtanh.pop %v1042
    %v1051 = vrot.slane %v786, 6
    %v1053 = vmul.f32 %v1048, %v1051
    %1055 = vrot.lane.b32.xlu0 %v1049, 64
    %v1056 = vpop.permute.xlu0 %1055
    %v1058 = vmul.f32 %v1048, %v1056
    %1060 = vrot.lane.b32.xlu0 %v1058, 32
    %v1061 = vpop.permute.xlu0 %1060
    %v1063 = vadd.f32 %v1053, %v1061
    %v1064 = vtanh.pop %v1063
    %1066 = vrot.lane.b32.xlu0 %v1064, 64
    %v1067 = vpop.permute.xlu0 %1066
    %v1069 = vmul.f32 %v1048, %v1067
    %1071 = vrot.lane.b32.xlu0 %v962, 32
    %v1072 = vpop.permute.xlu0 %1071
    %v1073 = vsel %vm310, %v1072, 0
    %1075 = vmatprep.subr.mxu0 0.0
    %1076 = vmatpush1.msra.mxu0 0.0
    %1077 = vmatprep.subr.mxu0 0.0
    %1078 = vmatpush1.msra.mxu0 0.0
    %1079 = vmatprep.subr.mxu0 0.0
    %1080 = vmatpush1.msra.mxu0 0.0
    %1081 = vmatprep.subr.mxu0 0.0
    %1082 = vmatpush1.msra.mxu0 0.0
    %1083 = vmatprep.subr.mxu0 0.0
    %1084 = vmatpush1.msra.mxu0 0.0
    %1085 = vmatprep.subr.mxu0 0.0
    %1086 = vmatpush1.msra.mxu0 0.0
    %1087 = vmatprep.subr.mxu0 0.0
    %1088 = vmatpush1.msra.mxu0 0.0
    %1089 = vmatprep.subr.mxu0 0.0
    %1090 = vmatpush1.msra.mxu0 0.0
    %1091 = vmatprep.subr.mxu0 0.0
    %1092 = vmatpush1.msra.mxu0 0.0
    %1093 = vmatprep.subr.mxu0 0.0
    %1094 = vmatpush1.msra.mxu0 0.0
    %1095 = vmatprep.subr.mxu0 0.0
    %1096 = vmatpush1.msra.mxu0 0.0
    %1097 = vmatprep.subr.mxu0 0.0
    %1098 = vmatpush1.msra.mxu0 0.0
    %1099 = vmatprep.subr.mxu0 0.0
    %1100 = vmatpush1.msra.mxu0 %v308
    %1101 = vmatprep.subr.mxu0 0.0
    %1102 = vmatpush1.msra.mxu0 %v307
    %1103 = vmatprep.subr.mxu0 0.0
    %1104 = vmatpush1.msra.mxu0 %v306
    %1105 = vmatprep.subr.mxu0 0.0
    %1106 = vmatpush1.msra.mxu0 %v305
    %1107 = vmatprep.subr.mxu0 0.0
    %1108 = vmatpush2.msra.mxu0 0.0
    %1109 = vmatprep.subr.mxu0 0.0
    %1110 = vmatpush2.msra.mxu0 0.0
    %1111 = vmatprep.subr.mxu0 0.0
    %1112 = vmatpush2.msra.mxu0 0.0
    %1113 = vmatprep.subr.mxu0 0.0
    %1114 = vmatpush2.msra.mxu0 0.0
    %1115 = vmatprep.subr.mxu0 0.0
    %1116 = vmatpush2.msra.mxu0 0.0
    %1117 = vmatprep.subr.mxu0 0.0
    %1118 = vmatpush2.msra.mxu0 0.0
    %1119 = vmatprep.subr.mxu0 0.0
    %1120 = vmatpush2.msra.mxu0 0.0
    %1121 = vmatprep.subr.mxu0 0.0
    %1122 = vmatpush2.msra.mxu0 0.0
    %1123 = vmatprep.subr.mxu0 0.0
    %1124 = vmatpush2.msra.mxu0 0.0
    %1125 = vmatprep.subr.mxu0 0.0
    %1126 = vmatpush2.msra.mxu0 0.0
    %1127 = vmatprep.subr.mxu0 0.0
    %1128 = vmatpush2.msra.mxu0 0.0
    %1129 = vmatprep.subr.mxu0 0.0
    %1130 = vmatpush2.msra.mxu0 0.0
    %1131 = vmatprep.subr.mxu0 0.0
    %1132 = vmatpush2.msra.mxu0 0.0
    %1133 = vmatprep.subr.mxu0 0.0
    %1134 = vmatpush2.msra.mxu0 0.0
    %1135 = vmatprep.subr.mxu0 0.0
    %1136 = vmatpush2.msra.mxu0 0.0
    %1137 = vmatprep.subr.mxu0 0.0
    %1138 = vmatpush2.msra.mxu0 0.0
    %1139 = vmatprep.mubr.f32.mxu0 0.0
    %1140 = vmatmul.mubr.f32.gmra.mxu0 %v1073
    %v1141 = vpop.f32.mrf.mxu0
    %v1142 = vadd.f32 0.0, %v1141
    %v1143 = vpop.f32.mrf.mxu0
    %1144 = vdwg.mxu0
    %1145 = vmatprep.subr.mxu0 0.0
    %1146 = vmatpush1.msra.mxu0 0.0
    %1147 = vmatprep.subr.mxu0 0.0
    %1148 = vmatpush1.msra.mxu0 0.0
    %1149 = vmatprep.subr.mxu0 0.0
    %1150 = vmatpush1.msra.mxu0 0.0
    %1151 = vmatprep.subr.mxu0 0.0
    %1152 = vmatpush1.msra.mxu0 0.0
    %1153 = vmatprep.subr.mxu0 0.0
    %1154 = vmatpush1.msra.mxu0 0.0
    %1155 = vmatprep.subr.mxu0 0.0
    %1156 = vmatpush1.msra.mxu0 0.0
    %1157 = vmatprep.subr.mxu0 0.0
    %1158 = vmatpush1.msra.mxu0 0.0
    %1159 = vmatprep.subr.mxu0 0.0
    %1160 = vmatpush1.msra.mxu0 0.0
    %1161 = vmatprep.subr.mxu0 0.0
    %1162 = vmatpush1.msra.mxu0 0.0
    %1163 = vmatprep.subr.mxu0 0.0
    %1164 = vmatpush1.msra.mxu0 0.0
    %1165 = vmatprep.subr.mxu0 0.0
    %1166 = vmatpush1.msra.mxu0 0.0
    %1167 = vmatprep.subr.mxu0 0.0
    %1168 = vmatpush1.msra.mxu0 0.0
    %1169 = vmatprep.subr.mxu0 0.0
    %1170 = vmatpush1.msra.mxu0 %v304
    %1171 = vmatprep.subr.mxu0 0.0
    %1172 = vmatpush1.msra.mxu0 %v303
    %1173 = vmatprep.subr.mxu0 0.0
    %1174 = vmatpush1.msra.mxu0 %v302
    %1175 = vmatprep.subr.mxu0 0.0
    %1176 = vmatpush1.msra.mxu0 %v301
    %1177 = vmatprep.subr.mxu0 0.0
    %1178 = vmatpush2.msra.mxu0 0.0
    %1179 = vmatprep.subr.mxu0 0.0
    %1180 = vmatpush2.msra.mxu0 0.0
    %1181 = vmatprep.subr.mxu0 0.0
    %1182 = vmatpush2.msra.mxu0 0.0
    %1183 = vmatprep.subr.mxu0 0.0
    %1184 = vmatpush2.msra.mxu0 0.0
    %1185 = vmatprep.subr.mxu0 0.0
    %1186 = vmatpush2.msra.mxu0 0.0
    %1187 = vmatprep.subr.mxu0 0.0
    %1188 = vmatpush2.msra.mxu0 0.0
    %1189 = vmatprep.subr.mxu0 0.0
    %1190 = vmatpush2.msra.mxu0 0.0
    %1191 = vmatprep.subr.mxu0 0.0
    %1192 = vmatpush2.msra.mxu0 0.0
    %1193 = vmatprep.subr.mxu0 0.0
    %1194 = vmatpush2.msra.mxu0 0.0
    %1195 = vmatprep.subr.mxu0 0.0
    %1196 = vmatpush2.msra.mxu0 0.0
    %1197 = vmatprep.subr.mxu0 0.0
    %1198 = vmatpush2.msra.mxu0 0.0
    %1199 = vmatprep.subr.mxu0 0.0
    %1200 = vmatpush2.msra.mxu0 0.0
    %1201 = vmatprep.subr.mxu0 0.0
    %1202 = vmatpush2.msra.mxu0 0.0
    %1203 = vmatprep.subr.mxu0 0.0
    %1204 = vmatpush2.msra.mxu0 0.0
    %1205 = vmatprep.subr.mxu0 0.0
    %1206 = vmatpush2.msra.mxu0 0.0
    %1207 = vmatprep.subr.mxu0 0.0
    %1208 = vmatpush2.msra.mxu0 0.0
    %1209 = vmatprep.mubr.f32.mxu0 0.0
    %1210 = vmatmul.mubr.f32.gmra.mxu0 %v967
    %v1211 = vpop.f32.mrf.mxu0
    %v1212 = vadd.f32 %v1142, %v1211
    %v1213 = vpop.f32.mrf.mxu0
    %1214 = vdwg.mxu0
    %v1215 = vadd.f32 %v1212, %v659
    %v1216 = vxor.u32 %v1215, 2147483648
    %v1217 = vmul.f32 %v1216, 1.442695
    %v1218 = vpow.pop %v1217
    %v1219 = vadd.f32 %v1218, 1.0
    %v1220 = vrcp.pop %v1219
    %v1221 = vmul.f32 1.0, %v1220
    %v1222 = vtanh.pop %v1215
    %v1223 = vmul.f32 %v1221, %v956
    %1225 = vrot.lane.b32.xlu0 %v1222, 64
    %v1226 = vpop.permute.xlu0 %1225
    %v1228 = vmul.f32 %v1221, %v1226
    %1230 = vrot.lane.b32.xlu0 %v1228, 32
    %v1231 = vpop.permute.xlu0 %1230
    %v1233 = vadd.f32 %v1223, %v1231
    %v1234 = vtanh.pop %v1233
    %1236 = vrot.lane.b32.xlu0 %v1234, 64
    %v1237 = vpop.permute.xlu0 %1236
    %v1239 = vmul.f32 %v1221, %v1237
    %v1241 = vrot.slane %v1069, 6
    %1242 = vrot.lane.b32.xlu0 %v1241, 32
    %v1243 = vpop.permute.xlu0 %1242
    %v1244 = vsel %vm310, %v1243, 0
    %1246 = vmatprep.subr.mxu0 0.0
    %1247 = vmatpush1.msra.mxu0 0.0
    %1248 = vmatprep.subr.mxu0 0.0
    %1249 = vmatpush1.msra.mxu0 0.0
    %1250 = vmatprep.subr.mxu0 0.0
    %1251 = vmatpush1.msra.mxu0 0.0
    %1252 = vmatprep.subr.mxu0 0.0
    %1253 = vmatpush1.msra.mxu0 0.0
    %1254 = vmatprep.subr.mxu0 0.0
    %1255 = vmatpush1.msra.mxu0 0.0
    %1256 = vmatprep.subr.mxu0 0.0
    %1257 = vmatpush1.msra.mxu0 0.0
    %1258 = vmatprep.subr.mxu0 0.0
    %1259 = vmatpush1.msra.mxu0 0.0
    %1260 = vmatprep.subr.mxu0 0.0
    %1261 = vmatpush1.msra.mxu0 0.0
    %1262 = vmatprep.subr.mxu0 0.0
    %1263 = vmatpush1.msra.mxu0 0.0
    %1264 = vmatprep.subr.mxu0 0.0
    %1265 = vmatpush1.msra.mxu0 0.0
    %1266 = vmatprep.subr.mxu0 0.0
    %1267 = vmatpush1.msra.mxu0 0.0
    %1268 = vmatprep.subr.mxu0 0.0
    %1269 = vmatpush1.msra.mxu0 0.0
    %1270 = vmatprep.subr.mxu0 0.0
    %1271 = vmatpush1.msra.mxu0 %v300
    %1272 = vmatprep.subr.mxu0 0.0
    %1273 = vmatpush1.msra.mxu0 %v299
    %1274 = vmatprep.subr.mxu0 0.0
    %1275 = vmatpush1.msra.mxu0 %v298
    %1276 = vmatprep.subr.mxu0 0.0
    %1277 = vmatpush1.msra.mxu0 %v297
    %1278 = vmatprep.subr.mxu0 0.0
    %1279 = vmatpush2.msra.mxu0 0.0
    %1280 = vmatprep.subr.mxu0 0.0
    %1281 = vmatpush2.msra.mxu0 0.0
    %1282 = vmatprep.subr.mxu0 0.0
    %1283 = vmatpush2.msra.mxu0 0.0
    %1284 = vmatprep.subr.mxu0 0.0
    %1285 = vmatpush2.msra.mxu0 0.0
    %1286 = vmatprep.subr.mxu0 0.0
    %1287 = vmatpush2.msra.mxu0 0.0
    %1288 = vmatprep.subr.mxu0 0.0
    %1289 = vmatpush2.msra.mxu0 0.0
    %1290 = vmatprep.subr.mxu0 0.0
    %1291 = vmatpush2.msra.mxu0 0.0
    %1292 = vmatprep.subr.mxu0 0.0
    %1293 = vmatpush2.msra.mxu0 0.0
    %1294 = vmatprep.subr.mxu0 0.0
    %1295 = vmatpush2.msra.mxu0 0.0
    %1296 = vmatprep.subr.mxu0 0.0
    %1297 = vmatpush2.msra.mxu0 0.0
    %1298 = vmatprep.subr.mxu0 0.0
    %1299 = vmatpush2.msra.mxu0 0.0
    %1300 = vmatprep.subr.mxu0 0.0
    %1301 = vmatpush2.msra.mxu0 0.0
    %1302 = vmatprep.subr.mxu0 0.0
    %1303 = vmatpush2.msra.mxu0 0.0
    %1304 = vmatprep.subr.mxu0 0.0
    %1305 = vmatpush2.msra.mxu0 0.0
    %1306 = vmatprep.subr.mxu0 0.0
    %1307 = vmatpush2.msra.mxu0 0.0
    %1308 = vmatprep.subr.mxu0 0.0
    %1309 = vmatpush2.msra.mxu0 0.0
    %1310 = vmatprep.mubr.f32.mxu0 0.0
    %1311 = vmatmul.mubr.f32.gmra.mxu0 %v1244
    %v1312 = vpop.f32.mrf.mxu0
    %v1313 = vadd.f32 0.0, %v1312
    %v1314 = vpop.f32.mrf.mxu0
    %1315 = vdwg.mxu0
    %v1316 = vadd.f32 %v294, %v1313
    %v1317 = vxor.u32 %v1316, 2147483648
    %v1318 = vmul.f32 %v1317, 1.442695
    %v1319 = vpow.pop %v1318
    %v1320 = vadd.f32 %v1319, 1.0
    %v1321 = vrcp.pop %v1320
    %v1322 = vmul.f32 1.0, %v1321
    %v1323 = vtanh.pop %v1316
    %v1325 = vrot.slane %v1063, 6
    %v1327 = vmul.f32 %v1322, %v1325
    %1329 = vrot.lane.b32.xlu0 %v1323, 64
    %v1330 = vpop.permute.xlu0 %1329
    %v1332 = vmul.f32 %v1322, %v1330
    %1334 = vrot.lane.b32.xlu0 %v1332, 32
    %v1335 = vpop.permute.xlu0 %1334
    %v1337 = vadd.f32 %v1327, %v1335
    %v1338 = vtanh.pop %v1337
    %1340 = vrot.lane.b32.xlu0 %v1338, 64
    %v1341 = vpop.permute.xlu0 %1340
    %v1343 = vmul.f32 %v1322, %v1341
    %1345 = vrot.lane.b32.xlu0 %v1239, 32
    %v1346 = vpop.permute.xlu0 %1345
    %v1347 = vsel %vm310, %v1346, 0
    %1349 = vmatprep.subr.mxu0 0.0
    %1350 = vmatpush1.msra.mxu0 0.0
    %1351 = vmatprep.subr.mxu0 0.0
    %1352 = vmatpush1.msra.mxu0 0.0
    %1353 = vmatprep.subr.mxu0 0.0
    %1354 = vmatpush1.msra.mxu0 0.0
    %1355 = vmatprep.subr.mxu0 0.0
    %1356 = vmatpush1.msra.mxu0 0.0
    %1357 = vmatprep.subr.mxu0 0.0
    %1358 = vmatpush1.msra.mxu0 0.0
    %1359 = vmatprep.subr.mxu0 0.0
    %1360 = vmatpush1.msra.mxu0 0.0
    %1361 = vmatprep.subr.mxu0 0.0
    %1362 = vmatpush1.msra.mxu0 0.0
    %1363 = vmatprep.subr.mxu0 0.0
    %1364 = vmatpush1.msra.mxu0 0.0
    %1365 = vmatprep.subr.mxu0 0.0
    %1366 = vmatpush1.msra.mxu0 0.0
    %1367 = vmatprep.subr.mxu0 0.0
    %1368 = vmatpush1.msra.mxu0 0.0
    %1369 = vmatprep.subr.mxu0 0.0
    %1370 = vmatpush1.msra.mxu0 0.0
    %1371 = vmatprep.subr.mxu0 0.0
    %1372 = vmatpush1.msra.mxu0 0.0
    %1373 = vmatprep.subr.mxu0 0.0
    %1374 = vmatpush1.msra.mxu0 %v308
    %1375 = vmatprep.subr.mxu0 0.0
    %1376 = vmatpush1.msra.mxu0 %v307
    %1377 = vmatprep.subr.mxu0 0.0
    %1378 = vmatpush1.msra.mxu0 %v306
    %1379 = vmatprep.subr.mxu0 0.0
    %1380 = vmatpush1.msra.mxu0 %v305
    %1381 = vmatprep.subr.mxu0 0.0
    %1382 = vmatpush2.msra.mxu0 0.0
    %1383 = vmatprep.subr.mxu0 0.0
    %1384 = vmatpush2.msra.mxu0 0.0
    %1385 = vmatprep.subr.mxu0 0.0
    %1386 = vmatpush2.msra.mxu0 0.0
    %1387 = vmatprep.subr.mxu0 0.0
    %1388 = vmatpush2.msra.mxu0 0.0
    %1389 = vmatprep.subr.mxu0 0.0
    %1390 = vmatpush2.msra.mxu0 0.0
    %1391 = vmatprep.subr.mxu0 0.0
    %1392 = vmatpush2.msra.mxu0 0.0
    %1393 = vmatprep.subr.mxu0 0.0
    %1394 = vmatpush2.msra.mxu0 0.0
    %1395 = vmatprep.subr.mxu0 0.0
    %1396 = vmatpush2.msra.mxu0 0.0
    %1397 = vmatprep.subr.mxu0 0.0
    %1398 = vmatpush2.msra.mxu0 0.0
    %1399 = vmatprep.subr.mxu0 0.0
    %1400 = vmatpush2.msra.mxu0 0.0
    %1401 = vmatprep.subr.mxu0 0.0
    %1402 = vmatpush2.msra.mxu0 0.0
    %1403 = vmatprep.subr.mxu0 0.0
    %1404 = vmatpush2.msra.mxu0 0.0
    %1405 = vmatprep.subr.mxu0 0.0
    %1406 = vmatpush2.msra.mxu0 0.0
    %1407 = vmatprep.subr.mxu0 0.0
    %1408 = vmatpush2.msra.mxu0 0.0
    %1409 = vmatprep.subr.mxu0 0.0
    %1410 = vmatpush2.msra.mxu0 0.0
    %1411 = vmatprep.subr.mxu0 0.0
    %1412 = vmatpush2.msra.mxu0 0.0
    %1413 = vmatprep.mubr.f32.mxu0 0.0
    %1414 = vmatmul.mubr.f32.gmra.mxu0 %v1347
    %v1415 = vpop.f32.mrf.mxu0
    %v1416 = vadd.f32 0.0, %v1415
    %v1417 = vpop.f32.mrf.mxu0
    %1418 = vdwg.mxu0
    %1419 = vmatprep.subr.mxu0 0.0
    %1420 = vmatpush1.msra.mxu0 0.0
    %1421 = vmatprep.subr.mxu0 0.0
    %1422 = vmatpush1.msra.mxu0 0.0
    %1423 = vmatprep.subr.mxu0 0.0
    %1424 = vmatpush1.msra.mxu0 0.0
    %1425 = vmatprep.subr.mxu0 0.0
    %1426 = vmatpush1.msra.mxu0 0.0
    %1427 = vmatprep.subr.mxu0 0.0
    %1428 = vmatpush1.msra.mxu0 0.0
    %1429 = vmatprep.subr.mxu0 0.0
    %1430 = vmatpush1.msra.mxu0 0.0
    %1431 = vmatprep.subr.mxu0 0.0
    %1432 = vmatpush1.msra.mxu0 0.0
    %1433 = vmatprep.subr.mxu0 0.0
    %1434 = vmatpush1.msra.mxu0 0.0
    %1435 = vmatprep.subr.mxu0 0.0
    %1436 = vmatpush1.msra.mxu0 0.0
    %1437 = vmatprep.subr.mxu0 0.0
    %1438 = vmatpush1.msra.mxu0 0.0
    %1439 = vmatprep.subr.mxu0 0.0
    %1440 = vmatpush1.msra.mxu0 0.0
    %1441 = vmatprep.subr.mxu0 0.0
    %1442 = vmatpush1.msra.mxu0 0.0
    %1443 = vmatprep.subr.mxu0 0.0
    %1444 = vmatpush1.msra.mxu0 %v304
    %1445 = vmatprep.subr.mxu0 0.0
    %1446 = vmatpush1.msra.mxu0 %v303
    %1447 = vmatprep.subr.mxu0 0.0
    %1448 = vmatpush1.msra.mxu0 %v302
    %1449 = vmatprep.subr.mxu0 0.0
    %1450 = vmatpush1.msra.mxu0 %v301
    %1451 = vmatprep.subr.mxu0 0.0
    %1452 = vmatpush2.msra.mxu0 0.0
    %1453 = vmatprep.subr.mxu0 0.0
    %1454 = vmatpush2.msra.mxu0 0.0
    %1455 = vmatprep.subr.mxu0 0.0
    %1456 = vmatpush2.msra.mxu0 0.0
    %1457 = vmatprep.subr.mxu0 0.0
    %1458 = vmatpush2.msra.mxu0 0.0
    %1459 = vmatprep.subr.mxu0 0.0
    %1460 = vmatpush2.msra.mxu0 0.0
    %1461 = vmatprep.subr.mxu0 0.0
    %1462 = vmatpush2.msra.mxu0 0.0
    %1463 = vmatprep.subr.mxu0 0.0
    %1464 = vmatpush2.msra.mxu0 0.0
    %1465 = vmatprep.subr.mxu0 0.0
    %1466 = vmatpush2.msra.mxu0 0.0
    %1467 = vmatprep.subr.mxu0 0.0
    %1468 = vmatpush2.msra.mxu0 0.0
    %1469 = vmatprep.subr.mxu0 0.0
    %1470 = vmatpush2.msra.mxu0 0.0
    %1471 = vmatprep.subr.mxu0 0.0
    %1472 = vmatpush2.msra.mxu0 0.0
    %1473 = vmatprep.subr.mxu0 0.0
    %1474 = vmatpush2.msra.mxu0 0.0
    %1475 = vmatprep.subr.mxu0 0.0
    %1476 = vmatpush2.msra.mxu0 0.0
    %1477 = vmatprep.subr.mxu0 0.0
    %1478 = vmatpush2.msra.mxu0 0.0
    %1479 = vmatprep.subr.mxu0 0.0
    %1480 = vmatpush2.msra.mxu0 0.0
    %1481 = vmatprep.subr.mxu0 0.0
    %1482 = vmatpush2.msra.mxu0 0.0
    %1483 = vmatprep.mubr.f32.mxu0 0.0
    %1484 = vmatmul.mubr.f32.gmra.mxu0 %v1244
    %v1485 = vpop.f32.mrf.mxu0
    %v1486 = vadd.f32 %v1416, %v1485
    %v1487 = vpop.f32.mrf.mxu0
    %1488 = vdwg.mxu0
    %v1489 = vadd.f32 %v1486, %v659
    %v1490 = vxor.u32 %v1489, 2147483648
    %v1491 = vmul.f32 %v1490, 1.442695
    %v1492 = vpow.pop %v1491
    %v1493 = vadd.f32 %v1492, 1.0
    %v1494 = vrcp.pop %v1493
    %v1495 = vmul.f32 1.0, %v1494
    %v1496 = vtanh.pop %v1489
    %v1497 = vmul.f32 %v1495, %v1233
    %1499 = vrot.lane.b32.xlu0 %v1496, 64
    %v1500 = vpop.permute.xlu0 %1499
    %v1502 = vmul.f32 %v1495, %v1500
    %1504 = vrot.lane.b32.xlu0 %v1502, 32
    %v1505 = vpop.permute.xlu0 %1504
    %v1507 = vadd.f32 %v1497, %v1505
    %v1508 = vtanh.pop %v1507
    %1510 = vrot.lane.b32.xlu0 %v1508, 64
    %v1511 = vpop.permute.xlu0 %1510
    %v1513 = vmul.f32 %v1495, %v1511
    %1515 = vrot.lane.b32.xlu0 %v1343, 32
    %v1516 = vpop.permute.xlu0 %1515
    %v1517 = vsel %vm310, %v1516, 0
    %1519 = vmatprep.subr.mxu0 0.0
    %1520 = vmatpush1.msra.mxu0 0.0
    %1521 = vmatprep.subr.mxu0 0.0
    %1522 = vmatpush1.msra.mxu0 0.0
    %1523 = vmatprep.subr.mxu0 0.0
    %1524 = vmatpush1.msra.mxu0 0.0
    %1525 = vmatprep.subr.mxu0 0.0
    %1526 = vmatpush1.msra.mxu0 0.0
    %1527 = vmatprep.subr.mxu0 0.0
    %1528 = vmatpush1.msra.mxu0 0.0
    %1529 = vmatprep.subr.mxu0 0.0
    %1530 = vmatpush1.msra.mxu0 0.0
    %1531 = vmatprep.subr.mxu0 0.0
    %1532 = vmatpush1.msra.mxu0 0.0
    %1533 = vmatprep.subr.mxu0 0.0
    %1534 = vmatpush1.msra.mxu0 0.0
    %1535 = vmatprep.subr.mxu0 0.0
    %1536 = vmatpush1.msra.mxu0 0.0
    %1537 = vmatprep.subr.mxu0 0.0
    %1538 = vmatpush1.msra.mxu0 0.0
    %1539 = vmatprep.subr.mxu0 0.0
    %1540 = vmatpush1.msra.mxu0 0.0
    %1541 = vmatprep.subr.mxu0 0.0
    %1542 = vmatpush1.msra.mxu0 0.0
    %1543 = vmatprep.subr.mxu0 0.0
    %1544 = vmatpush1.msra.mxu0 %v300
    %1545 = vmatprep.subr.mxu0 0.0
    %1546 = vmatpush1.msra.mxu0 %v299
    %1547 = vmatprep.subr.mxu0 0.0
    %1548 = vmatpush1.msra.mxu0 %v298
    %1549 = vmatprep.subr.mxu0 0.0
    %1550 = vmatpush1.msra.mxu0 %v297
    %1551 = vmatprep.subr.mxu0 0.0
    %1552 = vmatpush2.msra.mxu0 0.0
    %1553 = vmatprep.subr.mxu0 0.0
    %1554 = vmatpush2.msra.mxu0 0.0
    %1555 = vmatprep.subr.mxu0 0.0
    %1556 = vmatpush2.msra.mxu0 0.0
    %1557 = vmatprep.subr.mxu0 0.0
    %1558 = vmatpush2.msra.mxu0 0.0
    %1559 = vmatprep.subr.mxu0 0.0
    %1560 = vmatpush2.msra.mxu0 0.0
    %1561 = vmatprep.subr.mxu0 0.0
    %1562 = vmatpush2.msra.mxu0 0.0
    %1563 = vmatprep.subr.mxu0 0.0
    %1564 = vmatpush2.msra.mxu0 0.0
    %1565 = vmatprep.subr.mxu0 0.0
    %1566 = vmatpush2.msra.mxu0 0.0
    %1567 = vmatprep.subr.mxu0 0.0
    %1568 = vmatpush2.msra.mxu0 0.0
    %1569 = vmatprep.subr.mxu0 0.0
    %1570 = vmatpush2.msra.mxu0 0.0
    %1571 = vmatprep.subr.mxu0 0.0
    %1572 = vmatpush2.msra.mxu0 0.0
    %1573 = vmatprep.subr.mxu0 0.0
    %1574 = vmatpush2.msra.mxu0 0.0
    %1575 = vmatprep.subr.mxu0 0.0
    %1576 = vmatpush2.msra.mxu0 0.0
    %1577 = vmatprep.subr.mxu0 0.0
    %1578 = vmatpush2.msra.mxu0 0.0
    %1579 = vmatprep.subr.mxu0 0.0
    %1580 = vmatpush2.msra.mxu0 0.0
    %1581 = vmatprep.subr.mxu0 0.0
    %1582 = vmatpush2.msra.mxu0 0.0
    %1583 = vmatprep.mubr.f32.mxu0 0.0
    %1584 = vmatmul.mubr.f32.gmra.mxu0 %v1517
    %v1585 = vpop.f32.mrf.mxu0
    %v1586 = vadd.f32 0.0, %v1585
    %v1587 = vpop.f32.mrf.mxu0
    %1588 = vdwg.mxu0
    %v1590 = vrot.slane %v1586, 6
    %v1592 = vadd.f32 %v294, %v1590
    %v1593 = vxor.u32 %v1592, 2147483648
    %v1594 = vmul.f32 %v1593, 1.442695
    %v1595 = vpow.pop %v1594
    %v1596 = vadd.f32 %v1595, 1.0
    %v1597 = vrcp.pop %v1596
    %v1598 = vmul.f32 1.0, %v1597
    %v1599 = vtanh.pop %v1592
    %v1601 = vrot.slane %v1337, 6
    %v1603 = vmul.f32 %v1598, %v1601
    %1605 = vrot.lane.b32.xlu0 %v1599, 64
    %v1606 = vpop.permute.xlu0 %1605
    %v1608 = vmul.f32 %v1598, %v1606
    %1610 = vrot.lane.b32.xlu0 %v1608, 32
    %v1611 = vpop.permute.xlu0 %1610
    %v1613 = vadd.f32 %v1603, %v1611
    %v1614 = vtanh.pop %v1613
    %1616 = vrot.lane.b32.xlu0 %v1614, 64
    %v1617 = vpop.permute.xlu0 %1616
    %v1619 = vmul.f32 %v1598, %v1617
    %1621 = vrot.lane.b32.xlu0 %v1513, 32
    %v1622 = vpop.permute.xlu0 %1621
    %v1623 = vsel %vm310, %v1622, 0
    %1625 = vmatprep.subr.mxu0 0.0
    %1626 = vmatpush1.msra.mxu0 0.0
    %1627 = vmatprep.subr.mxu0 0.0
    %1628 = vmatpush1.msra.mxu0 0.0
    %1629 = vmatprep.subr.mxu0 0.0
    %1630 = vmatpush1.msra.mxu0 0.0
    %1631 = vmatprep.subr.mxu0 0.0
    %1632 = vmatpush1.msra.mxu0 0.0
    %1633 = vmatprep.subr.mxu0 0.0
    %1634 = vmatpush1.msra.mxu0 0.0
    %1635 = vmatprep.subr.mxu0 0.0
    %1636 = vmatpush1.msra.mxu0 0.0
    %1637 = vmatprep.subr.mxu0 0.0
    %1638 = vmatpush1.msra.mxu0 0.0
    %1639 = vmatprep.subr.mxu0 0.0
    %1640 = vmatpush1.msra.mxu0 0.0
    %1641 = vmatprep.subr.mxu0 0.0
    %1642 = vmatpush1.msra.mxu0 0.0
    %1643 = vmatprep.subr.mxu0 0.0
    %1644 = vmatpush1.msra.mxu0 0.0
    %1645 = vmatprep.subr.mxu0 0.0
    %1646 = vmatpush1.msra.mxu0 0.0
    %1647 = vmatprep.subr.mxu0 0.0
    %1648 = vmatpush1.msra.mxu0 0.0
    %1649 = vmatprep.subr.mxu0 0.0
    %1650 = vmatpush1.msra.mxu0 %v308
    %1651 = vmatprep.subr.mxu0 0.0
    %1652 = vmatpush1.msra.mxu0 %v307
    %1653 = vmatprep.subr.mxu0 0.0
    %1654 = vmatpush1.msra.mxu0 %v306
    %1655 = vmatprep.subr.mxu0 0.0
    %1656 = vmatpush1.msra.mxu0 %v305
    %1657 = vmatprep.subr.mxu0 0.0
    %1658 = vmatpush2.msra.mxu0 0.0
    %1659 = vmatprep.subr.mxu0 0.0
    %1660 = vmatpush2.msra.mxu0 0.0
    %1661 = vmatprep.subr.mxu0 0.0
    %1662 = vmatpush2.msra.mxu0 0.0
    %1663 = vmatprep.subr.mxu0 0.0
    %1664 = vmatpush2.msra.mxu0 0.0
    %1665 = vmatprep.subr.mxu0 0.0
    %1666 = vmatpush2.msra.mxu0 0.0
    %1667 = vmatprep.subr.mxu0 0.0
    %1668 = vmatpush2.msra.mxu0 0.0
    %1669 = vmatprep.subr.mxu0 0.0
    %1670 = vmatpush2.msra.mxu0 0.0
    %1671 = vmatprep.subr.mxu0 0.0
    %1672 = vmatpush2.msra.mxu0 0.0
    %1673 = vmatprep.subr.mxu0 0.0
    %1674 = vmatpush2.msra.mxu0 0.0
    %1675 = vmatprep.subr.mxu0 0.0
    %1676 = vmatpush2.msra.mxu0 0.0
    %1677 = vmatprep.subr.mxu0 0.0
    %1678 = vmatpush2.msra.mxu0 0.0
    %1679 = vmatprep.subr.mxu0 0.0
    %1680 = vmatpush2.msra.mxu0 0.0
    %1681 = vmatprep.subr.mxu0 0.0
    %1682 = vmatpush2.msra.mxu0 0.0
    %1683 = vmatprep.subr.mxu0 0.0
    %1684 = vmatpush2.msra.mxu0 0.0
    %1685 = vmatprep.subr.mxu0 0.0
    %1686 = vmatpush2.msra.mxu0 0.0
    %1687 = vmatprep.subr.mxu0 0.0
    %1688 = vmatpush2.msra.mxu0 0.0
    %1689 = vmatprep.mubr.f32.mxu0 0.0
    %1690 = vmatmul.mubr.f32.gmra.mxu0 %v1623
    %v1691 = vpop.f32.mrf.mxu0
    %v1692 = vadd.f32 0.0, %v1691
    %v1693 = vpop.f32.mrf.mxu0
    %1694 = vdwg.mxu0
    %1695 = vmatprep.subr.mxu0 0.0
    %1696 = vmatpush1.msra.mxu0 0.0
    %1697 = vmatprep.subr.mxu0 0.0
    %1698 = vmatpush1.msra.mxu0 0.0
    %1699 = vmatprep.subr.mxu0 0.0
    %1700 = vmatpush1.msra.mxu0 0.0
    %1701 = vmatprep.subr.mxu0 0.0
    %1702 = vmatpush1.msra.mxu0 0.0
    %1703 = vmatprep.subr.mxu0 0.0
    %1704 = vmatpush1.msra.mxu0 0.0
    %1705 = vmatprep.subr.mxu0 0.0
    %1706 = vmatpush1.msra.mxu0 0.0
    %1707 = vmatprep.subr.mxu0 0.0
    %1708 = vmatpush1.msra.mxu0 0.0
    %1709 = vmatprep.subr.mxu0 0.0
    %1710 = vmatpush1.msra.mxu0 0.0
    %1711 = vmatprep.subr.mxu0 0.0
    %1712 = vmatpush1.msra.mxu0 0.0
    %1713 = vmatprep.subr.mxu0 0.0
    %1714 = vmatpush1.msra.mxu0 0.0
    %1715 = vmatprep.subr.mxu0 0.0
    %1716 = vmatpush1.msra.mxu0 0.0
    %1717 = vmatprep.subr.mxu0 0.0
    %1718 = vmatpush1.msra.mxu0 0.0
    %1719 = vmatprep.subr.mxu0 0.0
    %1720 = vmatpush1.msra.mxu0 %v304
    %1721 = vmatprep.subr.mxu0 0.0
    %1722 = vmatpush1.msra.mxu0 %v303
    %1723 = vmatprep.subr.mxu0 0.0
    %1724 = vmatpush1.msra.mxu0 %v302
    %1725 = vmatprep.subr.mxu0 0.0
    %1726 = vmatpush1.msra.mxu0 %v301
    %1727 = vmatprep.subr.mxu0 0.0
    %1728 = vmatpush2.msra.mxu0 0.0
    %1729 = vmatprep.subr.mxu0 0.0
    %1730 = vmatpush2.msra.mxu0 0.0
    %1731 = vmatprep.subr.mxu0 0.0
    %1732 = vmatpush2.msra.mxu0 0.0
    %1733 = vmatprep.subr.mxu0 0.0
    %1734 = vmatpush2.msra.mxu0 0.0
    %1735 = vmatprep.subr.mxu0 0.0
    %1736 = vmatpush2.msra.mxu0 0.0
    %1737 = vmatprep.subr.mxu0 0.0
    %1738 = vmatpush2.msra.mxu0 0.0
    %1739 = vmatprep.subr.mxu0 0.0
    %1740 = vmatpush2.msra.mxu0 0.0
    %1741 = vmatprep.subr.mxu0 0.0
    %1742 = vmatpush2.msra.mxu0 0.0
    %1743 = vmatprep.subr.mxu0 0.0
    %1744 = vmatpush2.msra.mxu0 0.0
    %1745 = vmatprep.subr.mxu0 0.0
    %1746 = vmatpush2.msra.mxu0 0.0
    %1747 = vmatprep.subr.mxu0 0.0
    %1748 = vmatpush2.msra.mxu0 0.0
    %1749 = vmatprep.subr.mxu0 0.0
    %1750 = vmatpush2.msra.mxu0 0.0
    %1751 = vmatprep.subr.mxu0 0.0
    %1752 = vmatpush2.msra.mxu0 0.0
    %1753 = vmatprep.subr.mxu0 0.0
    %1754 = vmatpush2.msra.mxu0 0.0
    %1755 = vmatprep.subr.mxu0 0.0
    %1756 = vmatpush2.msra.mxu0 0.0
    %1757 = vmatprep.subr.mxu0 0.0
    %1758 = vmatpush2.msra.mxu0 0.0
    %1759 = vmatprep.mubr.f32.mxu0 0.0
    %1760 = vmatmul.mubr.f32.gmra.mxu0 %v1517
    %v1761 = vpop.f32.mrf.mxu0
    %v1762 = vadd.f32 %v1692, %v1761
    %v1763 = vpop.f32.mrf.mxu0
    %1764 = vdwg.mxu0
    %v1765 = vadd.f32 %v1762, %v659
    %v1766 = vxor.u32 %v1765, 2147483648
    %v1767 = vmul.f32 %v1766, 1.442695
    %v1768 = vpow.pop %v1767
    %v1769 = vadd.f32 %v1768, 1.0
    %v1770 = vrcp.pop %v1769
    %v1771 = vmul.f32 1.0, %v1770
    %v1772 = vtanh.pop %v1765
    %v1773 = vmul.f32 %v1771, %v1507
    %1775 = vrot.lane.b32.xlu0 %v1772, 64
    %v1776 = vpop.permute.xlu0 %1775
    %v1778 = vmul.f32 %v1771, %v1776
    %1780 = vrot.lane.b32.xlu0 %v1778, 32
    %v1781 = vpop.permute.xlu0 %1780
    %v1783 = vadd.f32 %v1773, %v1781
    %v1784 = vtanh.pop %v1783
    %1786 = vrot.lane.b32.xlu0 %v1784, 64
    %v1787 = vpop.permute.xlu0 %1786
    %v1789 = vmul.f32 %v1771, %v1787
    %v1791 = vrot.slane %v1619, 2
    %1792 = vrot.lane.b32.xlu0 %v1791, 32
    %v1793 = vpop.permute.xlu0 %1792
    %v1794 = vsel %vm310, %v1793, 0
    %1796 = vmatprep.subr.mxu0 0.0
    %1797 = vmatpush1.msra.mxu0 0.0
    %1798 = vmatprep.subr.mxu0 0.0
    %1799 = vmatpush1.msra.mxu0 0.0
    %1800 = vmatprep.subr.mxu0 0.0
    %1801 = vmatpush1.msra.mxu0 0.0
    %1802 = vmatprep.subr.mxu0 0.0
    %1803 = vmatpush1.msra.mxu0 0.0
    %1804 = vmatprep.subr.mxu0 0.0
    %1805 = vmatpush1.msra.mxu0 0.0
    %1806 = vmatprep.subr.mxu0 0.0
    %1807 = vmatpush1.msra.mxu0 0.0
    %1808 = vmatprep.subr.mxu0 0.0
    %1809 = vmatpush1.msra.mxu0 0.0
    %1810 = vmatprep.subr.mxu0 0.0
    %1811 = vmatpush1.msra.mxu0 0.0
    %1812 = vmatprep.subr.mxu0 0.0
    %1813 = vmatpush1.msra.mxu0 0.0
    %1814 = vmatprep.subr.mxu0 0.0
    %1815 = vmatpush1.msra.mxu0 0.0
    %1816 = vmatprep.subr.mxu0 0.0
    %1817 = vmatpush1.msra.mxu0 0.0
    %1818 = vmatprep.subr.mxu0 0.0
    %1819 = vmatpush1.msra.mxu0 0.0
    %1820 = vmatprep.subr.mxu0 0.0
    %1821 = vmatpush1.msra.mxu0 %v300
    %1822 = vmatprep.subr.mxu0 0.0
    %1823 = vmatpush1.msra.mxu0 %v299
    %1824 = vmatprep.subr.mxu0 0.0
    %1825 = vmatpush1.msra.mxu0 %v298
    %1826 = vmatprep.subr.mxu0 0.0
    %1827 = vmatpush1.msra.mxu0 %v297
    %1828 = vmatprep.subr.mxu0 0.0
    %1829 = vmatpush2.msra.mxu0 0.0
    %1830 = vmatprep.subr.mxu0 0.0
    %1831 = vmatpush2.msra.mxu0 0.0
    %1832 = vmatprep.subr.mxu0 0.0
    %1833 = vmatpush2.msra.mxu0 0.0
    %1834 = vmatprep.subr.mxu0 0.0
    %1835 = vmatpush2.msra.mxu0 0.0
    %1836 = vmatprep.subr.mxu0 0.0
    %1837 = vmatpush2.msra.mxu0 0.0
    %1838 = vmatprep.subr.mxu0 0.0
    %1839 = vmatpush2.msra.mxu0 0.0
    %1840 = vmatprep.subr.mxu0 0.0
    %1841 = vmatpush2.msra.mxu0 0.0
    %1842 = vmatprep.subr.mxu0 0.0
    %1843 = vmatpush2.msra.mxu0 0.0
    %1844 = vmatprep.subr.mxu0 0.0
    %1845 = vmatpush2.msra.mxu0 0.0
    %1846 = vmatprep.subr.mxu0 0.0
    %1847 = vmatpush2.msra.mxu0 0.0
    %1848 = vmatprep.subr.mxu0 0.0
    %1849 = vmatpush2.msra.mxu0 0.0
    %1850 = vmatprep.subr.mxu0 0.0
    %1851 = vmatpush2.msra.mxu0 0.0
    %1852 = vmatprep.subr.mxu0 0.0
    %1853 = vmatpush2.msra.mxu0 0.0
    %1854 = vmatprep.subr.mxu0 0.0
    %1855 = vmatpush2.msra.mxu0 0.0
    %1856 = vmatprep.subr.mxu0 0.0
    %1857 = vmatpush2.msra.mxu0 0.0
    %1858 = vmatprep.subr.mxu0 0.0
    %1859 = vmatpush2.msra.mxu0 0.0
    %1860 = vmatprep.mubr.f32.mxu0 0.0
    %1861 = vmatmul.mubr.f32.gmra.mxu0 %v1794
    %v1862 = vpop.f32.mrf.mxu0
    %v1863 = vadd.f32 0.0, %v1862
    %v1864 = vpop.f32.mrf.mxu0
    %1865 = vdwg.mxu0
    %v1867 = vrot.slane %v1863, 4
    %v1869 = vadd.f32 %v294, %v1867
    %v1870 = vxor.u32 %v1869, 2147483648
    %v1871 = vmul.f32 %v1870, 1.442695
    %v1872 = vpow.pop %v1871
    %v1873 = vadd.f32 %v1872, 1.0
    %v1874 = vrcp.pop %v1873
    %v1875 = vmul.f32 1.0, %v1874
    %v1876 = vtanh.pop %v1869
    %v1878 = vrot.slane %v1613, 6
    %v1880 = vmul.f32 %v1875, %v1878
    %1882 = vrot.lane.b32.xlu0 %v1876, 64
    %v1883 = vpop.permute.xlu0 %1882
    %v1885 = vmul.f32 %v1875, %v1883
    %1887 = vrot.lane.b32.xlu0 %v1885, 32
    %v1888 = vpop.permute.xlu0 %1887
    %v1890 = vadd.f32 %v1880, %v1888
    %v1891 = vtanh.pop %v1890
    %1893 = vrot.lane.b32.xlu0 %v1891, 64
    %v1894 = vpop.permute.xlu0 %1893
    %v1896 = vmul.f32 %v1875, %v1894
    %1898 = vrot.lane.b32.xlu0 %v1789, 32
    %v1899 = vpop.permute.xlu0 %1898
    %v1900 = vsel %vm310, %v1899, 0
    %1902 = vmatprep.subr.mxu0 0.0
    %1903 = vmatpush1.msra.mxu0 0.0
    %1904 = vmatprep.subr.mxu0 0.0
    %1905 = vmatpush1.msra.mxu0 0.0
    %1906 = vmatprep.subr.mxu0 0.0
    %1907 = vmatpush1.msra.mxu0 0.0
    %1908 = vmatprep.subr.mxu0 0.0
    %1909 = vmatpush1.msra.mxu0 0.0
    %1910 = vmatprep.subr.mxu0 0.0
    %1911 = vmatpush1.msra.mxu0 0.0
    %1912 = vmatprep.subr.mxu0 0.0
    %1913 = vmatpush1.msra.mxu0 0.0
    %1914 = vmatprep.subr.mxu0 0.0
    %1915 = vmatpush1.msra.mxu0 0.0
    %1916 = vmatprep.subr.mxu0 0.0
    %1917 = vmatpush1.msra.mxu0 0.0
    %1918 = vmatprep.subr.mxu0 0.0
    %1919 = vmatpush1.msra.mxu0 0.0
    %1920 = vmatprep.subr.mxu0 0.0
    %1921 = vmatpush1.msra.mxu0 0.0
    %1922 = vmatprep.subr.mxu0 0.0
    %1923 = vmatpush1.msra.mxu0 0.0
    %1924 = vmatprep.subr.mxu0 0.0
    %1925 = vmatpush1.msra.mxu0 0.0
    %1926 = vmatprep.subr.mxu0 0.0
    %1927 = vmatpush1.msra.mxu0 %v308
    %1928 = vmatprep.subr.mxu0 0.0
    %1929 = vmatpush1.msra.mxu0 %v307
    %1930 = vmatprep.subr.mxu0 0.0
    %1931 = vmatpush1.msra.mxu0 %v306
    %1932 = vmatprep.subr.mxu0 0.0
    %1933 = vmatpush1.msra.mxu0 %v305
    %1934 = vmatprep.subr.mxu0 0.0
    %1935 = vmatpush2.msra.mxu0 0.0
    %1936 = vmatprep.subr.mxu0 0.0
    %1937 = vmatpush2.msra.mxu0 0.0
    %1938 = vmatprep.subr.mxu0 0.0
    %1939 = vmatpush2.msra.mxu0 0.0
    %1940 = vmatprep.subr.mxu0 0.0
    %1941 = vmatpush2.msra.mxu0 0.0
    %1942 = vmatprep.subr.mxu0 0.0
    %1943 = vmatpush2.msra.mxu0 0.0
    %1944 = vmatprep.subr.mxu0 0.0
    %1945 = vmatpush2.msra.mxu0 0.0
    %1946 = vmatprep.subr.mxu0 0.0
    %1947 = vmatpush2.msra.mxu0 0.0
    %1948 = vmatprep.subr.mxu0 0.0
    %1949 = vmatpush2.msra.mxu0 0.0
    %1950 = vmatprep.subr.mxu0 0.0
    %1951 = vmatpush2.msra.mxu0 0.0
    %1952 = vmatprep.subr.mxu0 0.0
    %1953 = vmatpush2.msra.mxu0 0.0
    %1954 = vmatprep.subr.mxu0 0.0
    %1955 = vmatpush2.msra.mxu0 0.0
    %1956 = vmatprep.subr.mxu0 0.0
    %1957 = vmatpush2.msra.mxu0 0.0
    %1958 = vmatprep.subr.mxu0 0.0
    %1959 = vmatpush2.msra.mxu0 0.0
    %1960 = vmatprep.subr.mxu0 0.0
    %1961 = vmatpush2.msra.mxu0 0.0
    %1962 = vmatprep.subr.mxu0 0.0
    %1963 = vmatpush2.msra.mxu0 0.0
    %1964 = vmatprep.subr.mxu0 0.0
    %1965 = vmatpush2.msra.mxu0 0.0
    %1966 = vmatprep.mubr.f32.mxu0 0.0
    %1967 = vmatmul.mubr.f32.gmra.mxu0 %v1900
    %v1968 = vpop.f32.mrf.mxu0
    %v1969 = vadd.f32 0.0, %v1968
    %v1970 = vpop.f32.mrf.mxu0
    %1971 = vdwg.mxu0
    %1972 = vmatprep.subr.mxu0 0.0
    %1973 = vmatpush1.msra.mxu0 0.0
    %1974 = vmatprep.subr.mxu0 0.0
    %1975 = vmatpush1.msra.mxu0 0.0
    %1976 = vmatprep.subr.mxu0 0.0
    %1977 = vmatpush1.msra.mxu0 0.0
    %1978 = vmatprep.subr.mxu0 0.0
    %1979 = vmatpush1.msra.mxu0 0.0
    %1980 = vmatprep.subr.mxu0 0.0
    %1981 = vmatpush1.msra.mxu0 0.0
    %1982 = vmatprep.subr.mxu0 0.0
    %1983 = vmatpush1.msra.mxu0 0.0
    %1984 = vmatprep.subr.mxu0 0.0
    %1985 = vmatpush1.msra.mxu0 0.0
    %1986 = vmatprep.subr.mxu0 0.0
    %1987 = vmatpush1.msra.mxu0 0.0
    %1988 = vmatprep.subr.mxu0 0.0
    %1989 = vmatpush1.msra.mxu0 0.0
    %1990 = vmatprep.subr.mxu0 0.0
    %1991 = vmatpush1.msra.mxu0 0.0
    %1992 = vmatprep.subr.mxu0 0.0
    %1993 = vmatpush1.msra.mxu0 0.0
    %1994 = vmatprep.subr.mxu0 0.0
    %1995 = vmatpush1.msra.mxu0 0.0
    %1996 = vmatprep.subr.mxu0 0.0
    %1997 = vmatpush1.msra.mxu0 %v304
    %1998 = vmatprep.subr.mxu0 0.0
    %1999 = vmatpush1.msra.mxu0 %v303
    %2000 = vmatprep.subr.mxu0 0.0
    %2001 = vmatpush1.msra.mxu0 %v302
    %2002 = vmatprep.subr.mxu0 0.0
    %2003 = vmatpush1.msra.mxu0 %v301
    %2004 = vmatprep.subr.mxu0 0.0
    %2005 = vmatpush2.msra.mxu0 0.0
    %2006 = vmatprep.subr.mxu0 0.0
    %2007 = vmatpush2.msra.mxu0 0.0
    %2008 = vmatprep.subr.mxu0 0.0
    %2009 = vmatpush2.msra.mxu0 0.0
    %2010 = vmatprep.subr.mxu0 0.0
    %2011 = vmatpush2.msra.mxu0 0.0
    %2012 = vmatprep.subr.mxu0 0.0
    %2013 = vmatpush2.msra.mxu0 0.0
    %2014 = vmatprep.subr.mxu0 0.0
    %2015 = vmatpush2.msra.mxu0 0.0
    %2016 = vmatprep.subr.mxu0 0.0
    %2017 = vmatpush2.msra.mxu0 0.0
    %2018 = vmatprep.subr.mxu0 0.0
    %2019 = vmatpush2.msra.mxu0 0.0
    %2020 = vmatprep.subr.mxu0 0.0
    %2021 = vmatpush2.msra.mxu0 0.0
    %2022 = vmatprep.subr.mxu0 0.0
    %2023 = vmatpush2.msra.mxu0 0.0
    %2024 = vmatprep.subr.mxu0 0.0
    %2025 = vmatpush2.msra.mxu0 0.0
    %2026 = vmatprep.subr.mxu0 0.0
    %2027 = vmatpush2.msra.mxu0 0.0
    %2028 = vmatprep.subr.mxu0 0.0
    %2029 = vmatpush2.msra.mxu0 0.0
    %2030 = vmatprep.subr.mxu0 0.0
    %2031 = vmatpush2.msra.mxu0 0.0
    %2032 = vmatprep.subr.mxu0 0.0
    %2033 = vmatpush2.msra.mxu0 0.0
    %2034 = vmatprep.subr.mxu0 0.0
    %2035 = vmatpush2.msra.mxu0 0.0
    %2036 = vmatprep.mubr.f32.mxu0 0.0
    %2037 = vmatmul.mubr.f32.gmra.mxu0 %v1794
    %v2038 = vpop.f32.mrf.mxu0
    %v2039 = vadd.f32 %v1969, %v2038
    %v2040 = vpop.f32.mrf.mxu0
    %2041 = vdwg.mxu0
    %v2042 = vadd.f32 %v2039, %v659
    %v2043 = vxor.u32 %v2042, 2147483648
    %v2044 = vmul.f32 %v2043, 1.442695
    %v2045 = vpow.pop %v2044
    %v2046 = vadd.f32 %v2045, 1.0
    %v2047 = vrcp.pop %v2046
    %v2048 = vmul.f32 1.0, %v2047
    %v2049 = vtanh.pop %v2042
    %v2050 = vmul.f32 %v2048, %v1783
    %2052 = vrot.lane.b32.xlu0 %v2049, 64
    %v2053 = vpop.permute.xlu0 %2052
    %v2055 = vmul.f32 %v2048, %v2053
    %2057 = vrot.lane.b32.xlu0 %v2055, 32
    %v2058 = vpop.permute.xlu0 %2057
    %v2060 = vadd.f32 %v2050, %v2058
    %v2061 = vtanh.pop %v2060
    %2063 = vrot.lane.b32.xlu0 %v2061, 64
    %v2064 = vpop.permute.xlu0 %2063
    %v2066 = vmul.f32 %v2048, %v2064
    %v2068 = vrot.slane %v1896, 4
    %2069 = vrot.lane.b32.xlu0 %v2068, 32
    %v2070 = vpop.permute.xlu0 %2069
    %v2071 = vsel %vm310, %v2070, 0
    %2073 = vmatprep.subr.mxu0 0.0
    %2074 = vmatpush1.msra.mxu0 0.0
    %2075 = vmatprep.subr.mxu0 0.0
    %2076 = vmatpush1.msra.mxu0 0.0
    %2077 = vmatprep.subr.mxu0 0.0
    %2078 = vmatpush1.msra.mxu0 0.0
    %2079 = vmatprep.subr.mxu0 0.0
    %2080 = vmatpush1.msra.mxu0 0.0
    %2081 = vmatprep.subr.mxu0 0.0
    %2082 = vmatpush1.msra.mxu0 0.0
    %2083 = vmatprep.subr.mxu0 0.0
    %2084 = vmatpush1.msra.mxu0 0.0
    %2085 = vmatprep.subr.mxu0 0.0
    %2086 = vmatpush1.msra.mxu0 0.0
    %2087 = vmatprep.subr.mxu0 0.0
    %2088 = vmatpush1.msra.mxu0 0.0
    %2089 = vmatprep.subr.mxu0 0.0
    %2090 = vmatpush1.msra.mxu0 0.0
    %2091 = vmatprep.subr.mxu0 0.0
    %2092 = vmatpush1.msra.mxu0 0.0
    %2093 = vmatprep.subr.mxu0 0.0
    %2094 = vmatpush1.msra.mxu0 0.0
    %2095 = vmatprep.subr.mxu0 0.0
    %2096 = vmatpush1.msra.mxu0 0.0
    %2097 = vmatprep.subr.mxu0 0.0
    %2098 = vmatpush1.msra.mxu0 %v300
    %2099 = vmatprep.subr.mxu0 0.0
    %2100 = vmatpush1.msra.mxu0 %v299
    %2101 = vmatprep.subr.mxu0 0.0
    %2102 = vmatpush1.msra.mxu0 %v298
    %2103 = vmatprep.subr.mxu0 0.0
    %2104 = vmatpush1.msra.mxu0 %v297
    %2105 = vmatprep.subr.mxu0 0.0
    %2106 = vmatpush2.msra.mxu0 0.0
    %2107 = vmatprep.subr.mxu0 0.0
    %2108 = vmatpush2.msra.mxu0 0.0
    %2109 = vmatprep.subr.mxu0 0.0
    %2110 = vmatpush2.msra.mxu0 0.0
    %2111 = vmatprep.subr.mxu0 0.0
    %2112 = vmatpush2.msra.mxu0 0.0
    %2113 = vmatprep.subr.mxu0 0.0
    %2114 = vmatpush2.msra.mxu0 0.0
    %2115 = vmatprep.subr.mxu0 0.0
    %2116 = vmatpush2.msra.mxu0 0.0
    %2117 = vmatprep.subr.mxu0 0.0
    %2118 = vmatpush2.msra.mxu0 0.0
    %2119 = vmatprep.subr.mxu0 0.0
    %2120 = vmatpush2.msra.mxu0 0.0
    %2121 = vmatprep.subr.mxu0 0.0
    %2122 = vmatpush2.msra.mxu0 0.0
    %2123 = vmatprep.subr.mxu0 0.0
    %2124 = vmatpush2.msra.mxu0 0.0
    %2125 = vmatprep.subr.mxu0 0.0
    %2126 = vmatpush2.msra.mxu0 0.0
    %2127 = vmatprep.subr.mxu0 0.0
    %2128 = vmatpush2.msra.mxu0 0.0
    %2129 = vmatprep.subr.mxu0 0.0
    %2130 = vmatpush2.msra.mxu0 0.0
    %2131 = vmatprep.subr.mxu0 0.0
    %2132 = vmatpush2.msra.mxu0 0.0
    %2133 = vmatprep.subr.mxu0 0.0
    %2134 = vmatpush2.msra.mxu0 0.0
    %2135 = vmatprep.subr.mxu0 0.0
    %2136 = vmatpush2.msra.mxu0 0.0
    %2137 = vmatprep.mubr.f32.mxu0 0.0
    %2138 = vmatmul.mubr.f32.gmra.mxu0 %v2071
    %v2139 = vpop.f32.mrf.mxu0
    %v2140 = vadd.f32 0.0, %v2139
    %v2141 = vpop.f32.mrf.mxu0
    %2142 = vdwg.mxu0
    %v2144 = vrot.slane %v2140, 2
    %v2146 = vadd.f32 %v294, %v2144
    %v2147 = vxor.u32 %v2146, 2147483648
    %v2148 = vmul.f32 %v2147, 1.442695
    %v2149 = vpow.pop %v2148
    %v2150 = vadd.f32 %v2149, 1.0
    %v2151 = vrcp.pop %v2150
    %v2152 = vmul.f32 1.0, %v2151
    %v2153 = vtanh.pop %v2146
    %v2155 = vrot.slane %v1890, 6
    %v2157 = vmul.f32 %v2152, %v2155
    %2159 = vrot.lane.b32.xlu0 %v2153, 64
    %v2160 = vpop.permute.xlu0 %2159
    %v2162 = vmul.f32 %v2152, %v2160
    %2164 = vrot.lane.b32.xlu0 %v2162, 32
    %v2165 = vpop.permute.xlu0 %2164
    %v2167 = vadd.f32 %v2157, %v2165
    %v2168 = vtanh.pop %v2167
    %2170 = vrot.lane.b32.xlu0 %v2168, 64
    %v2171 = vpop.permute.xlu0 %2170
    %v2173 = vmul.f32 %v2152, %v2171
    %2175 = vrot.lane.b32.xlu0 %v2066, 32
    %v2176 = vpop.permute.xlu0 %2175
    %v2177 = vsel %vm310, %v2176, 0
    %2179 = vmatprep.subr.mxu0 0.0
    %2180 = vmatpush1.msra.mxu0 0.0
    %2181 = vmatprep.subr.mxu0 0.0
    %2182 = vmatpush1.msra.mxu0 0.0
    %2183 = vmatprep.subr.mxu0 0.0
    %2184 = vmatpush1.msra.mxu0 0.0
    %2185 = vmatprep.subr.mxu0 0.0
    %2186 = vmatpush1.msra.mxu0 0.0
    %2187 = vmatprep.subr.mxu0 0.0
    %2188 = vmatpush1.msra.mxu0 0.0
    %2189 = vmatprep.subr.mxu0 0.0
    %2190 = vmatpush1.msra.mxu0 0.0
    %2191 = vmatprep.subr.mxu0 0.0
    %2192 = vmatpush1.msra.mxu0 0.0
    %2193 = vmatprep.subr.mxu0 0.0
    %2194 = vmatpush1.msra.mxu0 0.0
    %2195 = vmatprep.subr.mxu0 0.0
    %2196 = vmatpush1.msra.mxu0 0.0
    %2197 = vmatprep.subr.mxu0 0.0
    %2198 = vmatpush1.msra.mxu0 0.0
    %2199 = vmatprep.subr.mxu0 0.0
    %2200 = vmatpush1.msra.mxu0 0.0
    %2201 = vmatprep.subr.mxu0 0.0
    %2202 = vmatpush1.msra.mxu0 0.0
    %2203 = vmatprep.subr.mxu0 0.0
    %2204 = vmatpush1.msra.mxu0 %v308
    %2205 = vmatprep.subr.mxu0 0.0
    %2206 = vmatpush1.msra.mxu0 %v307
    %2207 = vmatprep.subr.mxu0 0.0
    %2208 = vmatpush1.msra.mxu0 %v306
    %2209 = vmatprep.subr.mxu0 0.0
    %2210 = vmatpush1.msra.mxu0 %v305
    %2211 = vmatprep.subr.mxu0 0.0
    %2212 = vmatpush2.msra.mxu0 0.0
    %2213 = vmatprep.subr.mxu0 0.0
    %2214 = vmatpush2.msra.mxu0 0.0
    %2215 = vmatprep.subr.mxu0 0.0
    %2216 = vmatpush2.msra.mxu0 0.0
    %2217 = vmatprep.subr.mxu0 0.0
    %2218 = vmatpush2.msra.mxu0 0.0
    %2219 = vmatprep.subr.mxu0 0.0
    %2220 = vmatpush2.msra.mxu0 0.0
    %2221 = vmatprep.subr.mxu0 0.0
    %2222 = vmatpush2.msra.mxu0 0.0
    %2223 = vmatprep.subr.mxu0 0.0
    %2224 = vmatpush2.msra.mxu0 0.0
    %2225 = vmatprep.subr.mxu0 0.0
    %2226 = vmatpush2.msra.mxu0 0.0
    %2227 = vmatprep.subr.mxu0 0.0
    %2228 = vmatpush2.msra.mxu0 0.0
    %2229 = vmatprep.subr.mxu0 0.0
    %2230 = vmatpush2.msra.mxu0 0.0
    %2231 = vmatprep.subr.mxu0 0.0
    %2232 = vmatpush2.msra.mxu0 0.0
    %2233 = vmatprep.subr.mxu0 0.0
    %2234 = vmatpush2.msra.mxu0 0.0
    %2235 = vmatprep.subr.mxu0 0.0
    %2236 = vmatpush2.msra.mxu0 0.0
    %2237 = vmatprep.subr.mxu0 0.0
    %2238 = vmatpush2.msra.mxu0 0.0
    %2239 = vmatprep.subr.mxu0 0.0
    %2240 = vmatpush2.msra.mxu0 0.0
    %2241 = vmatprep.subr.mxu0 0.0
    %2242 = vmatpush2.msra.mxu0 0.0
    %2243 = vmatprep.mubr.f32.mxu0 0.0
    %2244 = vmatmul.mubr.f32.gmra.mxu0 %v2177
    %v2245 = vpop.f32.mrf.mxu0
    %v2246 = vadd.f32 0.0, %v2245
    %v2247 = vpop.f32.mrf.mxu0
    %2248 = vdwg.mxu0
    %2249 = vmatprep.subr.mxu0 0.0
    %2250 = vmatpush1.msra.mxu0 0.0
    %2251 = vmatprep.subr.mxu0 0.0
    %2252 = vmatpush1.msra.mxu0 0.0
    %2253 = vmatprep.subr.mxu0 0.0
    %2254 = vmatpush1.msra.mxu0 0.0
    %2255 = vmatprep.subr.mxu0 0.0
    %2256 = vmatpush1.msra.mxu0 0.0
    %2257 = vmatprep.subr.mxu0 0.0
    %2258 = vmatpush1.msra.mxu0 0.0
    %2259 = vmatprep.subr.mxu0 0.0
    %2260 = vmatpush1.msra.mxu0 0.0
    %2261 = vmatprep.subr.mxu0 0.0
    %2262 = vmatpush1.msra.mxu0 0.0
    %2263 = vmatprep.subr.mxu0 0.0
    %2264 = vmatpush1.msra.mxu0 0.0
    %2265 = vmatprep.subr.mxu0 0.0
    %2266 = vmatpush1.msra.mxu0 0.0
    %2267 = vmatprep.subr.mxu0 0.0
    %2268 = vmatpush1.msra.mxu0 0.0
    %2269 = vmatprep.subr.mxu0 0.0
    %2270 = vmatpush1.msra.mxu0 0.0
    %2271 = vmatprep.subr.mxu0 0.0
    %2272 = vmatpush1.msra.mxu0 0.0
    %2273 = vmatprep.subr.mxu0 0.0
    %2274 = vmatpush1.msra.mxu0 %v304
    %2275 = vmatprep.subr.mxu0 0.0
    %2276 = vmatpush1.msra.mxu0 %v303
    %2277 = vmatprep.subr.mxu0 0.0
    %2278 = vmatpush1.msra.mxu0 %v302
    %2279 = vmatprep.subr.mxu0 0.0
    %2280 = vmatpush1.msra.mxu0 %v301
    %2281 = vmatprep.subr.mxu0 0.0
    %2282 = vmatpush2.msra.mxu0 0.0
    %2283 = vmatprep.subr.mxu0 0.0
    %2284 = vmatpush2.msra.mxu0 0.0
    %2285 = vmatprep.subr.mxu0 0.0
    %2286 = vmatpush2.msra.mxu0 0.0
    %2287 = vmatprep.subr.mxu0 0.0
    %2288 = vmatpush2.msra.mxu0 0.0
    %2289 = vmatprep.subr.mxu0 0.0
    %2290 = vmatpush2.msra.mxu0 0.0
    %2291 = vmatprep.subr.mxu0 0.0
    %2292 = vmatpush2.msra.mxu0 0.0
    %2293 = vmatprep.subr.mxu0 0.0
    %2294 = vmatpush2.msra.mxu0 0.0
    %2295 = vmatprep.subr.mxu0 0.0
    %2296 = vmatpush2.msra.mxu0 0.0
    %2297 = vmatprep.subr.mxu0 0.0
    %2298 = vmatpush2.msra.mxu0 0.0
    %2299 = vmatprep.subr.mxu0 0.0
    %2300 = vmatpush2.msra.mxu0 0.0
    %2301 = vmatprep.subr.mxu0 0.0
    %2302 = vmatpush2.msra.mxu0 0.0
    %2303 = vmatprep.subr.mxu0 0.0
    %2304 = vmatpush2.msra.mxu0 0.0
    %2305 = vmatprep.subr.mxu0 0.0
    %2306 = vmatpush2.msra.mxu0 0.0
    %2307 = vmatprep.subr.mxu0 0.0
    %2308 = vmatpush2.msra.mxu0 0.0
    %2309 = vmatprep.subr.mxu0 0.0
    %2310 = vmatpush2.msra.mxu0 0.0
    %2311 = vmatprep.subr.mxu0 0.0
    %2312 = vmatpush2.msra.mxu0 0.0
    %2313 = vmatprep.mubr.f32.mxu0 0.0
    %2314 = vmatmul.mubr.f32.gmra.mxu0 %v2071
    %v2315 = vpop.f32.mrf.mxu0
    %v2316 = vadd.f32 %v2246, %v2315
    %v2317 = vpop.f32.mrf.mxu0
    %2318 = vdwg.mxu0
    %v2319 = vadd.f32 %v2316, %v659
    %v2320 = vxor.u32 %v2319, 2147483648
    %v2321 = vmul.f32 %v2320, 1.442695
    %v2322 = vpow.pop %v2321
    %v2323 = vadd.f32 %v2322, 1.0
    %v2324 = vrcp.pop %v2323
    %v2325 = vmul.f32 1.0, %v2324
    %v2326 = vtanh.pop %v2319
    %v2327 = vmul.f32 %v2325, %v2060
    %2329 = vrot.lane.b32.xlu0 %v2326, 64
    %v2330 = vpop.permute.xlu0 %2329
    %v2332 = vmul.f32 %v2325, %v2330
    %2334 = vrot.lane.b32.xlu0 %v2332, 32
    %v2335 = vpop.permute.xlu0 %2334
    %v2337 = vadd.f32 %v2327, %v2335
    %v2338 = vtanh.pop %v2337
    %2340 = vrot.lane.b32.xlu0 %v2338, 64
    %v2341 = vpop.permute.xlu0 %2340
    %v2343 = vmul.f32 %v2325, %v2341
    %2345 = vrot.lane.b32.xlu0 %v2343, 32
    %v2346 = vpop.permute.xlu0 %2345
    %v2347 = vsel %vm310, %v2346, 0
    %2349 = vmatprep.subr.mxu0 0.0
    %2350 = vmatpush1.msra.mxu0 0.0
    %2351 = vmatprep.subr.mxu0 0.0
    %2352 = vmatpush1.msra.mxu0 0.0
    %2353 = vmatprep.subr.mxu0 0.0
    %2354 = vmatpush1.msra.mxu0 0.0
    %2355 = vmatprep.subr.mxu0 0.0
    %2356 = vmatpush1.msra.mxu0 0.0
    %2357 = vmatprep.subr.mxu0 0.0
    %2358 = vmatpush1.msra.mxu0 0.0
    %2359 = vmatprep.subr.mxu0 0.0
    %2360 = vmatpush1.msra.mxu0 0.0
    %2361 = vmatprep.subr.mxu0 0.0
    %2362 = vmatpush1.msra.mxu0 0.0
    %2363 = vmatprep.subr.mxu0 0.0
    %2364 = vmatpush1.msra.mxu0 0.0
    %2365 = vmatprep.subr.mxu0 0.0
    %2366 = vmatpush1.msra.mxu0 0.0
    %2367 = vmatprep.subr.mxu0 0.0
    %2368 = vmatpush1.msra.mxu0 0.0
    %2369 = vmatprep.subr.mxu0 0.0
    %2370 = vmatpush1.msra.mxu0 0.0
    %2371 = vmatprep.subr.mxu0 0.0
    %2372 = vmatpush1.msra.mxu0 0.0
    %2373 = vmatprep.subr.mxu0 0.0
    %2374 = vmatpush1.msra.mxu0 %v308
    %2375 = vmatprep.subr.mxu0 0.0
    %2376 = vmatpush1.msra.mxu0 %v307
    %2377 = vmatprep.subr.mxu0 0.0
    %2378 = vmatpush1.msra.mxu0 %v306
    %2379 = vmatprep.subr.mxu0 0.0
    %2380 = vmatpush1.msra.mxu0 %v305
    %2381 = vmatprep.subr.mxu0 0.0
    %2382 = vmatpush2.msra.mxu0 0.0
    %2383 = vmatprep.subr.mxu0 0.0
    %2384 = vmatpush2.msra.mxu0 0.0
    %2385 = vmatprep.subr.mxu0 0.0
    %2386 = vmatpush2.msra.mxu0 0.0
    %2387 = vmatprep.subr.mxu0 0.0
    %2388 = vmatpush2.msra.mxu0 0.0
    %2389 = vmatprep.subr.mxu0 0.0
    %2390 = vmatpush2.msra.mxu0 0.0
    %2391 = vmatprep.subr.mxu0 0.0
    %2392 = vmatpush2.msra.mxu0 0.0
    %2393 = vmatprep.subr.mxu0 0.0
    %2394 = vmatpush2.msra.mxu0 0.0
    %2395 = vmatprep.subr.mxu0 0.0
    %2396 = vmatpush2.msra.mxu0 0.0
    %2397 = vmatprep.subr.mxu0 0.0
    %2398 = vmatpush2.msra.mxu0 0.0
    %2399 = vmatprep.subr.mxu0 0.0
    %2400 = vmatpush2.msra.mxu0 0.0
    %2401 = vmatprep.subr.mxu0 0.0
    %2402 = vmatpush2.msra.mxu0 0.0
    %2403 = vmatprep.subr.mxu0 0.0
    %2404 = vmatpush2.msra.mxu0 0.0
    %2405 = vmatprep.subr.mxu0 0.0
    %2406 = vmatpush2.msra.mxu0 0.0
    %2407 = vmatprep.subr.mxu0 0.0
    %2408 = vmatpush2.msra.mxu0 0.0
    %2409 = vmatprep.subr.mxu0 0.0
    %2410 = vmatpush2.msra.mxu0 0.0
    %2411 = vmatprep.subr.mxu0 0.0
    %2412 = vmatpush2.msra.mxu0 0.0
    %2413 = vmatprep.mubr.f32.mxu0 0.0
    %2414 = vmatmul.mubr.f32.gmra.mxu0 %v2347
    %v2415 = vpop.f32.mrf.mxu0
    %v2416 = vadd.f32 0.0, %v2415
    %v2417 = vpop.f32.mrf.mxu0
    %2418 = vdwg.mxu0
    %v2420 = vrot.slane %v2173, 6
    %2421 = vrot.lane.b32.xlu0 %v2420, 32
    %v2422 = vpop.permute.xlu0 %2421
    %v2423 = vsel %vm310, %v2422, 0
    %2425 = vmatprep.subr.mxu0 0.0
    %2426 = vmatpush1.msra.mxu0 0.0
    %2427 = vmatprep.subr.mxu0 0.0
    %2428 = vmatpush1.msra.mxu0 0.0
    %2429 = vmatprep.subr.mxu0 0.0
    %2430 = vmatpush1.msra.mxu0 0.0
    %2431 = vmatprep.subr.mxu0 0.0
    %2432 = vmatpush1.msra.mxu0 0.0
    %2433 = vmatprep.subr.mxu0 0.0
    %2434 = vmatpush1.msra.mxu0 0.0
    %2435 = vmatprep.subr.mxu0 0.0
    %2436 = vmatpush1.msra.mxu0 0.0
    %2437 = vmatprep.subr.mxu0 0.0
    %2438 = vmatpush1.msra.mxu0 0.0
    %2439 = vmatprep.subr.mxu0 0.0
    %2440 = vmatpush1.msra.mxu0 0.0
    %2441 = vmatprep.subr.mxu0 0.0
    %2442 = vmatpush1.msra.mxu0 0.0
    %2443 = vmatprep.subr.mxu0 0.0
    %2444 = vmatpush1.msra.mxu0 0.0
    %2445 = vmatprep.subr.mxu0 0.0
    %2446 = vmatpush1.msra.mxu0 0.0
    %2447 = vmatprep.subr.mxu0 0.0
    %2448 = vmatpush1.msra.mxu0 0.0
    %2449 = vmatprep.subr.mxu0 0.0
    %2450 = vmatpush1.msra.mxu0 %v304
    %2451 = vmatprep.subr.mxu0 0.0
    %2452 = vmatpush1.msra.mxu0 %v303
    %2453 = vmatprep.subr.mxu0 0.0
    %2454 = vmatpush1.msra.mxu0 %v302
    %2455 = vmatprep.subr.mxu0 0.0
    %2456 = vmatpush1.msra.mxu0 %v301
    %2457 = vmatprep.subr.mxu0 0.0
    %2458 = vmatpush2.msra.mxu0 0.0
    %2459 = vmatprep.subr.mxu0 0.0
    %2460 = vmatpush2.msra.mxu0 0.0
    %2461 = vmatprep.subr.mxu0 0.0
    %2462 = vmatpush2.msra.mxu0 0.0
    %2463 = vmatprep.subr.mxu0 0.0
    %2464 = vmatpush2.msra.mxu0 0.0
    %2465 = vmatprep.subr.mxu0 0.0
    %2466 = vmatpush2.msra.mxu0 0.0
    %2467 = vmatprep.subr.mxu0 0.0
    %2468 = vmatpush2.msra.mxu0 0.0
    %2469 = vmatprep.subr.mxu0 0.0
    %2470 = vmatpush2.msra.mxu0 0.0
    %2471 = vmatprep.subr.mxu0 0.0
    %2472 = vmatpush2.msra.mxu0 0.0
    %2473 = vmatprep.subr.mxu0 0.0
    %2474 = vmatpush2.msra.mxu0 0.0
    %2475 = vmatprep.subr.mxu0 0.0
    %2476 = vmatpush2.msra.mxu0 0.0
    %2477 = vmatprep.subr.mxu0 0.0
    %2478 = vmatpush2.msra.mxu0 0.0
    %2479 = vmatprep.subr.mxu0 0.0
    %2480 = vmatpush2.msra.mxu0 0.0
    %2481 = vmatprep.subr.mxu0 0.0
    %2482 = vmatpush2.msra.mxu0 0.0
    %2483 = vmatprep.subr.mxu0 0.0
    %2484 = vmatpush2.msra.mxu0 0.0
    %2485 = vmatprep.subr.mxu0 0.0
    %2486 = vmatpush2.msra.mxu0 0.0
    %2487 = vmatprep.subr.mxu0 0.0
    %2488 = vmatpush2.msra.mxu0 0.0
    %2489 = vmatprep.mubr.f32.mxu0 0.0
    %2490 = vmatmul.mubr.f32.gmra.mxu0 %v2423
    %v2491 = vpop.f32.mrf.mxu0
    %v2492 = vadd.f32 %v2416, %v2491
    %v2493 = vpop.f32.mrf.mxu0
    %2494 = vdwg.mxu0
    %v2495 = vadd.f32 %v2492, %v659
    %v2496 = vxor.u32 %v2495, 2147483648
    %v2497 = vmul.f32 %v2496, 1.442695
    %v2498 = vpow.pop %v2497
    %v2499 = vadd.f32 %v2498, 1.0
    %v2500 = vrcp.pop %v2499
    %v2501 = vmul.f32 1.0, %v2500
    %v2502 = vtanh.pop %v2495
    %v2503 = vmul.f32 %v2501, %v2337
    %2505 = vrot.lane.b32.xlu0 %v2502, 64
    %v2506 = vpop.permute.xlu0 %2505
    %v2508 = vmul.f32 %v2501, %v2506
    %2510 = vrot.lane.b32.xlu0 %v2508, 32
    %v2511 = vpop.permute.xlu0 %2510
    %v2513 = vadd.f32 %v2503, %v2511
    %v2514 = vtanh.pop %v2513
    %2516 = vrot.lane.b32.xlu0 %v2514, 64
    %v2517 = vpop.permute.xlu0 %2516
    %v2519 = vmul.f32 %v2501, %v2517
    %v2520 = vld [vmem:[#allocation13] sm:$0xff]
    %v2521 = vld [vmem:[#allocation13 + $0x8] sm:$0xff]
    %v2522 = vld [vmem:[#allocation13 + $0x10] sm:$0xff]
    %v2523 = vld [vmem:[#allocation13 + $0x18] sm:$0xff]
    %v2524 = vld [vmem:[#allocation13 + $0x20] sm:$0xff]
    %v2525 = vld [vmem:[#allocation13 + $0x28] sm:$0xff]
    %v2526 = vld [vmem:[#allocation13 + $0x30] sm:$0xff]
    %v2527 = vld [vmem:[#allocation13 + $0x38] sm:$0xff]
    %v2528 = vld [vmem:[#allocation13 + $0x40] sm:$0xff]
    %v2529 = vld [vmem:[#allocation13 + $0x48] sm:$0xff]
    %v2530 = vld [vmem:[#allocation13 + $0x50] sm:$0xff]
    %v2531 = vld [vmem:[#allocation13 + $0x58] sm:$0xff]
    %v2532 = vld [vmem:[#allocation13 + $0x60] sm:$0xff]
    %v2533 = vld [vmem:[#allocation13 + $0x68] sm:$0xff]
    %v2534 = vld [vmem:[#allocation13 + $0x70] sm:$0xff]
    %v2535 = vld [vmem:[#allocation13 + $0x78] sm:$0xff]
    %v2536 = vld [vmem:[#allocation15] sm:$0xff]
    %v2537 = vld [vmem:[#allocation15 + $0x8] sm:$0xff]
    %v2538 = vld [vmem:[#allocation15 + $0x10] sm:$0xff]
    %v2539 = vld [vmem:[#allocation15 + $0x18] sm:$0xff]
    %v2540 = vld [vmem:[%s11] sm:$0x1]
    %v2541 = vld [vmem:[#allocation16] sm:$0xff]
    %v2542 = vld [vmem:[#allocation16 + $0x8] sm:$0xff]
    %v2543 = vld [vmem:[#allocation16 + $0x10] sm:$0xff]
    %v2544 = vld [vmem:[#allocation16 + $0x18] sm:$0xff]
    %v2545 = vld [vmem:[#allocation18] sm:$0xff]
    %v2546 = vld [vmem:[#allocation18 + $0x8] sm:$0xff]
    %v2547 = vld [vmem:[#allocation18 + $0x10] sm:$0xff]
    %v2548 = vld [vmem:[#allocation18 + $0x18] sm:$0xff]
    %v2549 = vld [vmem:[%s14] sm:$0x1]
    %v2550 = vld [vmem:[#allocation19] sm:$0xff]
    %v2551 = vld [vmem:[#allocation19 + $0x8] sm:$0xff]
    %v2552 = vld [vmem:[#allocation19 + $0x10] sm:$0xff]
    %v2553 = vld [vmem:[#allocation19 + $0x18] sm:$0xff]
    %v2554 = vld [vmem:[%s16] sm:$0x1]
    %v2555 = vld [vmem:[#allocation2] sm:$0x3]
    %2556 = vmatprep.subr.mxu0 0.0
    %2557 = vmatpush1.msra.mxu0 0.0
    %2558 = vmatprep.subr.mxu0 0.0
    %2559 = vmatpush1.msra.mxu0 0.0
    %2560 = vmatprep.subr.mxu0 0.0
    %2561 = vmatpush1.msra.mxu0 0.0
    %2562 = vmatprep.subr.mxu0 0.0
    %2563 = vmatpush1.msra.mxu0 0.0
    %2564 = vmatprep.subr.mxu0 0.0
    %2565 = vmatpush1.msra.mxu0 0.0
    %2566 = vmatprep.subr.mxu0 0.0
    %2567 = vmatpush1.msra.mxu0 0.0
    %2568 = vmatprep.subr.mxu0 0.0
    %2569 = vmatpush1.msra.mxu0 0.0
    %2570 = vmatprep.subr.mxu0 0.0
    %2571 = vmatpush1.msra.mxu0 0.0
    %2572 = vmatprep.subr.mxu0 0.0
    %2573 = vmatpush1.msra.mxu0 0.0
    %2574 = vmatprep.subr.mxu0 0.0
    %2575 = vmatpush1.msra.mxu0 0.0
    %2576 = vmatprep.subr.mxu0 0.0
    %2577 = vmatpush1.msra.mxu0 0.0
    %2578 = vmatprep.subr.mxu0 0.0
    %2579 = vmatpush1.msra.mxu0 0.0
    %2580 = vmatprep.subr.mxu0 0.0
    %2581 = vmatpush1.msra.mxu0 %v2539
    %2582 = vmatprep.subr.mxu0 0.0
    %2583 = vmatpush1.msra.mxu0 %v2538
    %2584 = vmatprep.subr.mxu0 0.0
    %2585 = vmatpush1.msra.mxu0 %v2537
    %2586 = vmatprep.subr.mxu0 0.0
    %2587 = vmatpush1.msra.mxu0 %v2536
    %2588 = vmatprep.subr.mxu0 0.0
    %2589 = vmatpush2.msra.mxu0 0.0
    %2590 = vmatprep.subr.mxu0 0.0
    %2591 = vmatpush2.msra.mxu0 0.0
    %2592 = vmatprep.subr.mxu0 0.0
    %2593 = vmatpush2.msra.mxu0 0.0
    %2594 = vmatprep.subr.mxu0 0.0
    %2595 = vmatpush2.msra.mxu0 0.0
    %2596 = vmatprep.subr.mxu0 0.0
    %2597 = vmatpush2.msra.mxu0 0.0
    %2598 = vmatprep.subr.mxu0 0.0
    %2599 = vmatpush2.msra.mxu0 0.0
    %2600 = vmatprep.subr.mxu0 0.0
    %2601 = vmatpush2.msra.mxu0 0.0
    %2602 = vmatprep.subr.mxu0 0.0
    %2603 = vmatpush2.msra.mxu0 0.0
    %2604 = vmatprep.subr.mxu0 0.0
    %2605 = vmatpush2.msra.mxu0 0.0
    %2606 = vmatprep.subr.mxu0 0.0
    %2607 = vmatpush2.msra.mxu0 0.0
    %2608 = vmatprep.subr.mxu0 0.0
    %2609 = vmatpush2.msra.mxu0 0.0
    %2610 = vmatprep.subr.mxu0 0.0
    %2611 = vmatpush2.msra.mxu0 0.0
    %2612 = vmatprep.subr.mxu0 0.0
    %2613 = vmatpush2.msra.mxu0 0.0
    %2614 = vmatprep.subr.mxu0 0.0
    %2615 = vmatpush2.msra.mxu0 0.0
    %2616 = vmatprep.subr.mxu0 0.0
    %2617 = vmatpush2.msra.mxu0 0.0
    %2618 = vmatprep.subr.mxu0 0.0
    %2619 = vmatpush2.msra.mxu0 0.0
    %2620 = vmatprep.mubr.f32.mxu0 0.0
    %2621 = vmatmul.mubr.f32.gmra.mxu0 %v2423
    %v2622 = vpop.f32.mrf.mxu0
    %v2623 = vadd.f32 0.0, %v2622
    %v2624 = vpop.f32.mrf.mxu0
    %2625 = vdwg.mxu0
    %2626 = vmatprep.subr.mxu0 0.0
    %2627 = vmatpush1.msra.mxu0 %v2535
    %2628 = vmatprep.subr.mxu0 0.0
    %2629 = vmatpush1.msra.mxu0 %v2534
    %2630 = vmatprep.subr.mxu0 0.0
    %2631 = vmatpush1.msra.mxu0 %v2533
    %2632 = vmatprep.subr.mxu0 0.0
    %2633 = vmatpush1.msra.mxu0 %v2532
    %2634 = vmatprep.subr.mxu0 0.0
    %2635 = vmatpush1.msra.mxu0 %v2531
    %2636 = vmatprep.subr.mxu0 0.0
    %2637 = vmatpush1.msra.mxu0 %v2530
    %2638 = vmatprep.subr.mxu0 0.0
    %2639 = vmatpush1.msra.mxu0 %v2529
    %2640 = vmatprep.subr.mxu0 0.0
    %2641 = vmatpush1.msra.mxu0 %v2528
    %2642 = vmatprep.subr.mxu0 0.0
    %2643 = vmatpush1.msra.mxu0 %v2527
    %2644 = vmatprep.subr.mxu0 0.0
    %2645 = vmatpush1.msra.mxu0 %v2526
    %2646 = vmatprep.subr.mxu0 0.0
    %2647 = vmatpush1.msra.mxu0 %v2525
    %2648 = vmatprep.subr.mxu0 0.0
    %2649 = vmatpush1.msra.mxu0 %v2524
    %2650 = vmatprep.subr.mxu0 0.0
    %2651 = vmatpush1.msra.mxu0 %v2523
    %2652 = vmatprep.subr.mxu0 0.0
    %2653 = vmatpush1.msra.mxu0 %v2522
    %2654 = vmatprep.subr.mxu0 0.0
    %2655 = vmatpush1.msra.mxu0 %v2521
    %2656 = vmatprep.subr.mxu0 0.0
    %2657 = vmatpush1.msra.mxu0 %v2520
    %2658 = vmatprep.subr.mxu0 0.0
    %2659 = vmatpush2.msra.mxu0 0.0
    %2660 = vmatprep.subr.mxu0 0.0
    %2661 = vmatpush2.msra.mxu0 0.0
    %2662 = vmatprep.subr.mxu0 0.0
    %2663 = vmatpush2.msra.mxu0 0.0
    %2664 = vmatprep.subr.mxu0 0.0
    %2665 = vmatpush2.msra.mxu0 0.0
    %2666 = vmatprep.subr.mxu0 0.0
    %2667 = vmatpush2.msra.mxu0 0.0
    %2668 = vmatprep.subr.mxu0 0.0
    %2669 = vmatpush2.msra.mxu0 0.0
    %2670 = vmatprep.subr.mxu0 0.0
    %2671 = vmatpush2.msra.mxu0 0.0
    %2672 = vmatprep.subr.mxu0 0.0
    %2673 = vmatpush2.msra.mxu0 0.0
    %2674 = vmatprep.subr.mxu0 0.0
    %2675 = vmatpush2.msra.mxu0 0.0
    %2676 = vmatprep.subr.mxu0 0.0
    %2677 = vmatpush2.msra.mxu0 0.0
    %2678 = vmatprep.subr.mxu0 0.0
    %2679 = vmatpush2.msra.mxu0 0.0
    %2680 = vmatprep.subr.mxu0 0.0
    %2681 = vmatpush2.msra.mxu0 0.0
    %2682 = vmatprep.subr.mxu0 0.0
    %2683 = vmatpush2.msra.mxu0 0.0
    %2684 = vmatprep.subr.mxu0 0.0
    %2685 = vmatpush2.msra.mxu0 0.0
    %2686 = vmatprep.subr.mxu0 0.0
    %2687 = vmatpush2.msra.mxu0 0.0
    %2688 = vmatprep.subr.mxu0 0.0
    %2689 = vmatpush2.msra.mxu0 0.0
    %2690 = vmatprep.mubr.f32.mxu0 0.0
    %2691 = vmatmul.mubr.f32.gmra.mxu0 %v2555
    %v2692 = vpop.f32.mrf.mxu0
    %v2693 = vadd.f32 %v2623, %v2692
    %v2694 = vpop.f32.mrf.mxu0
    %2695 = vdwg.mxu0
    %v2697 = vlaneseq
    %v2698 = vshrl.u32 %v2697, 7
    %v2699 = vsub.s32 0, %v2698
    %v2700 = vrot.slane %v2540, %v2699
    %v2702 = vadd.f32 %v2693, %v2700
    %v2703 = vxor.u32 %v2702, 2147483648
    %v2704 = vmul.f32 %v2703, 1.442695
    %v2705 = vpow.pop %v2704
    %v2706 = vadd.f32 %v2705, 1.0
    %v2707 = vrcp.pop %v2706
    %v2708 = vmul.f32 1.0, %v2707
    %v2709 = vtanh.pop %v2702
    %v2711 = vrot.slane %v2167, 6
    %v2713 = vmul.f32 %v2708, %v2711
    %2715 = vrot.lane.b32.xlu0 %v2709, 64
    %v2716 = vpop.permute.xlu0 %2715
    %v2718 = vmul.f32 %v2708, %v2716
    %2720 = vrot.lane.b32.xlu0 %v2718, 32
    %v2721 = vpop.permute.xlu0 %2720
    %v2723 = vadd.f32 %v2713, %v2721
    %v2724 = vtanh.pop %v2723
    %2726 = vrot.lane.b32.xlu0 %v2724, 64
    %v2727 = vpop.permute.xlu0 %2726
    %v2729 = vmul.f32 %v2708, %v2727
    %2731 = vrot.lane.b32.xlu0 %v2519, 32
    %v2732 = vpop.permute.xlu0 %2731
    %v2733 = vsel %vm310, %v2732, 0
    %2735 = vmatprep.subr.mxu0 0.0
    %2736 = vmatpush1.msra.mxu0 0.0
    %2737 = vmatprep.subr.mxu0 0.0
    %2738 = vmatpush1.msra.mxu0 0.0
    %2739 = vmatprep.subr.mxu0 0.0
    %2740 = vmatpush1.msra.mxu0 0.0
    %2741 = vmatprep.subr.mxu0 0.0
    %2742 = vmatpush1.msra.mxu0 0.0
    %2743 = vmatprep.subr.mxu0 0.0
    %2744 = vmatpush1.msra.mxu0 0.0
    %2745 = vmatprep.subr.mxu0 0.0
    %2746 = vmatpush1.msra.mxu0 0.0
    %2747 = vmatprep.subr.mxu0 0.0
    %2748 = vmatpush1.msra.mxu0 0.0
    %2749 = vmatprep.subr.mxu0 0.0
    %2750 = vmatpush1.msra.mxu0 0.0
    %2751 = vmatprep.subr.mxu0 0.0
    %2752 = vmatpush1.msra.mxu0 0.0
    %2753 = vmatprep.subr.mxu0 0.0
    %2754 = vmatpush1.msra.mxu0 0.0
    %2755 = vmatprep.subr.mxu0 0.0
    %2756 = vmatpush1.msra.mxu0 0.0
    %2757 = vmatprep.subr.mxu0 0.0
    %2758 = vmatpush1.msra.mxu0 0.0
    %2759 = vmatprep.subr.mxu0 0.0
    %2760 = vmatpush1.msra.mxu0 %v2548
    %2761 = vmatprep.subr.mxu0 0.0
    %2762 = vmatpush1.msra.mxu0 %v2547
    %2763 = vmatprep.subr.mxu0 0.0
    %2764 = vmatpush1.msra.mxu0 %v2546
    %2765 = vmatprep.subr.mxu0 0.0
    %2766 = vmatpush1.msra.mxu0 %v2545
    %2767 = vmatprep.subr.mxu0 0.0
    %2768 = vmatpush2.msra.mxu0 0.0
    %2769 = vmatprep.subr.mxu0 0.0
    %2770 = vmatpush2.msra.mxu0 0.0
    %2771 = vmatprep.subr.mxu0 0.0
    %2772 = vmatpush2.msra.mxu0 0.0
    %2773 = vmatprep.subr.mxu0 0.0
    %2774 = vmatpush2.msra.mxu0 0.0
    %2775 = vmatprep.subr.mxu0 0.0
    %2776 = vmatpush2.msra.mxu0 0.0
    %2777 = vmatprep.subr.mxu0 0.0
    %2778 = vmatpush2.msra.mxu0 0.0
    %2779 = vmatprep.subr.mxu0 0.0
    %2780 = vmatpush2.msra.mxu0 0.0
    %2781 = vmatprep.subr.mxu0 0.0
    %2782 = vmatpush2.msra.mxu0 0.0
    %2783 = vmatprep.subr.mxu0 0.0
    %2784 = vmatpush2.msra.mxu0 0.0
    %2785 = vmatprep.subr.mxu0 0.0
    %2786 = vmatpush2.msra.mxu0 0.0
    %2787 = vmatprep.subr.mxu0 0.0
    %2788 = vmatpush2.msra.mxu0 0.0
    %2789 = vmatprep.subr.mxu0 0.0
    %2790 = vmatpush2.msra.mxu0 0.0
    %2791 = vmatprep.subr.mxu0 0.0
    %2792 = vmatpush2.msra.mxu0 0.0
    %2793 = vmatprep.subr.mxu0 0.0
    %2794 = vmatpush2.msra.mxu0 0.0
    %2795 = vmatprep.subr.mxu0 0.0
    %2796 = vmatpush2.msra.mxu0 0.0
    %2797 = vmatprep.subr.mxu0 0.0
    %2798 = vmatpush2.msra.mxu0 0.0
    %2799 = vmatprep.mubr.f32.mxu0 0.0
    %2800 = vmatmul.mubr.f32.gmra.mxu0 %v2733
    %v2801 = vpop.f32.mrf.mxu0
    %v2802 = vadd.f32 0.0, %v2801
    %v2803 = vpop.f32.mrf.mxu0
    %2804 = vdwg.mxu0
    %2806 = vrot.lane.b32.xlu0 %v2729, 32
    %v2807 = vpop.permute.xlu0 %2806
    %v2808 = vsel %vm310, %v2807, 0
    %2810 = vmatprep.subr.mxu0 0.0
    %2811 = vmatpush1.msra.mxu0 0.0
    %2812 = vmatprep.subr.mxu0 0.0
    %2813 = vmatpush1.msra.mxu0 0.0
    %2814 = vmatprep.subr.mxu0 0.0
    %2815 = vmatpush1.msra.mxu0 0.0
    %2816 = vmatprep.subr.mxu0 0.0
    %2817 = vmatpush1.msra.mxu0 0.0
    %2818 = vmatprep.subr.mxu0 0.0
    %2819 = vmatpush1.msra.mxu0 0.0
    %2820 = vmatprep.subr.mxu0 0.0
    %2821 = vmatpush1.msra.mxu0 0.0
    %2822 = vmatprep.subr.mxu0 0.0
    %2823 = vmatpush1.msra.mxu0 0.0
    %2824 = vmatprep.subr.mxu0 0.0
    %2825 = vmatpush1.msra.mxu0 0.0
    %2826 = vmatprep.subr.mxu0 0.0
    %2827 = vmatpush1.msra.mxu0 0.0
    %2828 = vmatprep.subr.mxu0 0.0
    %2829 = vmatpush1.msra.mxu0 0.0
    %2830 = vmatprep.subr.mxu0 0.0
    %2831 = vmatpush1.msra.mxu0 0.0
    %2832 = vmatprep.subr.mxu0 0.0
    %2833 = vmatpush1.msra.mxu0 0.0
    %2834 = vmatprep.subr.mxu0 0.0
    %2835 = vmatpush1.msra.mxu0 %v2544
    %2836 = vmatprep.subr.mxu0 0.0
    %2837 = vmatpush1.msra.mxu0 %v2543
    %2838 = vmatprep.subr.mxu0 0.0
    %2839 = vmatpush1.msra.mxu0 %v2542
    %2840 = vmatprep.subr.mxu0 0.0
    %2841 = vmatpush1.msra.mxu0 %v2541
    %2842 = vmatprep.subr.mxu0 0.0
    %2843 = vmatpush2.msra.mxu0 0.0
    %2844 = vmatprep.subr.mxu0 0.0
    %2845 = vmatpush2.msra.mxu0 0.0
    %2846 = vmatprep.subr.mxu0 0.0
    %2847 = vmatpush2.msra.mxu0 0.0
    %2848 = vmatprep.subr.mxu0 0.0
    %2849 = vmatpush2.msra.mxu0 0.0
    %2850 = vmatprep.subr.mxu0 0.0
    %2851 = vmatpush2.msra.mxu0 0.0
    %2852 = vmatprep.subr.mxu0 0.0
    %2853 = vmatpush2.msra.mxu0 0.0
    %2854 = vmatprep.subr.mxu0 0.0
    %2855 = vmatpush2.msra.mxu0 0.0
    %2856 = vmatprep.subr.mxu0 0.0
    %2857 = vmatpush2.msra.mxu0 0.0
    %2858 = vmatprep.subr.mxu0 0.0
    %2859 = vmatpush2.msra.mxu0 0.0
    %2860 = vmatprep.subr.mxu0 0.0
    %2861 = vmatpush2.msra.mxu0 0.0
    %2862 = vmatprep.subr.mxu0 0.0
    %2863 = vmatpush2.msra.mxu0 0.0
    %2864 = vmatprep.subr.mxu0 0.0
    %2865 = vmatpush2.msra.mxu0 0.0
    %2866 = vmatprep.subr.mxu0 0.0
    %2867 = vmatpush2.msra.mxu0 0.0
    %2868 = vmatprep.subr.mxu0 0.0
    %2869 = vmatpush2.msra.mxu0 0.0
    %2870 = vmatprep.subr.mxu0 0.0
    %2871 = vmatpush2.msra.mxu0 0.0
    %2872 = vmatprep.subr.mxu0 0.0
    %2873 = vmatpush2.msra.mxu0 0.0
    %2874 = vmatprep.mubr.f32.mxu0 0.0
    %2875 = vmatmul.mubr.f32.gmra.mxu0 %v2808
    %v2876 = vpop.f32.mrf.mxu0
    %v2877 = vadd.f32 %v2802, %v2876
    %v2878 = vpop.f32.mrf.mxu0
    %2879 = vdwg.mxu0
    %v2881 = vlaneseq
    %v2882 = vshrl.u32 %v2881, 7
    %v2883 = vsub.s32 0, %v2882
    %v2884 = vrot.slane %v2549, %v2883
    %v2886 = vadd.f32 %v2877, %v2884
    %v2887 = vxor.u32 %v2886, 2147483648
    %v2888 = vmul.f32 %v2887, 1.442695
    %v2889 = vpow.pop %v2888
    %v2890 = vadd.f32 %v2889, 1.0
    %v2891 = vrcp.pop %v2890
    %v2892 = vmul.f32 1.0, %v2891
    %v2893 = vtanh.pop %v2886
    %v2894 = vmul.f32 %v2892, %v2513
    %2896 = vrot.lane.b32.xlu0 %v2893, 64
    %v2897 = vpop.permute.xlu0 %2896
    %v2899 = vmul.f32 %v2892, %v2897
    %2901 = vrot.lane.b32.xlu0 %v2899, 32
    %v2902 = vpop.permute.xlu0 %2901
    %v2904 = vadd.f32 %v2894, %v2902
    %v2905 = vtanh.pop %v2904
    %2907 = vrot.lane.b32.xlu0 %v2905, 64
    %v2908 = vpop.permute.xlu0 %2907
    %v2910 = vmul.f32 %v2892, %v2908
    %v2912 = vlaneseq
    %v2913 = vshrl.u32 %v2912, 7
    %v2914 = vsub.s32 0, %v2913
    %v2915 = vrot.slane %v2554, %v2914
    %2918 = vrot.lane.b32.xlu0 %v2910, 32
    %v2919 = vpop.permute.xlu0 %2918
    %v2920 = vsel %vm310, %v2919, 0
    %2922 = vmatprep.subr.mxu0 0.0
    %2923 = vmatpush1.msra.mxu0 0.0
    %2924 = vmatprep.subr.mxu0 0.0
    %2925 = vmatpush1.msra.mxu0 0.0
    %2926 = vmatprep.subr.mxu0 0.0
    %2927 = vmatpush1.msra.mxu0 0.0
    %2928 = vmatprep.subr.mxu0 0.0
    %2929 = vmatpush1.msra.mxu0 0.0
    %2930 = vmatprep.subr.mxu0 0.0
    %2931 = vmatpush1.msra.mxu0 0.0
    %2932 = vmatprep.subr.mxu0 0.0
    %2933 = vmatpush1.msra.mxu0 0.0
    %2934 = vmatprep.subr.mxu0 0.0
    %2935 = vmatpush1.msra.mxu0 0.0
    %2936 = vmatprep.subr.mxu0 0.0
    %2937 = vmatpush1.msra.mxu0 0.0
    %2938 = vmatprep.subr.mxu0 0.0
    %2939 = vmatpush1.msra.mxu0 0.0
    %2940 = vmatprep.subr.mxu0 0.0
    %2941 = vmatpush1.msra.mxu0 0.0
    %2942 = vmatprep.subr.mxu0 0.0
    %2943 = vmatpush1.msra.mxu0 0.0
    %2944 = vmatprep.subr.mxu0 0.0
    %2945 = vmatpush1.msra.mxu0 0.0
    %2946 = vmatprep.subr.mxu0 0.0
    %2947 = vmatpush1.msra.mxu0 %v2553
    %2948 = vmatprep.subr.mxu0 0.0
    %2949 = vmatpush1.msra.mxu0 %v2552
    %2950 = vmatprep.subr.mxu0 0.0
    %2951 = vmatpush1.msra.mxu0 %v2551
    %2952 = vmatprep.subr.mxu0 0.0
    %2953 = vmatpush1.msra.mxu0 %v2550
    %2954 = vmatprep.subr.mxu0 0.0
    %2955 = vmatpush2.msra.mxu0 0.0
    %2956 = vmatprep.subr.mxu0 0.0
    %2957 = vmatpush2.msra.mxu0 0.0
    %2958 = vmatprep.subr.mxu0 0.0
    %2959 = vmatpush2.msra.mxu0 0.0
    %2960 = vmatprep.subr.mxu0 0.0
    %2961 = vmatpush2.msra.mxu0 0.0
    %2962 = vmatprep.subr.mxu0 0.0
    %2963 = vmatpush2.msra.mxu0 0.0
    %2964 = vmatprep.subr.mxu0 0.0
    %2965 = vmatpush2.msra.mxu0 0.0
    %2966 = vmatprep.subr.mxu0 0.0
    %2967 = vmatpush2.msra.mxu0 0.0
    %2968 = vmatprep.subr.mxu0 0.0
    %2969 = vmatpush2.msra.mxu0 0.0
    %2970 = vmatprep.subr.mxu0 0.0
    %2971 = vmatpush2.msra.mxu0 0.0
    %2972 = vmatprep.subr.mxu0 0.0
    %2973 = vmatpush2.msra.mxu0 0.0
    %2974 = vmatprep.subr.mxu0 0.0
    %2975 = vmatpush2.msra.mxu0 0.0
    %2976 = vmatprep.subr.mxu0 0.0
    %2977 = vmatpush2.msra.mxu0 0.0
    %2978 = vmatprep.subr.mxu0 0.0
    %2979 = vmatpush2.msra.mxu0 0.0
    %2980 = vmatprep.subr.mxu0 0.0
    %2981 = vmatpush2.msra.mxu0 0.0
    %2982 = vmatprep.subr.mxu0 0.0
    %2983 = vmatpush2.msra.mxu0 0.0
    %2984 = vmatprep.subr.mxu0 0.0
    %2985 = vmatpush2.msra.mxu0 0.0
    %2986 = vmatprep.mubr.f32.mxu0 0.0
    %2987 = vmatmul.mubr.f32.gmra.mxu0 %v2920
    %v2988 = vpop.f32.mrf.mxu0
    %v2989 = vadd.f32 %v2915, %v2988
    %v2990 = vpop.f32.mrf.mxu0
    %2991 = vdwg.mxu0
    %s2992 = scalar_lea.vmem [#allocation21], 2
    %2993 = vst [vmem:[%s2992] sm:$0x3] %v2989
    %s2994 = sld [smem:[#allocation6 + $0x1]]
    %p2995 = scmp.gt.s32.totalorder %s2994, 0
    %s2996 = scalar_lea.vmem [#allocation2], 2
    %v2997 = vld [vmem:[%s2996] sm:$0x3]
    %s2998 = scalar_select %p2995, 1, 0
    %v2999 = vstv %s2998
    %vm3000 = vcmp.eq.s32.totalorder %v2999, 1
    %v3001 = vsel %vm3000, %v2997, %v2989
    %3002 = vmatprep.subr.mxu0 0.0
    %3003 = vmatpush1.msra.mxu0 0.0
    %3004 = vmatprep.subr.mxu0 0.0
    %3005 = vmatpush1.msra.mxu0 0.0
    %3006 = vmatprep.subr.mxu0 0.0
    %3007 = vmatpush1.msra.mxu0 0.0
    %3008 = vmatprep.subr.mxu0 0.0
    %3009 = vmatpush1.msra.mxu0 0.0
    %3010 = vmatprep.subr.mxu0 0.0
    %3011 = vmatpush1.msra.mxu0 0.0
    %3012 = vmatprep.subr.mxu0 0.0
    %3013 = vmatpush1.msra.mxu0 0.0
    %3014 = vmatprep.subr.mxu0 0.0
    %3015 = vmatpush1.msra.mxu0 0.0
    %3016 = vmatprep.subr.mxu0 0.0
    %3017 = vmatpush1.msra.mxu0 0.0
    %3018 = vmatprep.subr.mxu0 0.0
    %3019 = vmatpush1.msra.mxu0 0.0
    %3020 = vmatprep.subr.mxu0 0.0
    %3021 = vmatpush1.msra.mxu0 0.0
    %3022 = vmatprep.subr.mxu0 0.0
    %3023 = vmatpush1.msra.mxu0 0.0
    %3024 = vmatprep.subr.mxu0 0.0
    %3025 = vmatpush1.msra.mxu0 0.0
    %3026 = vmatprep.subr.mxu0 0.0
    %3027 = vmatpush1.msra.mxu0 %v2539
    %3028 = vmatprep.subr.mxu0 0.0
    %3029 = vmatpush1.msra.mxu0 %v2538
    %3030 = vmatprep.subr.mxu0 0.0
    %3031 = vmatpush1.msra.mxu0 %v2537
    %3032 = vmatprep.subr.mxu0 0.0
    %3033 = vmatpush1.msra.mxu0 %v2536
    %3034 = vmatprep.subr.mxu0 0.0
    %3035 = vmatpush2.msra.mxu0 0.0
    %3036 = vmatprep.subr.mxu0 0.0
    %3037 = vmatpush2.msra.mxu0 0.0
    %3038 = vmatprep.subr.mxu0 0.0
    %3039 = vmatpush2.msra.mxu0 0.0
    %3040 = vmatprep.subr.mxu0 0.0
    %3041 = vmatpush2.msra.mxu0 0.0
    %3042 = vmatprep.subr.mxu0 0.0
    %3043 = vmatpush2.msra.mxu0 0.0
    %3044 = vmatprep.subr.mxu0 0.0
    %3045 = vmatpush2.msra.mxu0 0.0
    %3046 = vmatprep.subr.mxu0 0.0
    %3047 = vmatpush2.msra.mxu0 0.0
    %3048 = vmatprep.subr.mxu0 0.0
    %3049 = vmatpush2.msra.mxu0 0.0
    %3050 = vmatprep.subr.mxu0 0.0
    %3051 = vmatpush2.msra.mxu0 0.0
    %3052 = vmatprep.subr.mxu0 0.0
    %3053 = vmatpush2.msra.mxu0 0.0
    %3054 = vmatprep.subr.mxu0 0.0
    %3055 = vmatpush2.msra.mxu0 0.0
    %3056 = vmatprep.subr.mxu0 0.0
    %3057 = vmatpush2.msra.mxu0 0.0
    %3058 = vmatprep.subr.mxu0 0.0
    %3059 = vmatpush2.msra.mxu0 0.0
    %3060 = vmatprep.subr.mxu0 0.0
    %3061 = vmatpush2.msra.mxu0 0.0
    %3062 = vmatprep.subr.mxu0 0.0
    %3063 = vmatpush2.msra.mxu0 0.0
    %3064 = vmatprep.subr.mxu0 0.0
    %3065 = vmatpush2.msra.mxu0 0.0
    %3066 = vmatprep.mubr.f32.mxu0 0.0
    %3067 = vmatmul.mubr.f32.gmra.mxu0 %v2808
    %v3068 = vpop.f32.mrf.mxu0
    %v3069 = vadd.f32 0.0, %v3068
    %v3070 = vpop.f32.mrf.mxu0
    %3071 = vdwg.mxu0
    %3072 = vmatprep.subr.mxu0 0.0
    %3073 = vmatpush1.msra.mxu0 %v2535
    %3074 = vmatprep.subr.mxu0 0.0
    %3075 = vmatpush1.msra.mxu0 %v2534
    %3076 = vmatprep.subr.mxu0 0.0
    %3077 = vmatpush1.msra.mxu0 %v2533
    %3078 = vmatprep.subr.mxu0 0.0
    %3079 = vmatpush1.msra.mxu0 %v2532
    %3080 = vmatprep.subr.mxu0 0.0
    %3081 = vmatpush1.msra.mxu0 %v2531
    %3082 = vmatprep.subr.mxu0 0.0
    %3083 = vmatpush1.msra.mxu0 %v2530
    %3084 = vmatprep.subr.mxu0 0.0
    %3085 = vmatpush1.msra.mxu0 %v2529
    %3086 = vmatprep.subr.mxu0 0.0
    %3087 = vmatpush1.msra.mxu0 %v2528
    %3088 = vmatprep.subr.mxu0 0.0
    %3089 = vmatpush1.msra.mxu0 %v2527
    %3090 = vmatprep.subr.mxu0 0.0
    %3091 = vmatpush1.msra.mxu0 %v2526
    %3092 = vmatprep.subr.mxu0 0.0
    %3093 = vmatpush1.msra.mxu0 %v2525
    %3094 = vmatprep.subr.mxu0 0.0
    %3095 = vmatpush1.msra.mxu0 %v2524
    %3096 = vmatprep.subr.mxu0 0.0
    %3097 = vmatpush1.msra.mxu0 %v2523
    %3098 = vmatprep.subr.mxu0 0.0
    %3099 = vmatpush1.msra.mxu0 %v2522
    %3100 = vmatprep.subr.mxu0 0.0
    %3101 = vmatpush1.msra.mxu0 %v2521
    %3102 = vmatprep.subr.mxu0 0.0
    %3103 = vmatpush1.msra.mxu0 %v2520
    %3104 = vmatprep.subr.mxu0 0.0
    %3105 = vmatpush2.msra.mxu0 0.0
    %3106 = vmatprep.subr.mxu0 0.0
    %3107 = vmatpush2.msra.mxu0 0.0
    %3108 = vmatprep.subr.mxu0 0.0
    %3109 = vmatpush2.msra.mxu0 0.0
    %3110 = vmatprep.subr.mxu0 0.0
    %3111 = vmatpush2.msra.mxu0 0.0
    %3112 = vmatprep.subr.mxu0 0.0
    %3113 = vmatpush2.msra.mxu0 0.0
    %3114 = vmatprep.subr.mxu0 0.0
    %3115 = vmatpush2.msra.mxu0 0.0
    %3116 = vmatprep.subr.mxu0 0.0
    %3117 = vmatpush2.msra.mxu0 0.0
    %3118 = vmatprep.subr.mxu0 0.0
    %3119 = vmatpush2.msra.mxu0 0.0
    %3120 = vmatprep.subr.mxu0 0.0
    %3121 = vmatpush2.msra.mxu0 0.0
    %3122 = vmatprep.subr.mxu0 0.0
    %3123 = vmatpush2.msra.mxu0 0.0
    %3124 = vmatprep.subr.mxu0 0.0
    %3125 = vmatpush2.msra.mxu0 0.0
    %3126 = vmatprep.subr.mxu0 0.0
    %3127 = vmatpush2.msra.mxu0 0.0
    %3128 = vmatprep.subr.mxu0 0.0
    %3129 = vmatpush2.msra.mxu0 0.0
    %3130 = vmatprep.subr.mxu0 0.0
    %3131 = vmatpush2.msra.mxu0 0.0
    %3132 = vmatprep.subr.mxu0 0.0
    %3133 = vmatpush2.msra.mxu0 0.0
    %3134 = vmatprep.subr.mxu0 0.0
    %3135 = vmatpush2.msra.mxu0 0.0
    %3136 = vmatprep.mubr.f32.mxu0 0.0
    %3137 = vmatmul.mubr.f32.gmra.mxu0 %v3001
    %v3138 = vpop.f32.mrf.mxu0
    %v3139 = vadd.f32 %v3069, %v3138
    %v3140 = vpop.f32.mrf.mxu0
    %3141 = vdwg.mxu0
    %v3142 = vadd.f32 %v3139, %v2700
    %v3143 = vxor.u32 %v3142, 2147483648
    %v3144 = vmul.f32 %v3143, 1.442695
    %v3145 = vpow.pop %v3144
    %v3146 = vadd.f32 %v3145, 1.0
    %v3147 = vrcp.pop %v3146
    %v3148 = vmul.f32 1.0, %v3147
    %v3149 = vtanh.pop %v3142
    %v3150 = vmul.f32 %v3148, %v2723
    %3152 = vrot.lane.b32.xlu0 %v3149, 64
    %v3153 = vpop.permute.xlu0 %3152
    %v3155 = vmul.f32 %v3148, %v3153
    %3157 = vrot.lane.b32.xlu0 %v3155, 32
    %v3158 = vpop.permute.xlu0 %3157
    %v3160 = vadd.f32 %v3150, %v3158
    %v3161 = vtanh.pop %v3160
    %3163 = vrot.lane.b32.xlu0 %v3161, 64
    %v3164 = vpop.permute.xlu0 %3163
    %v3166 = vmul.f32 %v3148, %v3164
    %3167 = vmatprep.subr.mxu0 0.0
    %3168 = vmatpush1.msra.mxu0 0.0
    %3169 = vmatprep.subr.mxu0 0.0
    %3170 = vmatpush1.msra.mxu0 0.0
    %3171 = vmatprep.subr.mxu0 0.0
    %3172 = vmatpush1.msra.mxu0 0.0
    %3173 = vmatprep.subr.mxu0 0.0
    %3174 = vmatpush1.msra.mxu0 0.0
    %3175 = vmatprep.subr.mxu0 0.0
    %3176 = vmatpush1.msra.mxu0 0.0
    %3177 = vmatprep.subr.mxu0 0.0
    %3178 = vmatpush1.msra.mxu0 0.0
    %3179 = vmatprep.subr.mxu0 0.0
    %3180 = vmatpush1.msra.mxu0 0.0
    %3181 = vmatprep.subr.mxu0 0.0
    %3182 = vmatpush1.msra.mxu0 0.0
    %3183 = vmatprep.subr.mxu0 0.0
    %3184 = vmatpush1.msra.mxu0 0.0
    %3185 = vmatprep.subr.mxu0 0.0
    %3186 = vmatpush1.msra.mxu0 0.0
    %3187 = vmatprep.subr.mxu0 0.0
    %3188 = vmatpush1.msra.mxu0 0.0
    %3189 = vmatprep.subr.mxu0 0.0
    %3190 = vmatpush1.msra.mxu0 0.0
    %3191 = vmatprep.subr.mxu0 0.0
    %3192 = vmatpush1.msra.mxu0 %v2548
    %3193 = vmatprep.subr.mxu0 0.0
    %3194 = vmatpush1.msra.mxu0 %v2547
    %3195 = vmatprep.subr.mxu0 0.0
    %3196 = vmatpush1.msra.mxu0 %v2546
    %3197 = vmatprep.subr.mxu0 0.0
    %3198 = vmatpush1.msra.mxu0 %v2545
    %3199 = vmatprep.subr.mxu0 0.0
    %3200 = vmatpush2.msra.mxu0 0.0
    %3201 = vmatprep.subr.mxu0 0.0
    %3202 = vmatpush2.msra.mxu0 0.0
    %3203 = vmatprep.subr.mxu0 0.0
    %3204 = vmatpush2.msra.mxu0 0.0
    %3205 = vmatprep.subr.mxu0 0.0
    %3206 = vmatpush2.msra.mxu0 0.0
    %3207 = vmatprep.subr.mxu0 0.0
    %3208 = vmatpush2.msra.mxu0 0.0
    %3209 = vmatprep.subr.mxu0 0.0
    %3210 = vmatpush2.msra.mxu0 0.0
    %3211 = vmatprep.subr.mxu0 0.0
    %3212 = vmatpush2.msra.mxu0 0.0
    %3213 = vmatprep.subr.mxu0 0.0
    %3214 = vmatpush2.msra.mxu0 0.0
    %3215 = vmatprep.subr.mxu0 0.0
    %3216 = vmatpush2.msra.mxu0 0.0
    %3217 = vmatprep.subr.mxu0 0.0
    %3218 = vmatpush2.msra.mxu0 0.0
    %3219 = vmatprep.subr.mxu0 0.0
    %3220 = vmatpush2.msra.mxu0 0.0
    %3221 = vmatprep.subr.mxu0 0.0
    %3222 = vmatpush2.msra.mxu0 0.0
    %3223 = vmatprep.subr.mxu0 0.0
    %3224 = vmatpush2.msra.mxu0 0.0
    %3225 = vmatprep.subr.mxu0 0.0
    %3226 = vmatpush2.msra.mxu0 0.0
    %3227 = vmatprep.subr.mxu0 0.0
    %3228 = vmatpush2.msra.mxu0 0.0
    %3229 = vmatprep.subr.mxu0 0.0
    %3230 = vmatpush2.msra.mxu0 0.0
    %3231 = vmatprep.mubr.f32.mxu0 0.0
    %3232 = vmatmul.mubr.f32.gmra.mxu0 %v2920
    %v3233 = vpop.f32.mrf.mxu0
    %v3234 = vadd.f32 0.0, %v3233
    %v3235 = vpop.f32.mrf.mxu0
    %3236 = vdwg.mxu0
    %3238 = vrot.lane.b32.xlu0 %v3166, 32
    %v3239 = vpop.permute.xlu0 %3238
    %v3240 = vsel %vm310, %v3239, 0
    %3242 = vmatprep.subr.mxu0 0.0
    %3243 = vmatpush1.msra.mxu0 0.0
    %3244 = vmatprep.subr.mxu0 0.0
    %3245 = vmatpush1.msra.mxu0 0.0
    %3246 = vmatprep.subr.mxu0 0.0
    %3247 = vmatpush1.msra.mxu0 0.0
    %3248 = vmatprep.subr.mxu0 0.0
    %3249 = vmatpush1.msra.mxu0 0.0
    %3250 = vmatprep.subr.mxu0 0.0
    %3251 = vmatpush1.msra.mxu0 0.0
    %3252 = vmatprep.subr.mxu0 0.0
    %3253 = vmatpush1.msra.mxu0 0.0
    %3254 = vmatprep.subr.mxu0 0.0
    %3255 = vmatpush1.msra.mxu0 0.0
    %3256 = vmatprep.subr.mxu0 0.0
    %3257 = vmatpush1.msra.mxu0 0.0
    %3258 = vmatprep.subr.mxu0 0.0
    %3259 = vmatpush1.msra.mxu0 0.0
    %3260 = vmatprep.subr.mxu0 0.0
    %3261 = vmatpush1.msra.mxu0 0.0
    %3262 = vmatprep.subr.mxu0 0.0
    %3263 = vmatpush1.msra.mxu0 0.0
    %3264 = vmatprep.subr.mxu0 0.0
    %3265 = vmatpush1.msra.mxu0 0.0
    %3266 = vmatprep.subr.mxu0 0.0
    %3267 = vmatpush1.msra.mxu0 %v2544
    %3268 = vmatprep.subr.mxu0 0.0
    %3269 = vmatpush1.msra.mxu0 %v2543
    %3270 = vmatprep.subr.mxu0 0.0
    %3271 = vmatpush1.msra.mxu0 %v2542
    %3272 = vmatprep.subr.mxu0 0.0
    %3273 = vmatpush1.msra.mxu0 %v2541
    %3274 = vmatprep.subr.mxu0 0.0
    %3275 = vmatpush2.msra.mxu0 0.0
    %3276 = vmatprep.subr.mxu0 0.0
    %3277 = vmatpush2.msra.mxu0 0.0
    %3278 = vmatprep.subr.mxu0 0.0
    %3279 = vmatpush2.msra.mxu0 0.0
    %3280 = vmatprep.subr.mxu0 0.0
    %3281 = vmatpush2.msra.mxu0 0.0
    %3282 = vmatprep.subr.mxu0 0.0
    %3283 = vmatpush2.msra.mxu0 0.0
    %3284 = vmatprep.subr.mxu0 0.0
    %3285 = vmatpush2.msra.mxu0 0.0
    %3286 = vmatprep.subr.mxu0 0.0
    %3287 = vmatpush2.msra.mxu0 0.0
    %3288 = vmatprep.subr.mxu0 0.0
    %3289 = vmatpush2.msra.mxu0 0.0
    %3290 = vmatprep.subr.mxu0 0.0
    %3291 = vmatpush2.msra.mxu0 0.0
    %3292 = vmatprep.subr.mxu0 0.0
    %3293 = vmatpush2.msra.mxu0 0.0
    %3294 = vmatprep.subr.mxu0 0.0
    %3295 = vmatpush2.msra.mxu0 0.0
    %3296 = vmatprep.subr.mxu0 0.0
    %3297 = vmatpush2.msra.mxu0 0.0
    %3298 = vmatprep.subr.mxu0 0.0
    %3299 = vmatpush2.msra.mxu0 0.0
    %3300 = vmatprep.subr.mxu0 0.0
    %3301 = vmatpush2.msra.mxu0 0.0
    %3302 = vmatprep.subr.mxu0 0.0
    %3303 = vmatpush2.msra.mxu0 0.0
    %3304 = vmatprep.subr.mxu0 0.0
    %3305 = vmatpush2.msra.mxu0 0.0
    %3306 = vmatprep.mubr.f32.mxu0 0.0
    %3307 = vmatmul.mubr.f32.gmra.mxu0 %v3240
    %v3308 = vpop.f32.mrf.mxu0
    %v3309 = vadd.f32 %v3234, %v3308
    %v3310 = vpop.f32.mrf.mxu0
    %3311 = vdwg.mxu0
    %v3312 = vadd.f32 %v3309, %v2884
    %v3313 = vxor.u32 %v3312, 2147483648
    %v3314 = vmul.f32 %v3313, 1.442695
    %v3315 = vpow.pop %v3314
    %v3316 = vadd.f32 %v3315, 1.0
    %v3317 = vrcp.pop %v3316
    %v3318 = vmul.f32 1.0, %v3317
    %v3319 = vtanh.pop %v3312
    %v3320 = vmul.f32 %v3318, %v2904
    %3322 = vrot.lane.b32.xlu0 %v3319, 64
    %v3323 = vpop.permute.xlu0 %3322
    %v3325 = vmul.f32 %v3318, %v3323
    %3327 = vrot.lane.b32.xlu0 %v3325, 32
    %v3328 = vpop.permute.xlu0 %3327
    %v3330 = vadd.f32 %v3320, %v3328
    %v3331 = vtanh.pop %v3330
    %3333 = vrot.lane.b32.xlu0 %v3331, 64
    %v3334 = vpop.permute.xlu0 %3333
    %v3336 = vmul.f32 %v3318, %v3334
    %3338 = vrot.lane.b32.xlu0 %v3336, 32
    %v3339 = vpop.permute.xlu0 %3338
    %v3340 = vsel %vm310, %v3339, 0
    %3342 = vmatprep.subr.mxu0 0.0
    %3343 = vmatpush1.msra.mxu0 0.0
    %3344 = vmatprep.subr.mxu0 0.0
    %3345 = vmatpush1.msra.mxu0 0.0
    %3346 = vmatprep.subr.mxu0 0.0
    %3347 = vmatpush1.msra.mxu0 0.0
    %3348 = vmatprep.subr.mxu0 0.0
    %3349 = vmatpush1.msra.mxu0 0.0
    %3350 = vmatprep.subr.mxu0 0.0
    %3351 = vmatpush1.msra.mxu0 0.0
    %3352 = vmatprep.subr.mxu0 0.0
    %3353 = vmatpush1.msra.mxu0 0.0
    %3354 = vmatprep.subr.mxu0 0.0
    %3355 = vmatpush1.msra.mxu0 0.0
    %3356 = vmatprep.subr.mxu0 0.0
    %3357 = vmatpush1.msra.mxu0 0.0
    %3358 = vmatprep.subr.mxu0 0.0
    %3359 = vmatpush1.msra.mxu0 0.0
    %3360 = vmatprep.subr.mxu0 0.0
    %3361 = vmatpush1.msra.mxu0 0.0
    %3362 = vmatprep.subr.mxu0 0.0
    %3363 = vmatpush1.msra.mxu0 0.0
    %3364 = vmatprep.subr.mxu0 0.0
    %3365 = vmatpush1.msra.mxu0 0.0
    %3366 = vmatprep.subr.mxu0 0.0
    %3367 = vmatpush1.msra.mxu0 %v2553
    %3368 = vmatprep.subr.mxu0 0.0
    %3369 = vmatpush1.msra.mxu0 %v2552
    %3370 = vmatprep.subr.mxu0 0.0
    %3371 = vmatpush1.msra.mxu0 %v2551
    %3372 = vmatprep.subr.mxu0 0.0
    %3373 = vmatpush1.msra.mxu0 %v2550
    %3374 = vmatprep.subr.mxu0 0.0
    %3375 = vmatpush2.msra.mxu0 0.0
    %3376 = vmatprep.subr.mxu0 0.0
    %3377 = vmatpush2.msra.mxu0 0.0
    %3378 = vmatprep.subr.mxu0 0.0
    %3379 = vmatpush2.msra.mxu0 0.0
    %3380 = vmatprep.subr.mxu0 0.0
    %3381 = vmatpush2.msra.mxu0 0.0
    %3382 = vmatprep.subr.mxu0 0.0
    %3383 = vmatpush2.msra.mxu0 0.0
    %3384 = vmatprep.subr.mxu0 0.0
    %3385 = vmatpush2.msra.mxu0 0.0
    %3386 = vmatprep.subr.mxu0 0.0
    %3387 = vmatpush2.msra.mxu0 0.0
    %3388 = vmatprep.subr.mxu0 0.0
    %3389 = vmatpush2.msra.mxu0 0.0
    %3390 = vmatprep.subr.mxu0 0.0
    %3391 = vmatpush2.msra.mxu0 0.0
    %3392 = vmatprep.subr.mxu0 0.0
    %3393 = vmatpush2.msra.mxu0 0.0
    %3394 = vmatprep.subr.mxu0 0.0
    %3395 = vmatpush2.msra.mxu0 0.0
    %3396 = vmatprep.subr.mxu0 0.0
    %3397 = vmatpush2.msra.mxu0 0.0
    %3398 = vmatprep.subr.mxu0 0.0
    %3399 = vmatpush2.msra.mxu0 0.0
    %3400 = vmatprep.subr.mxu0 0.0
    %3401 = vmatpush2.msra.mxu0 0.0
    %3402 = vmatprep.subr.mxu0 0.0
    %3403 = vmatpush2.msra.mxu0 0.0
    %3404 = vmatprep.subr.mxu0 0.0
    %3405 = vmatpush2.msra.mxu0 0.0
    %3406 = vmatprep.mubr.f32.mxu0 0.0
    %3407 = vmatmul.mubr.f32.gmra.mxu0 %v3340
    %v3408 = vpop.f32.mrf.mxu0
    %v3409 = vadd.f32 %v2915, %v3408
    %v3410 = vpop.f32.mrf.mxu0
    %3411 = vdwg.mxu0
    %s3412 = scalar_lea.vmem [#allocation21], 4
    %3413 = vst [vmem:[%s3412] sm:$0x3] %v3409
    %s3414 = sld [smem:[#allocation6 + $0x2]]
    %p3415 = scmp.gt.s32.totalorder %s3414, 0
    %s3416 = scalar_lea.vmem [#allocation2], 4
    %v3417 = vld [vmem:[%s3416] sm:$0x3]
    %s3418 = scalar_select %p3415, 1, 0
    %v3419 = vstv %s3418
    %vm3420 = vcmp.eq.s32.totalorder %v3419, 1
    %v3421 = vsel %vm3420, %v3417, %v3409
    %3422 = vmatprep.subr.mxu0 0.0
    %3423 = vmatpush1.msra.mxu0 0.0
    %3424 = vmatprep.subr.mxu0 0.0
    %3425 = vmatpush1.msra.mxu0 0.0
    %3426 = vmatprep.subr.mxu0 0.0
    %3427 = vmatpush1.msra.mxu0 0.0
    %3428 = vmatprep.subr.mxu0 0.0
    %3429 = vmatpush1.msra.mxu0 0.0
    %3430 = vmatprep.subr.mxu0 0.0
    %3431 = vmatpush1.msra.mxu0 0.0
    %3432 = vmatprep.subr.mxu0 0.0
    %3433 = vmatpush1.msra.mxu0 0.0
    %3434 = vmatprep.subr.mxu0 0.0
    %3435 = vmatpush1.msra.mxu0 0.0
    %3436 = vmatprep.subr.mxu0 0.0
    %3437 = vmatpush1.msra.mxu0 0.0
    %3438 = vmatprep.subr.mxu0 0.0
    %3439 = vmatpush1.msra.mxu0 0.0
    %3440 = vmatprep.subr.mxu0 0.0
    %3441 = vmatpush1.msra.mxu0 0.0
    %3442 = vmatprep.subr.mxu0 0.0
    %3443 = vmatpush1.msra.mxu0 0.0
    %3444 = vmatprep.subr.mxu0 0.0
    %3445 = vmatpush1.msra.mxu0 0.0
    %3446 = vmatprep.subr.mxu0 0.0
    %3447 = vmatpush1.msra.mxu0 %v2539
    %3448 = vmatprep.subr.mxu0 0.0
    %3449 = vmatpush1.msra.mxu0 %v2538
    %3450 = vmatprep.subr.mxu0 0.0
    %3451 = vmatpush1.msra.mxu0 %v2537
    %3452 = vmatprep.subr.mxu0 0.0
    %3453 = vmatpush1.msra.mxu0 %v2536
    %3454 = vmatprep.subr.mxu0 0.0
    %3455 = vmatpush2.msra.mxu0 0.0
    %3456 = vmatprep.subr.mxu0 0.0
    %3457 = vmatpush2.msra.mxu0 0.0
    %3458 = vmatprep.subr.mxu0 0.0
    %3459 = vmatpush2.msra.mxu0 0.0
    %3460 = vmatprep.subr.mxu0 0.0
    %3461 = vmatpush2.msra.mxu0 0.0
    %3462 = vmatprep.subr.mxu0 0.0
    %3463 = vmatpush2.msra.mxu0 0.0
    %3464 = vmatprep.subr.mxu0 0.0
    %3465 = vmatpush2.msra.mxu0 0.0
    %3466 = vmatprep.subr.mxu0 0.0
    %3467 = vmatpush2.msra.mxu0 0.0
    %3468 = vmatprep.subr.mxu0 0.0
    %3469 = vmatpush2.msra.mxu0 0.0
    %3470 = vmatprep.subr.mxu0 0.0
    %3471 = vmatpush2.msra.mxu0 0.0
    %3472 = vmatprep.subr.mxu0 0.0
    %3473 = vmatpush2.msra.mxu0 0.0
    %3474 = vmatprep.subr.mxu0 0.0
    %3475 = vmatpush2.msra.mxu0 0.0
    %3476 = vmatprep.subr.mxu0 0.0
    %3477 = vmatpush2.msra.mxu0 0.0
    %3478 = vmatprep.subr.mxu0 0.0
    %3479 = vmatpush2.msra.mxu0 0.0
    %3480 = vmatprep.subr.mxu0 0.0
    %3481 = vmatpush2.msra.mxu0 0.0
    %3482 = vmatprep.subr.mxu0 0.0
    %3483 = vmatpush2.msra.mxu0 0.0
    %3484 = vmatprep.subr.mxu0 0.0
    %3485 = vmatpush2.msra.mxu0 0.0
    %3486 = vmatprep.mubr.f32.mxu0 0.0
    %3487 = vmatmul.mubr.f32.gmra.mxu0 %v3240
    %v3488 = vpop.f32.mrf.mxu0
    %v3489 = vadd.f32 0.0, %v3488
    %v3490 = vpop.f32.mrf.mxu0
    %3491 = vdwg.mxu0
    %3492 = vmatprep.subr.mxu0 0.0
    %3493 = vmatpush1.msra.mxu0 %v2535
    %3494 = vmatprep.subr.mxu0 0.0
    %3495 = vmatpush1.msra.mxu0 %v2534
    %3496 = vmatprep.subr.mxu0 0.0
    %3497 = vmatpush1.msra.mxu0 %v2533
    %3498 = vmatprep.subr.mxu0 0.0
    %3499 = vmatpush1.msra.mxu0 %v2532
    %3500 = vmatprep.subr.mxu0 0.0
    %3501 = vmatpush1.msra.mxu0 %v2531
    %3502 = vmatprep.subr.mxu0 0.0
    %3503 = vmatpush1.msra.mxu0 %v2530
    %3504 = vmatprep.subr.mxu0 0.0
    %3505 = vmatpush1.msra.mxu0 %v2529
    %3506 = vmatprep.subr.mxu0 0.0
    %3507 = vmatpush1.msra.mxu0 %v2528
    %3508 = vmatprep.subr.mxu0 0.0
    %3509 = vmatpush1.msra.mxu0 %v2527
    %3510 = vmatprep.subr.mxu0 0.0
    %3511 = vmatpush1.msra.mxu0 %v2526
    %3512 = vmatprep.subr.mxu0 0.0
    %3513 = vmatpush1.msra.mxu0 %v2525
    %3514 = vmatprep.subr.mxu0 0.0
    %3515 = vmatpush1.msra.mxu0 %v2524
    %3516 = vmatprep.subr.mxu0 0.0
    %3517 = vmatpush1.msra.mxu0 %v2523
    %3518 = vmatprep.subr.mxu0 0.0
    %3519 = vmatpush1.msra.mxu0 %v2522
    %3520 = vmatprep.subr.mxu0 0.0
    %3521 = vmatpush1.msra.mxu0 %v2521
    %3522 = vmatprep.subr.mxu0 0.0
    %3523 = vmatpush1.msra.mxu0 %v2520
    %3524 = vmatprep.subr.mxu0 0.0
    %3525 = vmatpush2.msra.mxu0 0.0
    %3526 = vmatprep.subr.mxu0 0.0
    %3527 = vmatpush2.msra.mxu0 0.0
    %3528 = vmatprep.subr.mxu0 0.0
    %3529 = vmatpush2.msra.mxu0 0.0
    %3530 = vmatprep.subr.mxu0 0.0
    %3531 = vmatpush2.msra.mxu0 0.0
    %3532 = vmatprep.subr.mxu0 0.0
    %3533 = vmatpush2.msra.mxu0 0.0
    %3534 = vmatprep.subr.mxu0 0.0
    %3535 = vmatpush2.msra.mxu0 0.0
    %3536 = vmatprep.subr.mxu0 0.0
    %3537 = vmatpush2.msra.mxu0 0.0
    %3538 = vmatprep.subr.mxu0 0.0
    %3539 = vmatpush2.msra.mxu0 0.0
    %3540 = vmatprep.subr.mxu0 0.0
    %3541 = vmatpush2.msra.mxu0 0.0
    %3542 = vmatprep.subr.mxu0 0.0
    %3543 = vmatpush2.msra.mxu0 0.0
    %3544 = vmatprep.subr.mxu0 0.0
    %3545 = vmatpush2.msra.mxu0 0.0
    %3546 = vmatprep.subr.mxu0 0.0
    %3547 = vmatpush2.msra.mxu0 0.0
    %3548 = vmatprep.subr.mxu0 0.0
    %3549 = vmatpush2.msra.mxu0 0.0
    %3550 = vmatprep.subr.mxu0 0.0
    %3551 = vmatpush2.msra.mxu0 0.0
    %3552 = vmatprep.subr.mxu0 0.0
    %3553 = vmatpush2.msra.mxu0 0.0
    %3554 = vmatprep.subr.mxu0 0.0
    %3555 = vmatpush2.msra.mxu0 0.0
    %3556 = vmatprep.mubr.f32.mxu0 0.0
    %3557 = vmatmul.mubr.f32.gmra.mxu0 %v3421
    %v3558 = vpop.f32.mrf.mxu0
    %v3559 = vadd.f32 %v3489, %v3558
    %v3560 = vpop.f32.mrf.mxu0
    %3561 = vdwg.mxu0
    %v3562 = vadd.f32 %v3559, %v2700
    %v3563 = vxor.u32 %v3562, 2147483648
    %v3564 = vmul.f32 %v3563, 1.442695
    %v3565 = vpow.pop %v3564
    %v3566 = vadd.f32 %v3565, 1.0
    %v3567 = vrcp.pop %v3566
    %v3568 = vmul.f32 1.0, %v3567
    %v3569 = vtanh.pop %v3562
    %v3570 = vmul.f32 %v3568, %v3160
    %3572 = vrot.lane.b32.xlu0 %v3569, 64
    %v3573 = vpop.permute.xlu0 %3572
    %v3575 = vmul.f32 %v3568, %v3573
    %3577 = vrot.lane.b32.xlu0 %v3575, 32
    %v3578 = vpop.permute.xlu0 %3577
    %v3580 = vadd.f32 %v3570, %v3578
    %v3581 = vtanh.pop %v3580
    %3583 = vrot.lane.b32.xlu0 %v3581, 64
    %v3584 = vpop.permute.xlu0 %3583
    %v3586 = vmul.f32 %v3568, %v3584
    %3587 = vmatprep.subr.mxu0 0.0
    %3588 = vmatpush1.msra.mxu0 0.0
    %3589 = vmatprep.subr.mxu0 0.0
    %3590 = vmatpush1.msra.mxu0 0.0
    %3591 = vmatprep.subr.mxu0 0.0
    %3592 = vmatpush1.msra.mxu0 0.0
    %3593 = vmatprep.subr.mxu0 0.0
    %3594 = vmatpush1.msra.mxu0 0.0
    %3595 = vmatprep.subr.mxu0 0.0
    %3596 = vmatpush1.msra.mxu0 0.0
    %3597 = vmatprep.subr.mxu0 0.0
    %3598 = vmatpush1.msra.mxu0 0.0
    %3599 = vmatprep.subr.mxu0 0.0
    %3600 = vmatpush1.msra.mxu0 0.0
    %3601 = vmatprep.subr.mxu0 0.0
    %3602 = vmatpush1.msra.mxu0 0.0
    %3603 = vmatprep.subr.mxu0 0.0
    %3604 = vmatpush1.msra.mxu0 0.0
    %3605 = vmatprep.subr.mxu0 0.0
    %3606 = vmatpush1.msra.mxu0 0.0
    %3607 = vmatprep.subr.mxu0 0.0
    %3608 = vmatpush1.msra.mxu0 0.0
    %3609 = vmatprep.subr.mxu0 0.0
    %3610 = vmatpush1.msra.mxu0 0.0
    %3611 = vmatprep.subr.mxu0 0.0
    %3612 = vmatpush1.msra.mxu0 %v2548
    %3613 = vmatprep.subr.mxu0 0.0
    %3614 = vmatpush1.msra.mxu0 %v2547
    %3615 = vmatprep.subr.mxu0 0.0
    %3616 = vmatpush1.msra.mxu0 %v2546
    %3617 = vmatprep.subr.mxu0 0.0
    %3618 = vmatpush1.msra.mxu0 %v2545
    %3619 = vmatprep.subr.mxu0 0.0
    %3620 = vmatpush2.msra.mxu0 0.0
    %3621 = vmatprep.subr.mxu0 0.0
    %3622 = vmatpush2.msra.mxu0 0.0
    %3623 = vmatprep.subr.mxu0 0.0
    %3624 = vmatpush2.msra.mxu0 0.0
    %3625 = vmatprep.subr.mxu0 0.0
    %3626 = vmatpush2.msra.mxu0 0.0
    %3627 = vmatprep.subr.mxu0 0.0
    %3628 = vmatpush2.msra.mxu0 0.0
    %3629 = vmatprep.subr.mxu0 0.0
    %3630 = vmatpush2.msra.mxu0 0.0
    %3631 = vmatprep.subr.mxu0 0.0
    %3632 = vmatpush2.msra.mxu0 0.0
    %3633 = vmatprep.subr.mxu0 0.0
    %3634 = vmatpush2.msra.mxu0 0.0
    %3635 = vmatprep.subr.mxu0 0.0
    %3636 = vmatpush2.msra.mxu0 0.0
    %3637 = vmatprep.subr.mxu0 0.0
    %3638 = vmatpush2.msra.mxu0 0.0
    %3639 = vmatprep.subr.mxu0 0.0
    %3640 = vmatpush2.msra.mxu0 0.0
    %3641 = vmatprep.subr.mxu0 0.0
    %3642 = vmatpush2.msra.mxu0 0.0
    %3643 = vmatprep.subr.mxu0 0.0
    %3644 = vmatpush2.msra.mxu0 0.0
    %3645 = vmatprep.subr.mxu0 0.0
    %3646 = vmatpush2.msra.mxu0 0.0
    %3647 = vmatprep.subr.mxu0 0.0
    %3648 = vmatpush2.msra.mxu0 0.0
    %3649 = vmatprep.subr.mxu0 0.0
    %3650 = vmatpush2.msra.mxu0 0.0
    %3651 = vmatprep.mubr.f32.mxu0 0.0
    %3652 = vmatmul.mubr.f32.gmra.mxu0 %v3340
    %v3653 = vpop.f32.mrf.mxu0
    %v3654 = vadd.f32 0.0, %v3653
    %v3655 = vpop.f32.mrf.mxu0
    %3656 = vdwg.mxu0
    %3658 = vrot.lane.b32.xlu0 %v3586, 32
    %v3659 = vpop.permute.xlu0 %3658
    %v3660 = vsel %vm310, %v3659, 0
    %3662 = vmatprep.subr.mxu0 0.0
    %3663 = vmatpush1.msra.mxu0 0.0
    %3664 = vmatprep.subr.mxu0 0.0
    %3665 = vmatpush1.msra.mxu0 0.0
    %3666 = vmatprep.subr.mxu0 0.0
    %3667 = vmatpush1.msra.mxu0 0.0
    %3668 = vmatprep.subr.mxu0 0.0
    %3669 = vmatpush1.msra.mxu0 0.0
    %3670 = vmatprep.subr.mxu0 0.0
    %3671 = vmatpush1.msra.mxu0 0.0
    %3672 = vmatprep.subr.mxu0 0.0
    %3673 = vmatpush1.msra.mxu0 0.0
    %3674 = vmatprep.subr.mxu0 0.0
    %3675 = vmatpush1.msra.mxu0 0.0
    %3676 = vmatprep.subr.mxu0 0.0
    %3677 = vmatpush1.msra.mxu0 0.0
    %3678 = vmatprep.subr.mxu0 0.0
    %3679 = vmatpush1.msra.mxu0 0.0
    %3680 = vmatprep.subr.mxu0 0.0
    %3681 = vmatpush1.msra.mxu0 0.0
    %3682 = vmatprep.subr.mxu0 0.0
    %3683 = vmatpush1.msra.mxu0 0.0
    %3684 = vmatprep.subr.mxu0 0.0
    %3685 = vmatpush1.msra.mxu0 0.0
    %3686 = vmatprep.subr.mxu0 0.0
    %3687 = vmatpush1.msra.mxu0 %v2544
    %3688 = vmatprep.subr.mxu0 0.0
    %3689 = vmatpush1.msra.mxu0 %v2543
    %3690 = vmatprep.subr.mxu0 0.0
    %3691 = vmatpush1.msra.mxu0 %v2542
    %3692 = vmatprep.subr.mxu0 0.0
    %3693 = vmatpush1.msra.mxu0 %v2541
    %3694 = vmatprep.subr.mxu0 0.0
    %3695 = vmatpush2.msra.mxu0 0.0
    %3696 = vmatprep.subr.mxu0 0.0
    %3697 = vmatpush2.msra.mxu0 0.0
    %3698 = vmatprep.subr.mxu0 0.0
    %3699 = vmatpush2.msra.mxu0 0.0
    %3700 = vmatprep.subr.mxu0 0.0
    %3701 = vmatpush2.msra.mxu0 0.0
    %3702 = vmatprep.subr.mxu0 0.0
    %3703 = vmatpush2.msra.mxu0 0.0
    %3704 = vmatprep.subr.mxu0 0.0
    %3705 = vmatpush2.msra.mxu0 0.0
    %3706 = vmatprep.subr.mxu0 0.0
    %3707 = vmatpush2.msra.mxu0 0.0
    %3708 = vmatprep.subr.mxu0 0.0
    %3709 = vmatpush2.msra.mxu0 0.0
    %3710 = vmatprep.subr.mxu0 0.0
    %3711 = vmatpush2.msra.mxu0 0.0
    %3712 = vmatprep.subr.mxu0 0.0
    %3713 = vmatpush2.msra.mxu0 0.0
    %3714 = vmatprep.subr.mxu0 0.0
    %3715 = vmatpush2.msra.mxu0 0.0
    %3716 = vmatprep.subr.mxu0 0.0
    %3717 = vmatpush2.msra.mxu0 0.0
    %3718 = vmatprep.subr.mxu0 0.0
    %3719 = vmatpush2.msra.mxu0 0.0
    %3720 = vmatprep.subr.mxu0 0.0
    %3721 = vmatpush2.msra.mxu0 0.0
    %3722 = vmatprep.subr.mxu0 0.0
    %3723 = vmatpush2.msra.mxu0 0.0
    %3724 = vmatprep.subr.mxu0 0.0
    %3725 = vmatpush2.msra.mxu0 0.0
    %3726 = vmatprep.mubr.f32.mxu0 0.0
    %3727 = vmatmul.mubr.f32.gmra.mxu0 %v3660
    %v3728 = vpop.f32.mrf.mxu0
    %v3729 = vadd.f32 %v3654, %v3728
    %v3730 = vpop.f32.mrf.mxu0
    %3731 = vdwg.mxu0
    %v3732 = vadd.f32 %v3729, %v2884
    %v3733 = vxor.u32 %v3732, 2147483648
    %v3734 = vmul.f32 %v3733, 1.442695
    %v3735 = vpow.pop %v3734
    %v3736 = vadd.f32 %v3735, 1.0
    %v3737 = vrcp.pop %v3736
    %v3738 = vmul.f32 1.0, %v3737
    %v3739 = vtanh.pop %v3732
    %v3740 = vmul.f32 %v3738, %v3330
    %3742 = vrot.lane.b32.xlu0 %v3739, 64
    %v3743 = vpop.permute.xlu0 %3742
    %v3745 = vmul.f32 %v3738, %v3743
    %3747 = vrot.lane.b32.xlu0 %v3745, 32
    %v3748 = vpop.permute.xlu0 %3747
    %v3750 = vadd.f32 %v3740, %v3748
    %v3751 = vtanh.pop %v3750
    %3753 = vrot.lane.b32.xlu0 %v3751, 64
    %v3754 = vpop.permute.xlu0 %3753
    %v3756 = vmul.f32 %v3738, %v3754
    %3758 = vrot.lane.b32.xlu0 %v3756, 32
    %v3759 = vpop.permute.xlu0 %3758
    %v3760 = vsel %vm310, %v3759, 0
    %3762 = vmatprep.subr.mxu0 0.0
    %3763 = vmatpush1.msra.mxu0 0.0
    %3764 = vmatprep.subr.mxu0 0.0
    %3765 = vmatpush1.msra.mxu0 0.0
    %3766 = vmatprep.subr.mxu0 0.0
    %3767 = vmatpush1.msra.mxu0 0.0
    %3768 = vmatprep.subr.mxu0 0.0
    %3769 = vmatpush1.msra.mxu0 0.0
    %3770 = vmatprep.subr.mxu0 0.0
    %3771 = vmatpush1.msra.mxu0 0.0
    %3772 = vmatprep.subr.mxu0 0.0
    %3773 = vmatpush1.msra.mxu0 0.0
    %3774 = vmatprep.subr.mxu0 0.0
    %3775 = vmatpush1.msra.mxu0 0.0
    %3776 = vmatprep.subr.mxu0 0.0
    %3777 = vmatpush1.msra.mxu0 0.0
    %3778 = vmatprep.subr.mxu0 0.0
    %3779 = vmatpush1.msra.mxu0 0.0
    %3780 = vmatprep.subr.mxu0 0.0
    %3781 = vmatpush1.msra.mxu0 0.0
    %3782 = vmatprep.subr.mxu0 0.0
    %3783 = vmatpush1.msra.mxu0 0.0
    %3784 = vmatprep.subr.mxu0 0.0
    %3785 = vmatpush1.msra.mxu0 0.0
    %3786 = vmatprep.subr.mxu0 0.0
    %3787 = vmatpush1.msra.mxu0 %v2553
    %3788 = vmatprep.subr.mxu0 0.0
    %3789 = vmatpush1.msra.mxu0 %v2552
    %3790 = vmatprep.subr.mxu0 0.0
    %3791 = vmatpush1.msra.mxu0 %v2551
    %3792 = vmatprep.subr.mxu0 0.0
    %3793 = vmatpush1.msra.mxu0 %v2550
    %3794 = vmatprep.subr.mxu0 0.0
    %3795 = vmatpush2.msra.mxu0 0.0
    %3796 = vmatprep.subr.mxu0 0.0
    %3797 = vmatpush2.msra.mxu0 0.0
    %3798 = vmatprep.subr.mxu0 0.0
    %3799 = vmatpush2.msra.mxu0 0.0
    %3800 = vmatprep.subr.mxu0 0.0
    %3801 = vmatpush2.msra.mxu0 0.0
    %3802 = vmatprep.subr.mxu0 0.0
    %3803 = vmatpush2.msra.mxu0 0.0
    %3804 = vmatprep.subr.mxu0 0.0
    %3805 = vmatpush2.msra.mxu0 0.0
    %3806 = vmatprep.subr.mxu0 0.0
    %3807 = vmatpush2.msra.mxu0 0.0
    %3808 = vmatprep.subr.mxu0 0.0
    %3809 = vmatpush2.msra.mxu0 0.0
    %3810 = vmatprep.subr.mxu0 0.0
    %3811 = vmatpush2.msra.mxu0 0.0
    %3812 = vmatprep.subr.mxu0 0.0
    %3813 = vmatpush2.msra.mxu0 0.0
    %3814 = vmatprep.subr.mxu0 0.0
    %3815 = vmatpush2.msra.mxu0 0.0
    %3816 = vmatprep.subr.mxu0 0.0
    %3817 = vmatpush2.msra.mxu0 0.0
    %3818 = vmatprep.subr.mxu0 0.0
    %3819 = vmatpush2.msra.mxu0 0.0
    %3820 = vmatprep.subr.mxu0 0.0
    %3821 = vmatpush2.msra.mxu0 0.0
    %3822 = vmatprep.subr.mxu0 0.0
    %3823 = vmatpush2.msra.mxu0 0.0
    %3824 = vmatprep.subr.mxu0 0.0
    %3825 = vmatpush2.msra.mxu0 0.0
    %3826 = vmatprep.mubr.f32.mxu0 0.0
    %3827 = vmatmul.mubr.f32.gmra.mxu0 %v3760
    %v3828 = vpop.f32.mrf.mxu0
    %v3829 = vadd.f32 %v2915, %v3828
    %v3830 = vpop.f32.mrf.mxu0
    %3831 = vdwg.mxu0
    %s3832 = scalar_lea.vmem [#allocation21], 6
    %3833 = vst [vmem:[%s3832] sm:$0x3] %v3829
    %s3834 = sld [smem:[#allocation6 + $0x3]]
    %p3835 = scmp.gt.s32.totalorder %s3834, 0
    %s3836 = scalar_lea.vmem [#allocation2], 6
    %v3837 = vld [vmem:[%s3836] sm:$0x3]
    %s3838 = scalar_select %p3835, 1, 0
    %v3839 = vstv %s3838
    %vm3840 = vcmp.eq.s32.totalorder %v3839, 1
    %v3841 = vsel %vm3840, %v3837, %v3829
    %3842 = vmatprep.subr.mxu0 0.0
    %3843 = vmatpush1.msra.mxu0 0.0
    %3844 = vmatprep.subr.mxu0 0.0
    %3845 = vmatpush1.msra.mxu0 0.0
    %3846 = vmatprep.subr.mxu0 0.0
    %3847 = vmatpush1.msra.mxu0 0.0
    %3848 = vmatprep.subr.mxu0 0.0
    %3849 = vmatpush1.msra.mxu0 0.0
    %3850 = vmatprep.subr.mxu0 0.0
    %3851 = vmatpush1.msra.mxu0 0.0
    %3852 = vmatprep.subr.mxu0 0.0
    %3853 = vmatpush1.msra.mxu0 0.0
    %3854 = vmatprep.subr.mxu0 0.0
    %3855 = vmatpush1.msra.mxu0 0.0
    %3856 = vmatprep.subr.mxu0 0.0
    %3857 = vmatpush1.msra.mxu0 0.0
    %3858 = vmatprep.subr.mxu0 0.0
    %3859 = vmatpush1.msra.mxu0 0.0
    %3860 = vmatprep.subr.mxu0 0.0
    %3861 = vmatpush1.msra.mxu0 0.0
    %3862 = vmatprep.subr.mxu0 0.0
    %3863 = vmatpush1.msra.mxu0 0.0
    %3864 = vmatprep.subr.mxu0 0.0
    %3865 = vmatpush1.msra.mxu0 0.0
    %3866 = vmatprep.subr.mxu0 0.0
    %3867 = vmatpush1.msra.mxu0 %v2539
    %3868 = vmatprep.subr.mxu0 0.0
    %3869 = vmatpush1.msra.mxu0 %v2538
    %3870 = vmatprep.subr.mxu0 0.0
    %3871 = vmatpush1.msra.mxu0 %v2537
    %3872 = vmatprep.subr.mxu0 0.0
    %3873 = vmatpush1.msra.mxu0 %v2536
    %3874 = vmatprep.subr.mxu0 0.0
    %3875 = vmatpush2.msra.mxu0 0.0
    %3876 = vmatprep.subr.mxu0 0.0
    %3877 = vmatpush2.msra.mxu0 0.0
    %3878 = vmatprep.subr.mxu0 0.0
    %3879 = vmatpush2.msra.mxu0 0.0
    %3880 = vmatprep.subr.mxu0 0.0
    %3881 = vmatpush2.msra.mxu0 0.0
    %3882 = vmatprep.subr.mxu0 0.0
    %3883 = vmatpush2.msra.mxu0 0.0
    %3884 = vmatprep.subr.mxu0 0.0
    %3885 = vmatpush2.msra.mxu0 0.0
    %3886 = vmatprep.subr.mxu0 0.0
    %3887 = vmatpush2.msra.mxu0 0.0
    %3888 = vmatprep.subr.mxu0 0.0
    %3889 = vmatpush2.msra.mxu0 0.0
    %3890 = vmatprep.subr.mxu0 0.0
    %3891 = vmatpush2.msra.mxu0 0.0
    %3892 = vmatprep.subr.mxu0 0.0
    %3893 = vmatpush2.msra.mxu0 0.0
    %3894 = vmatprep.subr.mxu0 0.0
    %3895 = vmatpush2.msra.mxu0 0.0
    %3896 = vmatprep.subr.mxu0 0.0
    %3897 = vmatpush2.msra.mxu0 0.0
    %3898 = vmatprep.subr.mxu0 0.0
    %3899 = vmatpush2.msra.mxu0 0.0
    %3900 = vmatprep.subr.mxu0 0.0
    %3901 = vmatpush2.msra.mxu0 0.0
    %3902 = vmatprep.subr.mxu0 0.0
    %3903 = vmatpush2.msra.mxu0 0.0
    %3904 = vmatprep.subr.mxu0 0.0
    %3905 = vmatpush2.msra.mxu0 0.0
    %3906 = vmatprep.mubr.f32.mxu0 0.0
    %3907 = vmatmul.mubr.f32.gmra.mxu0 %v3660
    %v3908 = vpop.f32.mrf.mxu0
    %v3909 = vadd.f32 0.0, %v3908
    %v3910 = vpop.f32.mrf.mxu0
    %3911 = vdwg.mxu0
    %3912 = vmatprep.subr.mxu0 0.0
    %3913 = vmatpush1.msra.mxu0 %v2535
    %3914 = vmatprep.subr.mxu0 0.0
    %3915 = vmatpush1.msra.mxu0 %v2534
    %3916 = vmatprep.subr.mxu0 0.0
    %3917 = vmatpush1.msra.mxu0 %v2533
    %3918 = vmatprep.subr.mxu0 0.0
    %3919 = vmatpush1.msra.mxu0 %v2532
    %3920 = vmatprep.subr.mxu0 0.0
    %3921 = vmatpush1.msra.mxu0 %v2531
    %3922 = vmatprep.subr.mxu0 0.0
    %3923 = vmatpush1.msra.mxu0 %v2530
    %3924 = vmatprep.subr.mxu0 0.0
    %3925 = vmatpush1.msra.mxu0 %v2529
    %3926 = vmatprep.subr.mxu0 0.0
    %3927 = vmatpush1.msra.mxu0 %v2528
    %3928 = vmatprep.subr.mxu0 0.0
    %3929 = vmatpush1.msra.mxu0 %v2527
    %3930 = vmatprep.subr.mxu0 0.0
    %3931 = vmatpush1.msra.mxu0 %v2526
    %3932 = vmatprep.subr.mxu0 0.0
    %3933 = vmatpush1.msra.mxu0 %v2525
    %3934 = vmatprep.subr.mxu0 0.0
    %3935 = vmatpush1.msra.mxu0 %v2524
    %3936 = vmatprep.subr.mxu0 0.0
    %3937 = vmatpush1.msra.mxu0 %v2523
    %3938 = vmatprep.subr.mxu0 0.0
    %3939 = vmatpush1.msra.mxu0 %v2522
    %3940 = vmatprep.subr.mxu0 0.0
    %3941 = vmatpush1.msra.mxu0 %v2521
    %3942 = vmatprep.subr.mxu0 0.0
    %3943 = vmatpush1.msra.mxu0 %v2520
    %3944 = vmatprep.subr.mxu0 0.0
    %3945 = vmatpush2.msra.mxu0 0.0
    %3946 = vmatprep.subr.mxu0 0.0
    %3947 = vmatpush2.msra.mxu0 0.0
    %3948 = vmatprep.subr.mxu0 0.0
    %3949 = vmatpush2.msra.mxu0 0.0
    %3950 = vmatprep.subr.mxu0 0.0
    %3951 = vmatpush2.msra.mxu0 0.0
    %3952 = vmatprep.subr.mxu0 0.0
    %3953 = vmatpush2.msra.mxu0 0.0
    %3954 = vmatprep.subr.mxu0 0.0
    %3955 = vmatpush2.msra.mxu0 0.0
    %3956 = vmatprep.subr.mxu0 0.0
    %3957 = vmatpush2.msra.mxu0 0.0
    %3958 = vmatprep.subr.mxu0 0.0
    %3959 = vmatpush2.msra.mxu0 0.0
    %3960 = vmatprep.subr.mxu0 0.0
    %3961 = vmatpush2.msra.mxu0 0.0
    %3962 = vmatprep.subr.mxu0 0.0
    %3963 = vmatpush2.msra.mxu0 0.0
    %3964 = vmatprep.subr.mxu0 0.0
    %3965 = vmatpush2.msra.mxu0 0.0
    %3966 = vmatprep.subr.mxu0 0.0
    %3967 = vmatpush2.msra.mxu0 0.0
    %3968 = vmatprep.subr.mxu0 0.0
    %3969 = vmatpush2.msra.mxu0 0.0
    %3970 = vmatprep.subr.mxu0 0.0
    %3971 = vmatpush2.msra.mxu0 0.0
    %3972 = vmatprep.subr.mxu0 0.0
    %3973 = vmatpush2.msra.mxu0 0.0
    %3974 = vmatprep.subr.mxu0 0.0
    %3975 = vmatpush2.msra.mxu0 0.0
    %3976 = vmatprep.mubr.f32.mxu0 0.0
    %3977 = vmatmul.mubr.f32.gmra.mxu0 %v3841
    %v3978 = vpop.f32.mrf.mxu0
    %v3979 = vadd.f32 %v3909, %v3978
    %v3980 = vpop.f32.mrf.mxu0
    %3981 = vdwg.mxu0
    %v3982 = vadd.f32 %v3979, %v2700
    %v3983 = vxor.u32 %v3982, 2147483648
    %v3984 = vmul.f32 %v3983, 1.442695
    %v3985 = vpow.pop %v3984
    %v3986 = vadd.f32 %v3985, 1.0
    %v3987 = vrcp.pop %v3986
    %v3988 = vmul.f32 1.0, %v3987
    %v3989 = vtanh.pop %v3982
    %v3990 = vmul.f32 %v3988, %v3580
    %3992 = vrot.lane.b32.xlu0 %v3989, 64
    %v3993 = vpop.permute.xlu0 %3992
    %v3995 = vmul.f32 %v3988, %v3993
    %3997 = vrot.lane.b32.xlu0 %v3995, 32
    %v3998 = vpop.permute.xlu0 %3997
    %v4000 = vadd.f32 %v3990, %v3998
    %v4001 = vtanh.pop %v4000
    %4003 = vrot.lane.b32.xlu0 %v4001, 64
    %v4004 = vpop.permute.xlu0 %4003
    %v4006 = vmul.f32 %v3988, %v4004
    %4007 = vmatprep.subr.mxu0 0.0
    %4008 = vmatpush1.msra.mxu0 0.0
    %4009 = vmatprep.subr.mxu0 0.0
    %4010 = vmatpush1.msra.mxu0 0.0
    %4011 = vmatprep.subr.mxu0 0.0
    %4012 = vmatpush1.msra.mxu0 0.0
    %4013 = vmatprep.subr.mxu0 0.0
    %4014 = vmatpush1.msra.mxu0 0.0
    %4015 = vmatprep.subr.mxu0 0.0
    %4016 = vmatpush1.msra.mxu0 0.0
    %4017 = vmatprep.subr.mxu0 0.0
    %4018 = vmatpush1.msra.mxu0 0.0
    %4019 = vmatprep.subr.mxu0 0.0
    %4020 = vmatpush1.msra.mxu0 0.0
    %4021 = vmatprep.subr.mxu0 0.0
    %4022 = vmatpush1.msra.mxu0 0.0
    %4023 = vmatprep.subr.mxu0 0.0
    %4024 = vmatpush1.msra.mxu0 0.0
    %4025 = vmatprep.subr.mxu0 0.0
    %4026 = vmatpush1.msra.mxu0 0.0
    %4027 = vmatprep.subr.mxu0 0.0
    %4028 = vmatpush1.msra.mxu0 0.0
    %4029 = vmatprep.subr.mxu0 0.0
    %4030 = vmatpush1.msra.mxu0 0.0
    %4031 = vmatprep.subr.mxu0 0.0
    %4032 = vmatpush1.msra.mxu0 %v2548
    %4033 = vmatprep.subr.mxu0 0.0
    %4034 = vmatpush1.msra.mxu0 %v2547
    %4035 = vmatprep.subr.mxu0 0.0
    %4036 = vmatpush1.msra.mxu0 %v2546
    %4037 = vmatprep.subr.mxu0 0.0
    %4038 = vmatpush1.msra.mxu0 %v2545
    %4039 = vmatprep.subr.mxu0 0.0
    %4040 = vmatpush2.msra.mxu0 0.0
    %4041 = vmatprep.subr.mxu0 0.0
    %4042 = vmatpush2.msra.mxu0 0.0
    %4043 = vmatprep.subr.mxu0 0.0
    %4044 = vmatpush2.msra.mxu0 0.0
    %4045 = vmatprep.subr.mxu0 0.0
    %4046 = vmatpush2.msra.mxu0 0.0
    %4047 = vmatprep.subr.mxu0 0.0
    %4048 = vmatpush2.msra.mxu0 0.0
    %4049 = vmatprep.subr.mxu0 0.0
    %4050 = vmatpush2.msra.mxu0 0.0
    %4051 = vmatprep.subr.mxu0 0.0
    %4052 = vmatpush2.msra.mxu0 0.0
    %4053 = vmatprep.subr.mxu0 0.0
    %4054 = vmatpush2.msra.mxu0 0.0
    %4055 = vmatprep.subr.mxu0 0.0
    %4056 = vmatpush2.msra.mxu0 0.0
    %4057 = vmatprep.subr.mxu0 0.0
    %4058 = vmatpush2.msra.mxu0 0.0
    %4059 = vmatprep.subr.mxu0 0.0
    %4060 = vmatpush2.msra.mxu0 0.0
    %4061 = vmatprep.subr.mxu0 0.0
    %4062 = vmatpush2.msra.mxu0 0.0
    %4063 = vmatprep.subr.mxu0 0.0
    %4064 = vmatpush2.msra.mxu0 0.0
    %4065 = vmatprep.subr.mxu0 0.0
    %4066 = vmatpush2.msra.mxu0 0.0
    %4067 = vmatprep.subr.mxu0 0.0
    %4068 = vmatpush2.msra.mxu0 0.0
    %4069 = vmatprep.subr.mxu0 0.0
    %4070 = vmatpush2.msra.mxu0 0.0
    %4071 = vmatprep.mubr.f32.mxu0 0.0
    %4072 = vmatmul.mubr.f32.gmra.mxu0 %v3760
    %v4073 = vpop.f32.mrf.mxu0
    %v4074 = vadd.f32 0.0, %v4073
    %v4075 = vpop.f32.mrf.mxu0
    %4076 = vdwg.mxu0
    %4078 = vrot.lane.b32.xlu0 %v4006, 32
    %v4079 = vpop.permute.xlu0 %4078
    %v4080 = vsel %vm310, %v4079, 0
    %4082 = vmatprep.subr.mxu0 0.0
    %4083 = vmatpush1.msra.mxu0 0.0
    %4084 = vmatprep.subr.mxu0 0.0
    %4085 = vmatpush1.msra.mxu0 0.0
    %4086 = vmatprep.subr.mxu0 0.0
    %4087 = vmatpush1.msra.mxu0 0.0
    %4088 = vmatprep.subr.mxu0 0.0
    %4089 = vmatpush1.msra.mxu0 0.0
    %4090 = vmatprep.subr.mxu0 0.0
    %4091 = vmatpush1.msra.mxu0 0.0
    %4092 = vmatprep.subr.mxu0 0.0
    %4093 = vmatpush1.msra.mxu0 0.0
    %4094 = vmatprep.subr.mxu0 0.0
    %4095 = vmatpush1.msra.mxu0 0.0
    %4096 = vmatprep.subr.mxu0 0.0
    %4097 = vmatpush1.msra.mxu0 0.0
    %4098 = vmatprep.subr.mxu0 0.0
    %4099 = vmatpush1.msra.mxu0 0.0
    %4100 = vmatprep.subr.mxu0 0.0
    %4101 = vmatpush1.msra.mxu0 0.0
    %4102 = vmatprep.subr.mxu0 0.0
    %4103 = vmatpush1.msra.mxu0 0.0
    %4104 = vmatprep.subr.mxu0 0.0
    %4105 = vmatpush1.msra.mxu0 0.0
    %4106 = vmatprep.subr.mxu0 0.0
    %4107 = vmatpush1.msra.mxu0 %v2544
    %4108 = vmatprep.subr.mxu0 0.0
    %4109 = vmatpush1.msra.mxu0 %v2543
    %4110 = vmatprep.subr.mxu0 0.0
    %4111 = vmatpush1.msra.mxu0 %v2542
    %4112 = vmatprep.subr.mxu0 0.0
    %4113 = vmatpush1.msra.mxu0 %v2541
    %4114 = vmatprep.subr.mxu0 0.0
    %4115 = vmatpush2.msra.mxu0 0.0
    %4116 = vmatprep.subr.mxu0 0.0
    %4117 = vmatpush2.msra.mxu0 0.0
    %4118 = vmatprep.subr.mxu0 0.0
    %4119 = vmatpush2.msra.mxu0 0.0
    %4120 = vmatprep.subr.mxu0 0.0
    %4121 = vmatpush2.msra.mxu0 0.0
    %4122 = vmatprep.subr.mxu0 0.0
    %4123 = vmatpush2.msra.mxu0 0.0
    %4124 = vmatprep.subr.mxu0 0.0
    %4125 = vmatpush2.msra.mxu0 0.0
    %4126 = vmatprep.subr.mxu0 0.0
    %4127 = vmatpush2.msra.mxu0 0.0
    %4128 = vmatprep.subr.mxu0 0.0
    %4129 = vmatpush2.msra.mxu0 0.0
    %4130 = vmatprep.subr.mxu0 0.0
    %4131 = vmatpush2.msra.mxu0 0.0
    %4132 = vmatprep.subr.mxu0 0.0
    %4133 = vmatpush2.msra.mxu0 0.0
    %4134 = vmatprep.subr.mxu0 0.0
    %4135 = vmatpush2.msra.mxu0 0.0
    %4136 = vmatprep.subr.mxu0 0.0
    %4137 = vmatpush2.msra.mxu0 0.0
    %4138 = vmatprep.subr.mxu0 0.0
    %4139 = vmatpush2.msra.mxu0 0.0
    %4140 = vmatprep.subr.mxu0 0.0
    %4141 = vmatpush2.msra.mxu0 0.0
    %4142 = vmatprep.subr.mxu0 0.0
    %4143 = vmatpush2.msra.mxu0 0.0
    %4144 = vmatprep.subr.mxu0 0.0
    %4145 = vmatpush2.msra.mxu0 0.0
    %4146 = vmatprep.mubr.f32.mxu0 0.0
    %4147 = vmatmul.mubr.f32.gmra.mxu0 %v4080
    %v4148 = vpop.f32.mrf.mxu0
    %v4149 = vadd.f32 %v4074, %v4148
    %v4150 = vpop.f32.mrf.mxu0
    %4151 = vdwg.mxu0
    %v4152 = vadd.f32 %v4149, %v2884
    %v4153 = vxor.u32 %v4152, 2147483648
    %v4154 = vmul.f32 %v4153, 1.442695
    %v4155 = vpow.pop %v4154
    %v4156 = vadd.f32 %v4155, 1.0
    %v4157 = vrcp.pop %v4156
    %v4158 = vmul.f32 1.0, %v4157
    %v4159 = vtanh.pop %v4152
    %v4160 = vmul.f32 %v4158, %v3750
    %4162 = vrot.lane.b32.xlu0 %v4159, 64
    %v4163 = vpop.permute.xlu0 %4162
    %v4165 = vmul.f32 %v4158, %v4163
    %4167 = vrot.lane.b32.xlu0 %v4165, 32
    %v4168 = vpop.permute.xlu0 %4167
    %v4170 = vadd.f32 %v4160, %v4168
    %v4171 = vtanh.pop %v4170
    %4173 = vrot.lane.b32.xlu0 %v4171, 64
    %v4174 = vpop.permute.xlu0 %4173
    %v4176 = vmul.f32 %v4158, %v4174
    %4178 = vrot.lane.b32.xlu0 %v4176, 32
    %v4179 = vpop.permute.xlu0 %4178
    %v4180 = vsel %vm310, %v4179, 0
    %4182 = vmatprep.subr.mxu0 0.0
    %4183 = vmatpush1.msra.mxu0 0.0
    %4184 = vmatprep.subr.mxu0 0.0
    %4185 = vmatpush1.msra.mxu0 0.0
    %4186 = vmatprep.subr.mxu0 0.0
    %4187 = vmatpush1.msra.mxu0 0.0
    %4188 = vmatprep.subr.mxu0 0.0
    %4189 = vmatpush1.msra.mxu0 0.0
    %4190 = vmatprep.subr.mxu0 0.0
    %4191 = vmatpush1.msra.mxu0 0.0
    %4192 = vmatprep.subr.mxu0 0.0
    %4193 = vmatpush1.msra.mxu0 0.0
    %4194 = vmatprep.subr.mxu0 0.0
    %4195 = vmatpush1.msra.mxu0 0.0
    %4196 = vmatprep.subr.mxu0 0.0
    %4197 = vmatpush1.msra.mxu0 0.0
    %4198 = vmatprep.subr.mxu0 0.0
    %4199 = vmatpush1.msra.mxu0 0.0
    %4200 = vmatprep.subr.mxu0 0.0
    %4201 = vmatpush1.msra.mxu0 0.0
    %4202 = vmatprep.subr.mxu0 0.0
    %4203 = vmatpush1.msra.mxu0 0.0
    %4204 = vmatprep.subr.mxu0 0.0
    %4205 = vmatpush1.msra.mxu0 0.0
    %4206 = vmatprep.subr.mxu0 0.0
    %4207 = vmatpush1.msra.mxu0 %v2553
    %4208 = vmatprep.subr.mxu0 0.0
    %4209 = vmatpush1.msra.mxu0 %v2552
    %4210 = vmatprep.subr.mxu0 0.0
    %4211 = vmatpush1.msra.mxu0 %v2551
    %4212 = vmatprep.subr.mxu0 0.0
    %4213 = vmatpush1.msra.mxu0 %v2550
    %4214 = vmatprep.subr.mxu0 0.0
    %4215 = vmatpush2.msra.mxu0 0.0
    %4216 = vmatprep.subr.mxu0 0.0
    %4217 = vmatpush2.msra.mxu0 0.0
    %4218 = vmatprep.subr.mxu0 0.0
    %4219 = vmatpush2.msra.mxu0 0.0
    %4220 = vmatprep.subr.mxu0 0.0
    %4221 = vmatpush2.msra.mxu0 0.0
    %4222 = vmatprep.subr.mxu0 0.0
    %4223 = vmatpush2.msra.mxu0 0.0
    %4224 = vmatprep.subr.mxu0 0.0
    %4225 = vmatpush2.msra.mxu0 0.0
    %4226 = vmatprep.subr.mxu0 0.0
    %4227 = vmatpush2.msra.mxu0 0.0
    %4228 = vmatprep.subr.mxu0 0.0
    %4229 = vmatpush2.msra.mxu0 0.0
    %4230 = vmatprep.subr.mxu0 0.0
    %4231 = vmatpush2.msra.mxu0 0.0
    %4232 = vmatprep.subr.mxu0 0.0
    %4233 = vmatpush2.msra.mxu0 0.0
    %4234 = vmatprep.subr.mxu0 0.0
    %4235 = vmatpush2.msra.mxu0 0.0
    %4236 = vmatprep.subr.mxu0 0.0
    %4237 = vmatpush2.msra.mxu0 0.0
    %4238 = vmatprep.subr.mxu0 0.0
    %4239 = vmatpush2.msra.mxu0 0.0
    %4240 = vmatprep.subr.mxu0 0.0
    %4241 = vmatpush2.msra.mxu0 0.0
    %4242 = vmatprep.subr.mxu0 0.0
    %4243 = vmatpush2.msra.mxu0 0.0
    %4244 = vmatprep.subr.mxu0 0.0
    %4245 = vmatpush2.msra.mxu0 0.0
    %4246 = vmatprep.mubr.f32.mxu0 0.0
    %4247 = vmatmul.mubr.f32.gmra.mxu0 %v4180
    %v4248 = vpop.f32.mrf.mxu0
    %v4249 = vadd.f32 %v2915, %v4248
    %v4250 = vpop.f32.mrf.mxu0
    %4251 = vdwg.mxu0
    %s4252 = scalar_lea.vmem [#allocation21], 8
    %4253 = vst [vmem:[%s4252] sm:$0x3] %v4249
    %s4254 = sld [smem:[#allocation6 + $0x4]]
    %p4255 = scmp.gt.s32.totalorder %s4254, 0
    %s4256 = scalar_lea.vmem [#allocation2], 8
    %v4257 = vld [vmem:[%s4256] sm:$0x3]
    %s4258 = scalar_select %p4255, 1, 0
    %v4259 = vstv %s4258
    %vm4260 = vcmp.eq.s32.totalorder %v4259, 1
    %v4261 = vsel %vm4260, %v4257, %v4249
    %4262 = vmatprep.subr.mxu0 0.0
    %4263 = vmatpush1.msra.mxu0 0.0
    %4264 = vmatprep.subr.mxu0 0.0
    %4265 = vmatpush1.msra.mxu0 0.0
    %4266 = vmatprep.subr.mxu0 0.0
    %4267 = vmatpush1.msra.mxu0 0.0
    %4268 = vmatprep.subr.mxu0 0.0
    %4269 = vmatpush1.msra.mxu0 0.0
    %4270 = vmatprep.subr.mxu0 0.0
    %4271 = vmatpush1.msra.mxu0 0.0
    %4272 = vmatprep.subr.mxu0 0.0
    %4273 = vmatpush1.msra.mxu0 0.0
    %4274 = vmatprep.subr.mxu0 0.0
    %4275 = vmatpush1.msra.mxu0 0.0
    %4276 = vmatprep.subr.mxu0 0.0
    %4277 = vmatpush1.msra.mxu0 0.0
    %4278 = vmatprep.subr.mxu0 0.0
    %4279 = vmatpush1.msra.mxu0 0.0
    %4280 = vmatprep.subr.mxu0 0.0
    %4281 = vmatpush1.msra.mxu0 0.0
    %4282 = vmatprep.subr.mxu0 0.0
    %4283 = vmatpush1.msra.mxu0 0.0
    %4284 = vmatprep.subr.mxu0 0.0
    %4285 = vmatpush1.msra.mxu0 0.0
    %4286 = vmatprep.subr.mxu0 0.0
    %4287 = vmatpush1.msra.mxu0 %v2539
    %4288 = vmatprep.subr.mxu0 0.0
    %4289 = vmatpush1.msra.mxu0 %v2538
    %4290 = vmatprep.subr.mxu0 0.0
    %4291 = vmatpush1.msra.mxu0 %v2537
    %4292 = vmatprep.subr.mxu0 0.0
    %4293 = vmatpush1.msra.mxu0 %v2536
    %4294 = vmatprep.subr.mxu0 0.0
    %4295 = vmatpush2.msra.mxu0 0.0
    %4296 = vmatprep.subr.mxu0 0.0
    %4297 = vmatpush2.msra.mxu0 0.0
    %4298 = vmatprep.subr.mxu0 0.0
    %4299 = vmatpush2.msra.mxu0 0.0
    %4300 = vmatprep.subr.mxu0 0.0
    %4301 = vmatpush2.msra.mxu0 0.0
    %4302 = vmatprep.subr.mxu0 0.0
    %4303 = vmatpush2.msra.mxu0 0.0
    %4304 = vmatprep.subr.mxu0 0.0
    %4305 = vmatpush2.msra.mxu0 0.0
    %4306 = vmatprep.subr.mxu0 0.0
    %4307 = vmatpush2.msra.mxu0 0.0
    %4308 = vmatprep.subr.mxu0 0.0
    %4309 = vmatpush2.msra.mxu0 0.0
    %4310 = vmatprep.subr.mxu0 0.0
    %4311 = vmatpush2.msra.mxu0 0.0
    %4312 = vmatprep.subr.mxu0 0.0
    %4313 = vmatpush2.msra.mxu0 0.0
    %4314 = vmatprep.subr.mxu0 0.0
    %4315 = vmatpush2.msra.mxu0 0.0
    %4316 = vmatprep.subr.mxu0 0.0
    %4317 = vmatpush2.msra.mxu0 0.0
    %4318 = vmatprep.subr.mxu0 0.0
    %4319 = vmatpush2.msra.mxu0 0.0
    %4320 = vmatprep.subr.mxu0 0.0
    %4321 = vmatpush2.msra.mxu0 0.0
    %4322 = vmatprep.subr.mxu0 0.0
    %4323 = vmatpush2.msra.mxu0 0.0
    %4324 = vmatprep.subr.mxu0 0.0
    %4325 = vmatpush2.msra.mxu0 0.0
    %4326 = vmatprep.mubr.f32.mxu0 0.0
    %4327 = vmatmul.mubr.f32.gmra.mxu0 %v4080
    %v4328 = vpop.f32.mrf.mxu0
    %v4329 = vadd.f32 0.0, %v4328
    %v4330 = vpop.f32.mrf.mxu0
    %4331 = vdwg.mxu0
    %4332 = vmatprep.subr.mxu0 0.0
    %4333 = vmatpush1.msra.mxu0 %v2535
    %4334 = vmatprep.subr.mxu0 0.0
    %4335 = vmatpush1.msra.mxu0 %v2534
    %4336 = vmatprep.subr.mxu0 0.0
    %4337 = vmatpush1.msra.mxu0 %v2533
    %4338 = vmatprep.subr.mxu0 0.0
    %4339 = vmatpush1.msra.mxu0 %v2532
    %4340 = vmatprep.subr.mxu0 0.0
    %4341 = vmatpush1.msra.mxu0 %v2531
    %4342 = vmatprep.subr.mxu0 0.0
    %4343 = vmatpush1.msra.mxu0 %v2530
    %4344 = vmatprep.subr.mxu0 0.0
    %4345 = vmatpush1.msra.mxu0 %v2529
    %4346 = vmatprep.subr.mxu0 0.0
    %4347 = vmatpush1.msra.mxu0 %v2528
    %4348 = vmatprep.subr.mxu0 0.0
    %4349 = vmatpush1.msra.mxu0 %v2527
    %4350 = vmatprep.subr.mxu0 0.0
    %4351 = vmatpush1.msra.mxu0 %v2526
    %4352 = vmatprep.subr.mxu0 0.0
    %4353 = vmatpush1.msra.mxu0 %v2525
    %4354 = vmatprep.subr.mxu0 0.0
    %4355 = vmatpush1.msra.mxu0 %v2524
    %4356 = vmatprep.subr.mxu0 0.0
    %4357 = vmatpush1.msra.mxu0 %v2523
    %4358 = vmatprep.subr.mxu0 0.0
    %4359 = vmatpush1.msra.mxu0 %v2522
    %4360 = vmatprep.subr.mxu0 0.0
    %4361 = vmatpush1.msra.mxu0 %v2521
    %4362 = vmatprep.subr.mxu0 0.0
    %4363 = vmatpush1.msra.mxu0 %v2520
    %4364 = vmatprep.subr.mxu0 0.0
    %4365 = vmatpush2.msra.mxu0 0.0
    %4366 = vmatprep.subr.mxu0 0.0
    %4367 = vmatpush2.msra.mxu0 0.0
    %4368 = vmatprep.subr.mxu0 0.0
    %4369 = vmatpush2.msra.mxu0 0.0
    %4370 = vmatprep.subr.mxu0 0.0
    %4371 = vmatpush2.msra.mxu0 0.0
    %4372 = vmatprep.subr.mxu0 0.0
    %4373 = vmatpush2.msra.mxu0 0.0
    %4374 = vmatprep.subr.mxu0 0.0
    %4375 = vmatpush2.msra.mxu0 0.0
    %4376 = vmatprep.subr.mxu0 0.0
    %4377 = vmatpush2.msra.mxu0 0.0
    %4378 = vmatprep.subr.mxu0 0.0
    %4379 = vmatpush2.msra.mxu0 0.0
    %4380 = vmatprep.subr.mxu0 0.0
    %4381 = vmatpush2.msra.mxu0 0.0
    %4382 = vmatprep.subr.mxu0 0.0
    %4383 = vmatpush2.msra.mxu0 0.0
    %4384 = vmatprep.subr.mxu0 0.0
    %4385 = vmatpush2.msra.mxu0 0.0
    %4386 = vmatprep.subr.mxu0 0.0
    %4387 = vmatpush2.msra.mxu0 0.0
    %4388 = vmatprep.subr.mxu0 0.0
    %4389 = vmatpush2.msra.mxu0 0.0
    %4390 = vmatprep.subr.mxu0 0.0
    %4391 = vmatpush2.msra.mxu0 0.0
    %4392 = vmatprep.subr.mxu0 0.0
    %4393 = vmatpush2.msra.mxu0 0.0
    %4394 = vmatprep.subr.mxu0 0.0
    %4395 = vmatpush2.msra.mxu0 0.0
    %4396 = vmatprep.mubr.f32.mxu0 0.0
    %4397 = vmatmul.mubr.f32.gmra.mxu0 %v4261
    %v4398 = vpop.f32.mrf.mxu0
    %v4399 = vadd.f32 %v4329, %v4398
    %v4400 = vpop.f32.mrf.mxu0
    %4401 = vdwg.mxu0
    %v4402 = vadd.f32 %v4399, %v2700
    %v4403 = vxor.u32 %v4402, 2147483648
    %v4404 = vmul.f32 %v4403, 1.442695
    %v4405 = vpow.pop %v4404
    %v4406 = vadd.f32 %v4405, 1.0
    %v4407 = vrcp.pop %v4406
    %v4408 = vmul.f32 1.0, %v4407
    %v4409 = vtanh.pop %v4402
    %v4410 = vmul.f32 %v4408, %v4000
    %4412 = vrot.lane.b32.xlu0 %v4409, 64
    %v4413 = vpop.permute.xlu0 %4412
    %v4415 = vmul.f32 %v4408, %v4413
    %4417 = vrot.lane.b32.xlu0 %v4415, 32
    %v4418 = vpop.permute.xlu0 %4417
    %v4420 = vadd.f32 %v4410, %v4418
    %v4421 = vtanh.pop %v4420
    %4423 = vrot.lane.b32.xlu0 %v4421, 64
    %v4424 = vpop.permute.xlu0 %4423
    %v4426 = vmul.f32 %v4408, %v4424
    %4427 = vmatprep.subr.mxu0 0.0
    %4428 = vmatpush1.msra.mxu0 0.0
    %4429 = vmatprep.subr.mxu0 0.0
    %4430 = vmatpush1.msra.mxu0 0.0
    %4431 = vmatprep.subr.mxu0 0.0
    %4432 = vmatpush1.msra.mxu0 0.0
    %4433 = vmatprep.subr.mxu0 0.0
    %4434 = vmatpush1.msra.mxu0 0.0
    %4435 = vmatprep.subr.mxu0 0.0
    %4436 = vmatpush1.msra.mxu0 0.0
    %4437 = vmatprep.subr.mxu0 0.0
    %4438 = vmatpush1.msra.mxu0 0.0
    %4439 = vmatprep.subr.mxu0 0.0
    %4440 = vmatpush1.msra.mxu0 0.0
    %4441 = vmatprep.subr.mxu0 0.0
    %4442 = vmatpush1.msra.mxu0 0.0
    %4443 = vmatprep.subr.mxu0 0.0
    %4444 = vmatpush1.msra.mxu0 0.0
    %4445 = vmatprep.subr.mxu0 0.0
    %4446 = vmatpush1.msra.mxu0 0.0
    %4447 = vmatprep.subr.mxu0 0.0
    %4448 = vmatpush1.msra.mxu0 0.0
    %4449 = vmatprep.subr.mxu0 0.0
    %4450 = vmatpush1.msra.mxu0 0.0
    %4451 = vmatprep.subr.mxu0 0.0
    %4452 = vmatpush1.msra.mxu0 %v2548
    %4453 = vmatprep.subr.mxu0 0.0
    %4454 = vmatpush1.msra.mxu0 %v2547
    %4455 = vmatprep.subr.mxu0 0.0
    %4456 = vmatpush1.msra.mxu0 %v2546
    %4457 = vmatprep.subr.mxu0 0.0
    %4458 = vmatpush1.msra.mxu0 %v2545
    %4459 = vmatprep.subr.mxu0 0.0
    %4460 = vmatpush2.msra.mxu0 0.0
    %4461 = vmatprep.subr.mxu0 0.0
    %4462 = vmatpush2.msra.mxu0 0.0
    %4463 = vmatprep.subr.mxu0 0.0
    %4464 = vmatpush2.msra.mxu0 0.0
    %4465 = vmatprep.subr.mxu0 0.0
    %4466 = vmatpush2.msra.mxu0 0.0
    %4467 = vmatprep.subr.mxu0 0.0
    %4468 = vmatpush2.msra.mxu0 0.0
    %4469 = vmatprep.subr.mxu0 0.0
    %4470 = vmatpush2.msra.mxu0 0.0
    %4471 = vmatprep.subr.mxu0 0.0
    %4472 = vmatpush2.msra.mxu0 0.0
    %4473 = vmatprep.subr.mxu0 0.0
    %4474 = vmatpush2.msra.mxu0 0.0
    %4475 = vmatprep.subr.mxu0 0.0
    %4476 = vmatpush2.msra.mxu0 0.0
    %4477 = vmatprep.subr.mxu0 0.0
    %4478 = vmatpush2.msra.mxu0 0.0
    %4479 = vmatprep.subr.mxu0 0.0
    %4480 = vmatpush2.msra.mxu0 0.0
    %4481 = vmatprep.subr.mxu0 0.0
    %4482 = vmatpush2.msra.mxu0 0.0
    %4483 = vmatprep.subr.mxu0 0.0
    %4484 = vmatpush2.msra.mxu0 0.0
    %4485 = vmatprep.subr.mxu0 0.0
    %4486 = vmatpush2.msra.mxu0 0.0
    %4487 = vmatprep.subr.mxu0 0.0
    %4488 = vmatpush2.msra.mxu0 0.0
    %4489 = vmatprep.subr.mxu0 0.0
    %4490 = vmatpush2.msra.mxu0 0.0
    %4491 = vmatprep.mubr.f32.mxu0 0.0
    %4492 = vmatmul.mubr.f32.gmra.mxu0 %v4180
    %v4493 = vpop.f32.mrf.mxu0
    %v4494 = vadd.f32 0.0, %v4493
    %v4495 = vpop.f32.mrf.mxu0
    %4496 = vdwg.mxu0
    %4498 = vrot.lane.b32.xlu0 %v4426, 32
    %v4499 = vpop.permute.xlu0 %4498
    %v4500 = vsel %vm310, %v4499, 0
    %4502 = vmatprep.subr.mxu0 0.0
    %4503 = vmatpush1.msra.mxu0 0.0
    %4504 = vmatprep.subr.mxu0 0.0
    %4505 = vmatpush1.msra.mxu0 0.0
    %4506 = vmatprep.subr.mxu0 0.0
    %4507 = vmatpush1.msra.mxu0 0.0
    %4508 = vmatprep.subr.mxu0 0.0
    %4509 = vmatpush1.msra.mxu0 0.0
    %4510 = vmatprep.subr.mxu0 0.0
    %4511 = vmatpush1.msra.mxu0 0.0
    %4512 = vmatprep.subr.mxu0 0.0
    %4513 = vmatpush1.msra.mxu0 0.0
    %4514 = vmatprep.subr.mxu0 0.0
    %4515 = vmatpush1.msra.mxu0 0.0
    %4516 = vmatprep.subr.mxu0 0.0
    %4517 = vmatpush1.msra.mxu0 0.0
    %4518 = vmatprep.subr.mxu0 0.0
    %4519 = vmatpush1.msra.mxu0 0.0
    %4520 = vmatprep.subr.mxu0 0.0
    %4521 = vmatpush1.msra.mxu0 0.0
    %4522 = vmatprep.subr.mxu0 0.0
    %4523 = vmatpush1.msra.mxu0 0.0
    %4524 = vmatprep.subr.mxu0 0.0
    %4525 = vmatpush1.msra.mxu0 0.0
    %4526 = vmatprep.subr.mxu0 0.0
    %4527 = vmatpush1.msra.mxu0 %v2544
    %4528 = vmatprep.subr.mxu0 0.0
    %4529 = vmatpush1.msra.mxu0 %v2543
    %4530 = vmatprep.subr.mxu0 0.0
    %4531 = vmatpush1.msra.mxu0 %v2542
    %4532 = vmatprep.subr.mxu0 0.0
    %4533 = vmatpush1.msra.mxu0 %v2541
    %4534 = vmatprep.subr.mxu0 0.0
    %4535 = vmatpush2.msra.mxu0 0.0
    %4536 = vmatprep.subr.mxu0 0.0
    %4537 = vmatpush2.msra.mxu0 0.0
    %4538 = vmatprep.subr.mxu0 0.0
    %4539 = vmatpush2.msra.mxu0 0.0
    %4540 = vmatprep.subr.mxu0 0.0
    %4541 = vmatpush2.msra.mxu0 0.0
    %4542 = vmatprep.subr.mxu0 0.0
    %4543 = vmatpush2.msra.mxu0 0.0
    %4544 = vmatprep.subr.mxu0 0.0
    %4545 = vmatpush2.msra.mxu0 0.0
    %4546 = vmatprep.subr.mxu0 0.0
    %4547 = vmatpush2.msra.mxu0 0.0
    %4548 = vmatprep.subr.mxu0 0.0
    %4549 = vmatpush2.msra.mxu0 0.0
    %4550 = vmatprep.subr.mxu0 0.0
    %4551 = vmatpush2.msra.mxu0 0.0
    %4552 = vmatprep.subr.mxu0 0.0
    %4553 = vmatpush2.msra.mxu0 0.0
    %4554 = vmatprep.subr.mxu0 0.0
    %4555 = vmatpush2.msra.mxu0 0.0
    %4556 = vmatprep.subr.mxu0 0.0
    %4557 = vmatpush2.msra.mxu0 0.0
    %4558 = vmatprep.subr.mxu0 0.0
    %4559 = vmatpush2.msra.mxu0 0.0
    %4560 = vmatprep.subr.mxu0 0.0
    %4561 = vmatpush2.msra.mxu0 0.0
    %4562 = vmatprep.subr.mxu0 0.0
    %4563 = vmatpush2.msra.mxu0 0.0
    %4564 = vmatprep.subr.mxu0 0.0
    %4565 = vmatpush2.msra.mxu0 0.0
    %4566 = vmatprep.mubr.f32.mxu0 0.0
    %4567 = vmatmul.mubr.f32.gmra.mxu0 %v4500
    %v4568 = vpop.f32.mrf.mxu0
    %v4569 = vadd.f32 %v4494, %v4568
    %v4570 = vpop.f32.mrf.mxu0
    %4571 = vdwg.mxu0
    %v4572 = vadd.f32 %v4569, %v2884
    %v4573 = vxor.u32 %v4572, 2147483648
    %v4574 = vmul.f32 %v4573, 1.442695
    %v4575 = vpow.pop %v4574
    %v4576 = vadd.f32 %v4575, 1.0
    %v4577 = vrcp.pop %v4576
    %v4578 = vmul.f32 1.0, %v4577
    %v4579 = vtanh.pop %v4572
    %v4580 = vmul.f32 %v4578, %v4170
    %4582 = vrot.lane.b32.xlu0 %v4579, 64
    %v4583 = vpop.permute.xlu0 %4582
    %v4585 = vmul.f32 %v4578, %v4583
    %4587 = vrot.lane.b32.xlu0 %v4585, 32
    %v4588 = vpop.permute.xlu0 %4587
    %v4590 = vadd.f32 %v4580, %v4588
    %v4591 = vtanh.pop %v4590
    %4593 = vrot.lane.b32.xlu0 %v4591, 64
    %v4594 = vpop.permute.xlu0 %4593
    %v4596 = vmul.f32 %v4578, %v4594
    %4598 = vrot.lane.b32.xlu0 %v4596, 32
    %v4599 = vpop.permute.xlu0 %4598
    %v4600 = vsel %vm310, %v4599, 0
    %4602 = vmatprep.subr.mxu0 0.0
    %4603 = vmatpush1.msra.mxu0 0.0
    %4604 = vmatprep.subr.mxu0 0.0
    %4605 = vmatpush1.msra.mxu0 0.0
    %4606 = vmatprep.subr.mxu0 0.0
    %4607 = vmatpush1.msra.mxu0 0.0
    %4608 = vmatprep.subr.mxu0 0.0
    %4609 = vmatpush1.msra.mxu0 0.0
    %4610 = vmatprep.subr.mxu0 0.0
    %4611 = vmatpush1.msra.mxu0 0.0
    %4612 = vmatprep.subr.mxu0 0.0
    %4613 = vmatpush1.msra.mxu0 0.0
    %4614 = vmatprep.subr.mxu0 0.0
    %4615 = vmatpush1.msra.mxu0 0.0
    %4616 = vmatprep.subr.mxu0 0.0
    %4617 = vmatpush1.msra.mxu0 0.0
    %4618 = vmatprep.subr.mxu0 0.0
    %4619 = vmatpush1.msra.mxu0 0.0
    %4620 = vmatprep.subr.mxu0 0.0
    %4621 = vmatpush1.msra.mxu0 0.0
    %4622 = vmatprep.subr.mxu0 0.0
    %4623 = vmatpush1.msra.mxu0 0.0
    %4624 = vmatprep.subr.mxu0 0.0
    %4625 = vmatpush1.msra.mxu0 0.0
    %4626 = vmatprep.subr.mxu0 0.0
    %4627 = vmatpush1.msra.mxu0 %v2553
    %4628 = vmatprep.subr.mxu0 0.0
    %4629 = vmatpush1.msra.mxu0 %v2552
    %4630 = vmatprep.subr.mxu0 0.0
    %4631 = vmatpush1.msra.mxu0 %v2551
    %4632 = vmatprep.subr.mxu0 0.0
    %4633 = vmatpush1.msra.mxu0 %v2550
    %4634 = vmatprep.subr.mxu0 0.0
    %4635 = vmatpush2.msra.mxu0 0.0
    %4636 = vmatprep.subr.mxu0 0.0
    %4637 = vmatpush2.msra.mxu0 0.0
    %4638 = vmatprep.subr.mxu0 0.0
    %4639 = vmatpush2.msra.mxu0 0.0
    %4640 = vmatprep.subr.mxu0 0.0
    %4641 = vmatpush2.msra.mxu0 0.0
    %4642 = vmatprep.subr.mxu0 0.0
    %4643 = vmatpush2.msra.mxu0 0.0
    %4644 = vmatprep.subr.mxu0 0.0
    %4645 = vmatpush2.msra.mxu0 0.0
    %4646 = vmatprep.subr.mxu0 0.0
    %4647 = vmatpush2.msra.mxu0 0.0
    %4648 = vmatprep.subr.mxu0 0.0
    %4649 = vmatpush2.msra.mxu0 0.0
    %4650 = vmatprep.subr.mxu0 0.0
    %4651 = vmatpush2.msra.mxu0 0.0
    %4652 = vmatprep.subr.mxu0 0.0
    %4653 = vmatpush2.msra.mxu0 0.0
    %4654 = vmatprep.subr.mxu0 0.0
    %4655 = vmatpush2.msra.mxu0 0.0
    %4656 = vmatprep.subr.mxu0 0.0
    %4657 = vmatpush2.msra.mxu0 0.0
    %4658 = vmatprep.subr.mxu0 0.0
    %4659 = vmatpush2.msra.mxu0 0.0
    %4660 = vmatprep.subr.mxu0 0.0
    %4661 = vmatpush2.msra.mxu0 0.0
    %4662 = vmatprep.subr.mxu0 0.0
    %4663 = vmatpush2.msra.mxu0 0.0
    %4664 = vmatprep.subr.mxu0 0.0
    %4665 = vmatpush2.msra.mxu0 0.0
    %4666 = vmatprep.mubr.f32.mxu0 0.0
    %4667 = vmatmul.mubr.f32.gmra.mxu0 %v4600
    %v4668 = vpop.f32.mrf.mxu0
    %v4669 = vadd.f32 %v2915, %v4668
    %v4670 = vpop.f32.mrf.mxu0
    %4671 = vdwg.mxu0
    %s4672 = scalar_lea.vmem [#allocation21], 10
    %4673 = vst [vmem:[%s4672] sm:$0x3] %v4669
    // Predicated region
    $region114: #{tpu_custom_call.1} parent=1 // pred_check
      _
    $region115: #{tpu_custom_call.1} parent=1 // pred_check_branch
      %4675 = sbr.rel (0) target = $region117
    $region116: #{tpu_custom_call.1} parent=1 // pred_region
      %s4677 = ssub.s32 192, 192
      %4678 = vsyncadd [#allocation4], %s4677
      %s4679 = sshll.u32 [#allocation21], 4
      %s4680 = int_to_ptr.vmem [resolvable:$true] %s4679
      %4685 = dma.vmem_to_hbm [thread:$0]  %s4680, 192, %s17, [#allocation4], 32, 32, 2
    $region117: #{tpu_custom_call.1} parent=1 // pred_fallthru
      _
    // Predicated region
    $region118: #{tpu_custom_call.1} parent=1 // pred_check
      _
    $region119: #{tpu_custom_call.1} parent=1 // pred_check_branch
      %4687 = sbr.rel (0) target = $region121
    $region120: #{tpu_custom_call.1} parent=1 // pred_region
      %4688 = dma.done [#allocation4], 192
    $region121: #{tpu_custom_call.1} parent=1 // pred_fallthru
      _
    %4689 = vsyncpa [#allocation3], 1
    %4690 = vsyncpa [#allocation8], 1
    %4691 = vsyncpa [#allocation11], 1
    %4692 = vsyncpa [#allocation14], 1
    %4693 = vsyncpa [#allocation17], 1
    %4694 = vsyncpa [#allocation20], 1
    %4695 = vsyncpa [#allocation4], 1
    %4696 = vsyncpa [#allocation5], 1

</llo_original>
